<compile_context>
chip_gen: v7x
topology: tpu7x:2x2x1
jax: 0.10.0
libtpu: 0.0.40
codegen_flags: <defaults>
</compile_context>

<pallas_src>
import jax
import jax.numpy as jnp
from jax.experimental import pallas as pl
from jax.experimental.pallas import tpu as pltpu

BF16 = jnp.bfloat16


# ---------------------------------------------------------------------------
# Pallas kernels
# ---------------------------------------------------------------------------

def pw_gemm_kernel(w_ref, b_ref, x_ref, o_ref):
    """One pixel tile of a 1x1 conv (+ folded BN):  o = W @ x + b  (bf16 out)."""
    acc = jnp.dot(w_ref[...], x_ref[...], preferred_element_type=jnp.float32)
    o_ref[...] = (acc + b_ref[...]).astype(o_ref.dtype)


def convmm_kernel(w_ref, b_ref, x_ref, r_ref, o_ref):
    """One pixel tile of: o = relu(W @ cols + b + residual)."""
    acc = jnp.dot(w_ref[...], x_ref[...], preferred_element_type=jnp.float32)
    acc = acc + b_ref[...] + r_ref[...].astype(jnp.float32)
    o_ref[...] = jnp.maximum(acc, 0.0).astype(o_ref.dtype)


def convmm_dual_kernel(w_ref, b_ref, x_ref, r1_ref, r2_ref, o_ref):
    """Fused low_1 / mid_1 GEMM tile: different residual per channel half."""
    acc = jnp.dot(w_ref[...], x_ref[...], preferred_element_type=jnp.float32)
    acc = acc + b_ref[...]
    c1 = r1_ref.shape[0]
    o_ref[0:c1, :] = jnp.maximum(
        acc[0:c1, :] + r1_ref[...].astype(jnp.float32), 0.0).astype(o_ref.dtype)
    o_ref[c1:, :] = jnp.maximum(
        acc[c1:, :] + r2_ref[...].astype(jnp.float32), 0.0).astype(o_ref.dtype)


def up_res_kernel(mh_ref, mwT_ref, y_ref, r_ref, o_ref):
    """Per-(batch, branch) separable bilinear upsample + residual + ReLU.

    y   : (C, Hi, Wi) bf16      mh : (Ho, Hi) bf16     mwT : (Wi, Wo) bf16
    r,o : (C, Ho, Wo)  (bf16 or f32)
    Width pass is one flat (C*Hi, Wi)@(Wi, Wo) GEMM; height pass is a batched
    bf16 matmul over channels (contracts the sublane dim).
    """
    C, Hi, Wi = y_ref.shape
    Ho = mh_ref.shape[0]
    Wo = mwT_ref.shape[1]
    # width interpolation: flat lane-contracting GEMM (good MXU fill)
    t = jnp.dot(y_ref[...].reshape(C * Hi, Wi), mwT_ref[...],
                preferred_element_type=jnp.float32)
    t = t.astype(jnp.bfloat16).reshape(C, Hi, Wo)
    # height interpolation: batched over channels
    mh_b = jnp.broadcast_to(mh_ref[...][None, :, :], (C, Ho, Hi))
    up = jnp.einsum('coh,chw->cow', mh_b, t,
                    preferred_element_type=jnp.float32)           # (C, Ho, Wo)
    o_ref[...] = jnp.maximum(up + r_ref[...].astype(jnp.float32),
                             0.0).astype(o_ref.dtype)


# ---------------------------------------------------------------------------
# Pallas wrappers
# ---------------------------------------------------------------------------

def pw_gemm(x, w, bias, *, in_rows=None, in_row_block=0, tile_px=1024):
    """Pixel-tiled 1x1 conv: (Co,Ci) @ x[rows block](Ci, R) + b -> (Co, R) bf16."""
    x_rows, R = x.shape
    Co, Ci = w.shape
    if in_rows is None:
        in_rows = x_rows
    assert in_rows == Ci
    tr = R if R <= tile_px else tile_px
    rb = in_row_block

    def x_map(i):
        return (rb, i)

    return pl.pallas_call(
        pw_gemm_kernel,
        out_shape=jax.ShapeDtypeStruct((Co, R), BF16),
        grid=(pl.cdiv(R, tr),),
        in_specs=[
            pl.BlockSpec((Co, Ci), lambda i: (0, 0)),   # resident weights
            pl.BlockSpec((Co, 1), lambda i: (0, 0)),    # resident bias
            pl.BlockSpec((Ci, tr), x_map),              # streamed pixel tile
        ],
        out_specs=pl.BlockSpec((Co, tr), lambda i: (0, i)),
        compiler_params=pltpu.CompilerParams(
            dimension_semantics=("parallel",)),
    )(w, bias, x)


def convmm(cols, w, bias, res, *, out_dtype=BF16, tile_px=1024):
    """relu(W @ cols + b + res), pixel-tiled along the lane axis."""
    K, R = cols.shape
    Co = w.shape[0]
    Cr = res.shape[0]
    tr = R if R <= tile_px else tile_px
    return pl.pallas_call(
        convmm_kernel,
        out_shape=jax.ShapeDtypeStruct((Co, R), out_dtype),
        grid=(pl.cdiv(R, tr),),
        in_specs=[
            pl.BlockSpec((Co, K), lambda i: (0, 0)),
            pl.BlockSpec((Co, 1), lambda i: (0, 0)),
            pl.BlockSpec((K, tr), lambda i: (0, i)),
            pl.BlockSpec((Cr, tr), lambda i: (0, i)),
        ],
        out_specs=pl.BlockSpec((Co, tr), lambda i: (0, i)),
        compiler_params=pltpu.CompilerParams(
            dimension_semantics=("parallel",)),
    )(w, bias, cols, res)


def convmm_dual(cols, w, bias, res1, res2_src, *, res2_row_block, tile_px=1024):
    """Fused two-branch GEMM: rows [0:C1] get res1, rows [C1:2*C1] get res2.

    res2 is read as a C1-row block of `res2_src` (no slice copy in HBM)."""
    K, R = cols.shape
    Co = w.shape[0]
    C1 = res1.shape[0]
    assert Co == 2 * C1
    tr = R if R <= tile_px else tile_px
    rb = res2_row_block

    def r2_map(i):
        return (rb, i)

    return pl.pallas_call(
        convmm_dual_kernel,
        out_shape=jax.ShapeDtypeStruct((Co, R), BF16),
        grid=(pl.cdiv(R, tr),),
        in_specs=[
            pl.BlockSpec((Co, K), lambda i: (0, 0)),
            pl.BlockSpec((Co, 1), lambda i: (0, 0)),
            pl.BlockSpec((K, tr), lambda i: (0, i)),
            pl.BlockSpec((C1, tr), lambda i: (0, i)),
            pl.BlockSpec((C1, tr), r2_map),
        ],
        out_specs=pl.BlockSpec((Co, tr), lambda i: (0, i)),
        compiler_params=pltpu.CompilerParams(
            dimension_semantics=("parallel",)),
    )(w, bias, cols, res1, res2_src)


def up_res_cf(y_cf, mh, mwT, res_cf, *, n_rep):
    """Channel-major upsample+res+relu.  Grid (N, n_rep): every branch half adds
    the SAME resident residual block (no concat([m, m]) in HBM)."""
    Ctot, N, Hi, Wi = y_cf.shape
    C = Ctot // n_rep
    Ho = mh.shape[0]
    Wo = mwT.shape[1]
    return pl.pallas_call(
        up_res_kernel,
        out_shape=jax.ShapeDtypeStruct((Ctot, N, Ho, Wo), BF16),
        grid=(N, n_rep),
        in_specs=[
            pl.BlockSpec((Ho, Hi), lambda b, j: (0, 0)),
            pl.BlockSpec((Wi, Wo), lambda b, j: (0, 0)),
            pl.BlockSpec((C, None, Hi, Wi), lambda b, j: (j, b, 0, 0)),
            pl.BlockSpec((C, None, Ho, Wo), lambda b, j: (0, b, 0, 0)),
        ],
        out_specs=pl.BlockSpec((C, None, Ho, Wo), lambda b, j: (j, b, 0, 0)),
        compiler_params=pltpu.CompilerParams(
            dimension_semantics=("parallel", "parallel")),
    )(mh, mwT, y_cf, res_cf)


def up_res_nchw(y_cf, mh, mwT, res_nchw):
    """Upsample+res+relu writing the final NCHW f32 output directly."""
    C, N, Hi, Wi = y_cf.shape
    Ho = mh.shape[0]
    Wo = mwT.shape[1]
    return pl.pallas_call(
        up_res_kernel,
        out_shape=jax.ShapeDtypeStruct((N, C, Ho, Wo), jnp.float32),
        grid=(N,),
        in_specs=[
            pl.BlockSpec((Ho, Hi), lambda b: (0, 0)),
            pl.BlockSpec((Wi, Wo), lambda b: (0, 0)),
            pl.BlockSpec((C, None, Hi, Wi), lambda b: (0, b, 0, 0)),
            pl.BlockSpec((None, C, Ho, Wo), lambda b: (b, 0, 0, 0)),
        ],
        out_specs=pl.BlockSpec((None, C, Ho, Wo), lambda b: (b, 0, 0, 0)),
        compiler_params=pltpu.CompilerParams(
            dimension_semantics=("parallel",)),
    )(mh, mwT, y_cf, res_nchw)


# ---------------------------------------------------------------------------
# Plain-JAX glue: im2col (channel-major), bilinear matrices, params
# ---------------------------------------------------------------------------

def im2col_T_3x3_s2(x):
    """3x3 / stride-2 / pad-1 patches from NCHW x -> (9*C, N*Ho*Wo).
    K ordered (dy, dx, c); columns ordered (n, ho, wo)."""
    N, C, H, W = x.shape
    Ho, Wo = (H + 1) // 2, (W + 1) // 2
    xp = jnp.pad(x, ((0, 0), (0, 0), (1, 1), (1, 1)))
    taps = []
    for dy in range(3):
        for dx in range(3):
            taps.append(xp[:, :, dy:dy + 2 * Ho:2, dx:dx + 2 * Wo:2][:, :, :Ho, :Wo])
    cols = jnp.stack(taps, axis=0)            # (9, N, C, Ho, Wo)
    cols = cols.transpose(0, 2, 1, 3, 4)      # (9, C, N, Ho, Wo)
    return cols.reshape(9 * C, N * Ho * Wo)


def im2col_cf_3x3_s2(x_cf):
    """Same, but from a channel-major (C, N, H, W) input (no extra transpose)."""
    C, N, H, W = x_cf.shape
    Ho, Wo = (H + 1) // 2, (W + 1) // 2
    xp = jnp.pad(x_cf, ((0, 0), (0, 0), (1, 1), (1, 1)))
    taps = []
    for dy in range(3):
        for dx in range(3):
            taps.append(xp[:, :, dy:dy + 2 * Ho:2, dx:dx + 2 * Wo:2][:, :, :Ho, :Wo])
    cols = jnp.stack(taps, axis=0)            # (9, C, N, Ho, Wo)
    return cols.reshape(9 * C, N * Ho * Wo)


def bilinear_matrix(L_out, L_in):
    """1-D bilinear interp matrix, align_corners=False (PyTorch semantics)."""
    o = jnp.arange(L_out, dtype=jnp.float32)
    src = (o + 0.5) * (L_in / L_out) - 0.5
    src = jnp.maximum(src, 0.0)
    i0 = jnp.floor(src).astype(jnp.int32)
    frac = src - jnp.floor(src)
    i1 = jnp.minimum(i0 + 1, L_in - 1)
    M = jnp.zeros((L_out, L_in), jnp.float32)
    rows = jnp.arange(L_out)
    M = M.at[rows, i0].add(1.0 - frac)
    M = M.at[rows, i1].add(frac)
    return M


def init_params(key, h_ch, m_ch, l_ch):
    keys = jax.random.split(key, 30)
    it = iter(keys)

    def conv_w(cout, cin, ksize):
        # (Cout, ksize*ksize*cin) with K ordered (dy, dx, cin).
        return jax.random.normal(next(it), (cout, ksize * ksize * cin),
                                 jnp.float32) * 0.1

    def bn(c):
        gamma = 1.0 + 0.1 * jax.random.normal(next(it), (c,), jnp.float32)
        beta = 0.1 * jax.random.normal(next(it), (c,), jnp.float32)
        mean = 0.1 * jax.random.normal(next(it), (c,), jnp.float32)
        var = 1.0 + jax.random.uniform(next(it), (c,), jnp.float32)
        scale = gamma / jnp.sqrt(var + 1e-5)          # eval-mode BN folding
        bias = beta - mean * scale
        return scale, bias

    p = {}
    p['low1_w'] = conv_w(m_ch, h_ch, 3); p['low1_s'], p['low1_b'] = bn(m_ch)
    p['low2_w'] = conv_w(l_ch, m_ch, 3); p['low2_s'], p['low2_b'] = bn(l_ch)
    p['mid1_w'] = conv_w(m_ch, h_ch, 3); p['mid1_s'], p['mid1_b'] = bn(m_ch)
    p['mid2_w'] = conv_w(m_ch, l_ch, 1); p['mid2_s'], p['mid2_b'] = bn(m_ch)
    p['high1_w'] = conv_w(m_ch, l_ch, 1); p['high1_s'], p['high1_b'] = bn(m_ch)
    p['high2_w'] = conv_w(h_ch, m_ch, 1); p['high2_s'], p['high2_b'] = bn(h_ch)
    return p


# ---------------------------------------------------------------------------
# MutiFusion forward (Pallas path)
# ---------------------------------------------------------------------------

def muti_fusion(h, m, l, params, *, tile_px=1024):
    """h, m, l: NCHW float32.  Returns (h1, m_out, l1) in NCHW float32."""
    N, Ch, Hh, Wh = h.shape
    _, Cm, Hm, Wm = m.shape
    _, Cl, Hl, Wl = l.shape

    def folded_w(wname, sname):
        # Fold BN scale into the conv weight and cast to bf16 for the MXU.
        return (params[wname] * params[sname][:, None]).astype(BF16)

    w_low1, w_low2 = folded_w('low1_w', 'low1_s'), folded_w('low2_w', 'low2_s')
    w_mid1, w_mid2 = folded_w('mid1_w', 'mid1_s'), folded_w('mid2_w', 'mid2_s')
    w_high1, w_high2 = folded_w('high1_w', 'high1_s'), folded_w('high2_w', 'high2_s')

    # Separable bilinear interpolation matrices (bf16 MXU operands, values exact).
    mh_l2m = bilinear_matrix(Hm, Hl).astype(BF16)
    mwT_l2m = bilinear_matrix(Wm, Wl).T.astype(BF16)
    mh_m2h = bilinear_matrix(Hh, Hm).astype(BF16)
    mwT_m2h = bilinear_matrix(Wh, Wm).T.astype(BF16)

    # Channel-major bf16 activation copies (one transpose+cast pass each).
    l_cf = l.transpose(1, 0, 2, 3).reshape(Cl, N * Hl * Wl).astype(BF16)
    m_cf4 = m.transpose(1, 0, 2, 3).astype(BF16)                 # (Cm, N, Hm, Wm)
    m_cf = m_cf4.reshape(Cm, N * Hm * Wm)

    # ---- high_1 / mid_2: fused 1x1-conv GEMM, then fused upsample+res+relu ----
    w_hm = jnp.concatenate([w_high1, w_mid2], axis=0)            # (2Cm, Cl)
    b_hm = jnp.concatenate([params['high1_b'], params['mid2_b']])[:, None]
    y_hm = pw_gemm(l_cf, w_hm, b_hm, tile_px=tile_px)            # (2Cm, N*Hl*Wl) bf16
    am = up_res_cf(y_hm.reshape(2 * Cm, N, Hl, Wl), mh_l2m, mwT_l2m,
                   m_cf4, n_rep=2)                               # (2Cm, N, Hm, Wm) bf16
    am_flat = am.reshape(2 * Cm, N * Hm * Wm)
    # rows [0:Cm]  = h1a = relu(up(high_1(l)) + m)
    # rows [Cm:]   = m1  = relu(up(mid_2(l)) + m)

    # ---- high_2: 1x1 conv on h1a (read in place), upsample to h size, + h ----
    y_h2 = pw_gemm(am_flat, w_high2, params['high2_b'][:, None],
                   in_rows=Cm, in_row_block=0, tile_px=tile_px)  # (Ch, N*Hm*Wm) bf16
    h1 = up_res_nchw(y_h2.reshape(Ch, N, Hm, Wm), mh_m2h, mwT_m2h, h)

    # ---- low_1 / mid_1: shared im2col of h, one fused dual-residual GEMM ----
    cols_h = im2col_T_3x3_s2(h).astype(BF16)                     # (9Ch, N*Hm*Wm)
    w_lm = jnp.concatenate([w_low1, w_mid1], axis=0)             # (2Cm, 9Ch)
    b_lm = jnp.concatenate([params['low1_b'], params['mid1_b']])[:, None]
    out_lm = convmm_dual(cols_h, w_lm, b_lm, m_cf, am_flat,
                         res2_row_block=1, tile_px=tile_px)      # (2Cm, N*Hm*Wm) bf16
    # rows [0:Cm] = l1a = relu(low_1(h) + m); rows [Cm:] = m_out = relu(mid_1(h) + m1)

    # ---- low_2 on l1a (stays channel-major bf16, no HBM transpose) ----
    l1a_cf = out_lm[:Cm].reshape(Cm, N, Hm, Wm)
    cols_l1a = im2col_cf_3x3_s2(l1a_cf)                          # (9Cm, N*Hl*Wl) bf16
    l1_cf = convmm(cols_l1a, w_low2, params['low2_b'][:, None], l_cf,
                   out_dtype=jnp.float32, tile_px=tile_px)       # (Cl, N*Hl*Wl) f32

    # Final layout fixes (one XLA pass each; the f32 upcast rides the transpose).
    m_out = out_lm[Cm:].reshape(Cm, N, Hm, Wm).transpose(1, 0, 2, 3).astype(jnp.float32)
    l1 = l1_cf.reshape(Cl, N, Hl, Wl).transpose(1, 0, 2, 3)
    return h1, m_out, l1


# ---------------------------------------------------------------------------
# Pure-JAX f32 reference (mirrors the PyTorch module exactly)
# ---------------------------------------------------------------------------

def reference(h, m, l, p):
    def conv3x3_bn(x, w_flat, scale, bias):
        cout = w_flat.shape[0]
        cin = w_flat.shape[1] // 9
        w = w_flat.reshape(cout, 3, 3, cin).transpose(0, 3, 1, 2)  # OIHW
        y = jax.lax.conv_general_dilated(
            x, w, window_strides=(2, 2), padding=((1, 1), (1, 1)),
            dimension_numbers=('NCHW', 'OIHW', 'NCHW'))
        return y * scale[None, :, None, None] + bias[None, :, None, None]

    def conv1x1_bn(x, w, scale, bias):
        y = jnp.einsum('oc,nchw->nohw', w, x)
        return y * scale[None, :, None, None] + bias[None, :, None, None]

    def up(x, Ho, Wo):
        Mh = bilinear_matrix(Ho, x.shape[2])
        Mw = bilinear_matrix(Wo, x.shape[3])
        return jnp.einsum('oh,pw,nchw->ncop', Mh, Mw, x)

    relu = lambda v: jnp.maximum(v, 0.0)
    Hh, Wh = h.shape[2], h.shape[3]
    Hm, Wm = m.shape[2], m.shape[3]

    l1 = relu(conv3x3_bn(h, p['low1_w'], p['low1_s'], p['low1_b']) + m)
    l1 = relu(conv3x3_bn(l1, p['low2_w'], p['low2_s'], p['low2_b']) + l)
    h1 = relu(up(conv1x1_bn(l, p['high1_w'], p['high1_s'], p['high1_b']), Hm, Wm) + m)
    h1 = relu(up(conv1x1_bn(h1, p['high2_w'], p['high2_s'], p['high2_b']), Hh, Wh) + h)
    mo = relu(up(conv1x1_bn(l, p['mid2_w'], p['mid2_s'], p['mid2_b']), Hm, Wm) + m)
    mo = relu(conv3x3_bn(h, p['mid1_w'], p['mid1_s'], p['mid1_b']) + mo)
    return h1, mo, l1


# ---------------------------------------------------------------------------
# Main
# ---------------------------------------------------------------------------

if __name__ == "__main__":
    h_ch, m_ch, l_ch = 8, 16, 32
    N, Hh, Wh = 2, 32, 32

    key = jax.random.PRNGKey(0)
    kh, km, kl, kp = jax.random.split(key, 4)
    h = jax.random.normal(kh, (N, h_ch, Hh, Wh), jnp.float32)
    m = jax.random.normal(km, (N, m_ch, Hh // 2, Wh // 2), jnp.float32)
    l = jax.random.normal(kl, (N, l_ch, Hh // 4, Wh // 4), jnp.float32)
    params = init_params(kp, h_ch, m_ch, l_ch)

    # tile_px=256 so the demo-sized GEMMs exercise multi-step pipelined grids
    # (N*Hm*Wm = 512 pixels -> 2 tiles); default is 1024 for real resolutions.
    fwd = jax.jit(lambda a, b, c, p: muti_fusion(a, b, c, p, tile_px=256))
    h1, m_out, l1 = fwd(h, m, l, params)
    jax.block_until_ready((h1, m_out, l1))

    assert h1.shape == (N, h_ch, Hh, Wh)
    assert m_out.shape == (N, m_ch, Hh // 2, Wh // 2)
    assert l1.shape == (N, l_ch, Hh // 4, Wh // 4)

    # Sanity check against the pure-f32 reference (bf16 streams -> small drift).
    h1_r, m_r, l1_r = jax.jit(reference)(h, m, l, params)
    err = max(float(jnp.max(jnp.abs(h1 - h1_r))),
              float(jnp.max(jnp.abs(m_out - m_r))),
              float(jnp.max(jnp.abs(l1 - l1_r))))
    assert err < 0.1, f"max abs error vs reference too large: {err}"
    print("KERNEL_OK")
</pallas_src>

<mosaic_0001>
module attributes {stable_mosaic.version = 11 : i64} {
  func.func private @main(%arg0: i32) attributes {dimension_semantics = [#tpu.dimension_semantics<core_parallel>], iteration_bounds = array<i64: 2>, tpu.core_type = #tpu.core_type<sc_scalar_subcore>, window_params = []} {
    return
  }
}

module attributes {stable_mosaic.version = 11 : i64} {
  func.func private @main(%arg0: i32) attributes {dimension_semantics = [#tpu.dimension_semantics<core_parallel>], iteration_bounds = array<i64: 2>, tpu.core_type = #tpu.core_type<sc_scalar_subcore>, window_params = []} {
    return
  }
}

module attributes {stable_mosaic.version = 11 : i64} {
  func.func @pw_gemm_kernel(%arg0: i32, %arg1: memref<32x32xbf16, #tpu.memory_space<vmem>>, %arg2: memref<32x1xf32, #tpu.memory_space<vmem>>, %arg3: memref<32x128xbf16, #tpu.memory_space<vmem>>, %arg4: memref<32x128xbf16, #tpu.memory_space<vmem>>) attributes {dimension_semantics = [#tpu.dimension_semantics<parallel>], iteration_bounds = array<i64: 1>, scalar_prefetch = 0 : i64, scratch_operands = 0 : i64, tpu.core_type = #tpu.core_type<tc>, window_params = [{pipeline_mode = #tpu.pipeline_mode<synchronous>, transform_indices = @transform_0, window_bounds = array<i64: 32, 32>}, {pipeline_mode = #tpu.pipeline_mode<synchronous>, transform_indices = @transform_1, window_bounds = array<i64: 32, 1>}, {transform_indices = @transform_2, window_bounds = array<i64: 32, 128>}, {transform_indices = @transform_3, window_bounds = array<i64: 32, 128>}]} {
    %c0 = arith.constant 0 : index
    %c0_0 = arith.constant 0 : index
    %0 = vector.load %arg1[%c0, %c0_0] : memref<32x32xbf16, #tpu.memory_space<vmem>>, vector<32x32xbf16>
    %c0_1 = arith.constant 0 : index
    %c0_2 = arith.constant 0 : index
    %1 = vector.load %arg3[%c0_1, %c0_2] : memref<32x128xbf16, #tpu.memory_space<vmem>>, vector<32x128xbf16>
    %cst = arith.constant dense<0.000000e+00> : vector<32x128xf32>
    %2 = tpu.matmul %0, %1, %cst {dimension_numbers = #tpu.dot_dimension_numbers<[1], [0], [0], [1], [0, 0, 1, 1], [], []>} : vector<32x32xbf16>, vector<32x128xbf16>, vector<32x128xf32> -> vector<32x128xf32>
    %c0_3 = arith.constant 0 : index
    %c0_4 = arith.constant 0 : index
    %3 = vector.load %arg2[%c0_3, %c0_4] : memref<32x1xf32, #tpu.memory_space<vmem>>, vector<32x1xf32>
    %4 = vector.broadcast %3 : vector<32x1xf32> to vector<32x128xf32>
    %5 = arith.addf %2, %4 : vector<32x128xf32>
    %6 = arith.truncf %5 : vector<32x128xf32> to vector<32x128xbf16>
    %c0_5 = arith.constant 0 : index
    %c0_6 = arith.constant 0 : index
    %7 = vector.load %arg4[%c0_5, %c0_6] : memref<32x128xbf16, #tpu.memory_space<vmem>>, vector<32x128xbf16>
    tpu.vector_store %arg4[%c0_5, %c0_6], %6 {strides = array<i32>} : memref<32x128xbf16, #tpu.memory_space<vmem>>, vector<32x128xbf16>,
    return
  }
  func.func @transform_0(%arg0: i32) -> (i32, i32) {
    %c0_i32 = arith.constant 0 : i32
    %c0_i32_0 = arith.constant 0 : i32
    %c0_i32_1 = arith.constant 0 : i32
    return %c0_i32, %c0_i32_0 : i32, i32
  }
  func.func @transform_1(%arg0: i32) -> (i32, i32) {
    %c0_i32 = arith.constant 0 : i32
    %c0_i32_0 = arith.constant 0 : i32
    %c0_i32_1 = arith.constant 0 : i32
    return %c0_i32, %c0_i32_0 : i32, i32
  }
  func.func @transform_2(%arg0: i32) -> (i32, i32) {
    %c0_i32 = arith.constant 0 : i32
    %c0_i32_0 = arith.constant 0 : i32
    return %c0_i32, %arg0 : i32, i32
  }
  func.func @transform_3(%arg0: i32) -> (i32, i32) {
    %c0_i32 = arith.constant 0 : i32
    %c0_i32_0 = arith.constant 0 : i32
    return %c0_i32, %arg0 : i32, i32
  }
}

module attributes {stable_mosaic.version = 11 : i64} {
  func.func @up_res_kernel(%arg0: i32, %arg1: i32, %arg2: memref<16x8xbf16, #tpu.memory_space<vmem>>, %arg3: memref<8x16xbf16, #tpu.memory_space<vmem>>, %arg4: memref<16x1x8x8xbf16, #tpu.memory_space<vmem>>, %arg5: memref<16x1x16x16xbf16, #tpu.memory_space<vmem>>, %arg6: memref<16x1x16x16xbf16, #tpu.memory_space<vmem>>) attributes {dimension_semantics = [#tpu.dimension_semantics<parallel>, #tpu.dimension_semantics<parallel>], iteration_bounds = array<i64: 2, 2>, scalar_prefetch = 0 : i64, scratch_operands = 0 : i64, tpu.core_type = #tpu.core_type<tc>, window_params = [{pipeline_mode = #tpu.pipeline_mode<synchronous>, transform_indices = @transform_0, window_bounds = array<i64: 16, 8>}, {pipeline_mode = #tpu.pipeline_mode<synchronous>, transform_indices = @transform_1, window_bounds = array<i64: 8, 16>}, {transform_indices = @transform_2, window_bounds = array<i64: 16, 1, 8, 8>}, {transform_indices = @transform_3, window_bounds = array<i64: 16, 1, 16, 16>}, {transform_indices = @transform_4, window_bounds = array<i64: 16, 1, 16, 16>}]} {
    %c0 = arith.constant 0 : index
    %c0_0 = arith.constant 0 : index
    %c0_1 = arith.constant 0 : index
    %c0_2 = arith.constant 0 : index
    %0 = vector.load %arg4[%c0, %c0_0, %c0_1, %c0_2] : memref<16x1x8x8xbf16, #tpu.memory_space<vmem>>, vector<16x1x8x8xbf16>
    %1 = vector.shape_cast %0 : vector<16x1x8x8xbf16> to vector<16x8x8xbf16>
    %2 = vector.shape_cast %1 : vector<16x8x8xbf16> to vector<128x8xbf16>
    %c0_3 = arith.constant 0 : index
    %c0_4 = arith.constant 0 : index
    %3 = vector.load %arg3[%c0_3, %c0_4] : memref<8x16xbf16, #tpu.memory_space<vmem>>, vector<8x16xbf16>
    %cst = arith.constant dense<0.000000e+00> : vector<128x16xf32>
    %4 = tpu.matmul %2, %3, %cst {dimension_numbers = #tpu.dot_dimension_numbers<[1], [0], [0], [1], [0, 0, 1, 1], [], []>} : vector<128x8xbf16>, vector<8x16xbf16>, vector<128x16xf32> -> vector<128x16xf32>
    %5 = arith.truncf %4 : vector<128x16xf32> to vector<128x16xbf16>
    %6 = vector.shape_cast %5 : vector<128x16xbf16> to vector<16x8x16xbf16>
    %c0_5 = arith.constant 0 : index
    %c0_6 = arith.constant 0 : index
    %7 = vector.load %arg2[%c0_5, %c0_6] : memref<16x8xbf16, #tpu.memory_space<vmem>>, vector<16x8xbf16>
    %8 = vector.shape_cast %7 : vector<16x8xbf16> to vector<1x16x8xbf16>
    %9 = vector.shape_cast %8 : vector<1x16x8xbf16> to vector<1x16x8xbf16>
    %10 = vector.broadcast %9 : vector<1x16x8xbf16> to vector<16x16x8xbf16>
    "tpu.trace_start"() <{level = 10 : i32, message = "coh,chw->cow"}> : () -> ()
    %cst_7 = arith.constant dense<0.000000e+00> : vector<16x16x16xf32>
    %11 = tpu.matmul %10, %6, %cst_7 {dimension_numbers = #tpu.dot_dimension_numbers<[2], [1], [1], [2], [0, 0, 0, 1, 1, 2], [0], [0]>} : vector<16x16x8xbf16>, vector<16x8x16xbf16>, vector<16x16x16xf32> -> vector<16x16x16xf32>
    "tpu.trace_stop"() : () -> ()
    %c0_8 = arith.constant 0 : index
    %c0_9 = arith.constant 0 : index
    %c0_10 = arith.constant 0 : index
    %c0_11 = arith.constant 0 : index
    %12 = vector.load %arg5[%c0_8, %c0_9, %c0_10, %c0_11] : memref<16x1x16x16xbf16, #tpu.memory_space<vmem>>, vector<16x1x16x16xbf16>
    %13 = vector.shape_cast %12 : vector<16x1x16x16xbf16> to vector<16x16x16xbf16>
    %14 = arith.extf %13 : vector<16x16x16xbf16> to vector<16x16x16xf32>
    %15 = arith.addf %11, %14 : vector<16x16x16xf32>
    %cst_12 = arith.constant 0.000000e+00 : f32
    %16 = vector.broadcast %cst_12 : f32 to vector<16x16x16xf32>
    %17 = arith.maximumf %15, %16 : vector<16x16x16xf32>
    %18 = arith.truncf %17 : vector<16x16x16xf32> to vector<16x16x16xbf16>
    %c0_13 = arith.constant 0 : index
    %c0_14 = arith.constant 0 : index
    %c0_15 = arith.constant 0 : index
    %c0_16 = arith.constant 0 : index
    %19 = vector.load %arg6[%c0_13, %c0_14, %c0_15, %c0_16] : memref<16x1x16x16xbf16, #tpu.memory_space<vmem>>, vector<16x1x16x16xbf16>
    %20 = vector.shape_cast %19 : vector<16x1x16x16xbf16> to vector<16x16x16xbf16>
    %21 = vector.shape_cast %18 : vector<16x16x16xbf16> to vector<16x1x16x16xbf16>
    tpu.vector_store %arg6[%c0_13, %c0_14, %c0_15, %c0_16], %21 {strides = array<i32>} : memref<16x1x16x16xbf16, #tpu.memory_space<vmem>>, vector<16x1x16x16xbf16>,
    return
  }
  func.func @transform_0(%arg0: i32, %arg1: i32) -> (i32, i32) {
    %c0_i32 = arith.constant 0 : i32
    %c0_i32_0 = arith.constant 0 : i32
    %c0_i32_1 = arith.constant 0 : i32
    return %c0_i32, %c0_i32_0 : i32, i32
  }
  func.func @transform_1(%arg0: i32, %arg1: i32) -> (i32, i32) {
    %c0_i32 = arith.constant 0 : i32
    %c0_i32_0 = arith.constant 0 : i32
    %c0_i32_1 = arith.constant 0 : i32
    return %c0_i32, %c0_i32_0 : i32, i32
  }
  func.func @transform_2(%arg0: i32, %arg1: i32) -> (i32, i32, i32, i32) {
    %c0_i32 = arith.constant 0 : i32
    %c0_i32_0 = arith.constant 0 : i32
    %c0_i32_1 = arith.constant 0 : i32
    return %arg1, %arg0, %c0_i32, %c0_i32_0 : i32, i32, i32, i32
  }
  func.func @transform_3(%arg0: i32, %arg1: i32) -> (i32, i32, i32, i32) {
    %c0_i32 = arith.constant 0 : i32
    %c0_i32_0 = arith.constant 0 : i32
    %c0_i32_1 = arith.constant 0 : i32
    %c0_i32_2 = arith.constant 0 : i32
    return %c0_i32, %arg0, %c0_i32_0, %c0_i32_1 : i32, i32, i32, i32
  }
  func.func @transform_4(%arg0: i32, %arg1: i32) -> (i32, i32, i32, i32) {
    %c0_i32 = arith.constant 0 : i32
    %c0_i32_0 = arith.constant 0 : i32
    %c0_i32_1 = arith.constant 0 : i32
    return %arg1, %arg0, %c0_i32, %c0_i32_0 : i32, i32, i32, i32
  }
}

module attributes {stable_mosaic.version = 11 : i64} {
  func.func @convmm_dual_kernel(%arg0: i32, %arg1: memref<32x72xbf16, #tpu.memory_space<vmem>>, %arg2: memref<32x1xf32, #tpu.memory_space<vmem>>, %arg3: memref<72x256xbf16, #tpu.memory_space<vmem>>, %arg4: memref<16x256xbf16, #tpu.memory_space<vmem>>, %arg5: memref<16x256xbf16, #tpu.memory_space<vmem>>, %arg6: memref<32x256xbf16, #tpu.memory_space<vmem>>) attributes {dimension_semantics = [#tpu.dimension_semantics<parallel>], iteration_bounds = array<i64: 2>, scalar_prefetch = 0 : i64, scratch_operands = 0 : i64, tpu.core_type = #tpu.core_type<tc>, window_params = [{pipeline_mode = #tpu.pipeline_mode<synchronous>, transform_indices = @transform_0, window_bounds = array<i64: 32, 72>}, {pipeline_mode = #tpu.pipeline_mode<synchronous>, transform_indices = @transform_1, window_bounds = array<i64: 32, 1>}, {transform_indices = @transform_2, window_bounds = array<i64: 72, 256>}, {transform_indices = @transform_3, window_bounds = array<i64: 16, 256>}, {transform_indices = @transform_4, window_bounds = array<i64: 16, 256>}, {transform_indices = @transform_5, window_bounds = array<i64: 32, 256>}]} {
    %c0 = arith.constant 0 : index
    %c0_0 = arith.constant 0 : index
    %0 = vector.load %arg1[%c0, %c0_0] : memref<32x72xbf16, #tpu.memory_space<vmem>>, vector<32x72xbf16>
    %c0_1 = arith.constant 0 : index
    %c0_2 = arith.constant 0 : index
    %1 = vector.load %arg3[%c0_1, %c0_2] : memref<72x256xbf16, #tpu.memory_space<vmem>>, vector<72x256xbf16>
    %cst = arith.constant dense<0.000000e+00> : vector<32x256xf32>
    %2 = tpu.matmul %0, %1, %cst {dimension_numbers = #tpu.dot_dimension_numbers<[1], [0], [0], [1], [0, 0, 1, 1], [], []>} : vector<32x72xbf16>, vector<72x256xbf16>, vector<32x256xf32> -> vector<32x256xf32>
    %c0_3 = arith.constant 0 : index
    %c0_4 = arith.constant 0 : index
    %3 = vector.load %arg2[%c0_3, %c0_4] : memref<32x1xf32, #tpu.memory_space<vmem>>, vector<32x1xf32>
    %4 = vector.broadcast %3 : vector<32x1xf32> to vector<32x256xf32>
    %5 = arith.addf %2, %4 : vector<32x256xf32>
    %6 = vector.extract_strided_slice %5 {offsets = [0, 0], sizes = [16, 256], strides = [1, 1]} : vector<32x256xf32> to vector<16x256xf32>
    %c0_5 = arith.constant 0 : index
    %c0_6 = arith.constant 0 : index
    %7 = vector.load %arg4[%c0_5, %c0_6] : memref<16x256xbf16, #tpu.memory_space<vmem>>, vector<16x256xbf16>
    %8 = arith.extf %7 : vector<16x256xbf16> to vector<16x256xf32>
    %9 = arith.addf %6, %8 : vector<16x256xf32>
    %cst_7 = arith.constant 0.000000e+00 : f32
    %10 = vector.broadcast %cst_7 : f32 to vector<16x256xf32>
    %11 = arith.maximumf %9, %10 : vector<16x256xf32>
    %12 = arith.truncf %11 : vector<16x256xf32> to vector<16x256xbf16>
    %c0_8 = arith.constant 0 : index
    %c0_9 = arith.constant 0 : index
    %13 = vector.load %arg6[%c0_8, %c0_9] : memref<32x256xbf16, #tpu.memory_space<vmem>>, vector<16x256xbf16>
    tpu.vector_store %arg6[%c0_8, %c0_9], %12 {strides = array<i32>} : memref<32x256xbf16, #tpu.memory_space<vmem>>, vector<16x256xbf16>,
    %14 = vector.extract_strided_slice %5 {offsets = [16, 0], sizes = [16, 256], strides = [1, 1]} : vector<32x256xf32> to vector<16x256xf32>
    %c0_10 = arith.constant 0 : index
    %c0_11 = arith.constant 0 : index
    %15 = vector.load %arg5[%c0_10, %c0_11] : memref<16x256xbf16, #tpu.memory_space<vmem>>, vector<16x256xbf16>
    %16 = arith.extf %15 : vector<16x256xbf16> to vector<16x256xf32>
    %17 = arith.addf %14, %16 : vector<16x256xf32>
    %cst_12 = arith.constant 0.000000e+00 : f32
    %18 = vector.broadcast %cst_12 : f32 to vector<16x256xf32>
    %19 = arith.maximumf %17, %18 : vector<16x256xf32>
    %20 = arith.truncf %19 : vector<16x256xf32> to vector<16x256xbf16>
    %c16 = arith.constant 16 : index
    %c0_13 = arith.constant 0 : index
    %21 = vector.load %arg6[%c16, %c0_13] : memref<32x256xbf16, #tpu.memory_space<vmem>>, vector<16x256xbf16>
    tpu.vector_store %arg6[%c16, %c0_13], %20 {strides = array<i32>} : memref<32x256xbf16, #tpu.memory_space<vmem>>, vector<16x256xbf16>,
    return
  }
  func.func @transform_0(%arg0: i32) -> (i32, i32) {
    %c0_i32 = arith.constant 0 : i32
    %c0_i32_0 = arith.constant 0 : i32
    %c0_i32_1 = arith.constant 0 : i32
    return %c0_i32, %c0_i32_0 : i32, i32
  }
  func.func @transform_1(%arg0: i32) -> (i32, i32) {
    %c0_i32 = arith.constant 0 : i32
    %c0_i32_0 = arith.constant 0 : i32
    %c0_i32_1 = arith.constant 0 : i32
    return %c0_i32, %c0_i32_0 : i32, i32
  }
  func.func @transform_2(%arg0: i32) -> (i32, i32) {
    %c0_i32 = arith.constant 0 : i32
    %c0_i32_0 = arith.constant 0 : i32
    return %c0_i32, %arg0 : i32, i32
  }
  func.func @transform_3(%arg0: i32) -> (i32, i32) {
    %c0_i32 = arith.constant 0 : i32
    %c0_i32_0 = arith.constant 0 : i32
    return %c0_i32, %arg0 : i32, i32
  }
  func.func @transform_4(%arg0: i32) -> (i32, i32) {
    %c1_i32 = arith.constant 1 : i32
    %c0_i32 = arith.constant 0 : i32
    return %c1_i32, %arg0 : i32, i32
  }
  func.func @transform_5(%arg0: i32) -> (i32, i32) {
    %c0_i32 = arith.constant 0 : i32
    %c0_i32_0 = arith.constant 0 : i32
    return %c0_i32, %arg0 : i32, i32
  }
}

module attributes {stable_mosaic.version = 11 : i64} {
  func.func @convmm_kernel(%arg0: i32, %arg1: memref<32x144xbf16, #tpu.memory_space<vmem>>, %arg2: memref<32x1xf32, #tpu.memory_space<vmem>>, %arg3: memref<144x128xbf16, #tpu.memory_space<vmem>>, %arg4: memref<32x128xbf16, #tpu.memory_space<vmem>>, %arg5: memref<32x128xf32, #tpu.memory_space<vmem>>) attributes {dimension_semantics = [#tpu.dimension_semantics<parallel>], iteration_bounds = array<i64: 1>, scalar_prefetch = 0 : i64, scratch_operands = 0 : i64, tpu.core_type = #tpu.core_type<tc>, window_params = [{pipeline_mode = #tpu.pipeline_mode<synchronous>, transform_indices = @transform_0, window_bounds = array<i64: 32, 144>}, {pipeline_mode = #tpu.pipeline_mode<synchronous>, transform_indices = @transform_1, window_bounds = array<i64: 32, 1>}, {transform_indices = @transform_2, window_bounds = array<i64: 144, 128>}, {transform_indices = @transform_3, window_bounds = array<i64: 32, 128>}, {transform_indices = @transform_4, window_bounds = array<i64: 32, 128>}]} {
    %c0 = arith.constant 0 : index
    %c0_0 = arith.constant 0 : index
    %0 = vector.load %arg1[%c0, %c0_0] : memref<32x144xbf16, #tpu.memory_space<vmem>>, vector<32x144xbf16>
    %c0_1 = arith.constant 0 : index
    %c0_2 = arith.constant 0 : index
    %1 = vector.load %arg3[%c0_1, %c0_2] : memref<144x128xbf16, #tpu.memory_space<vmem>>, vector<144x128xbf16>
    %cst = arith.constant dense<0.000000e+00> : vector<32x128xf32>
    %2 = tpu.matmul %0, %1, %cst {dimension_numbers = #tpu.dot_dimension_numbers<[1], [0], [0], [1], [0, 0, 1, 1], [], []>} : vector<32x144xbf16>, vector<144x128xbf16>, vector<32x128xf32> -> vector<32x128xf32>
    %c0_3 = arith.constant 0 : index
    %c0_4 = arith.constant 0 : index
    %3 = vector.load %arg2[%c0_3, %c0_4] : memref<32x1xf32, #tpu.memory_space<vmem>>, vector<32x1xf32>
    %4 = vector.broadcast %3 : vector<32x1xf32> to vector<32x128xf32>
    %5 = arith.addf %2, %4 : vector<32x128xf32>
    %c0_5 = arith.constant 0 : index
    %c0_6 = arith.constant 0 : index
    %6 = vector.load %arg4[%c0_5, %c0_6] : memref<32x128xbf16, #tpu.memory_space<vmem>>, vector<32x128xbf16>
    %7 = arith.extf %6 : vector<32x128xbf16> to vector<32x128xf32>
    %8 = arith.addf %5, %7 : vector<32x128xf32>
    %cst_7 = arith.constant 0.000000e+00 : f32
    %9 = vector.broadcast %cst_7 : f32 to vector<32x128xf32>
    %10 = arith.maximumf %8, %9 : vector<32x128xf32>
    %c0_8 = arith.constant 0 : index
    %c0_9 = arith.constant 0 : index
    %11 = vector.load %arg5[%c0_8, %c0_9] : memref<32x128xf32, #tpu.memory_space<vmem>>, vector<32x128xf32>
    tpu.vector_store %arg5[%c0_8, %c0_9], %10 {strides = array<i32>} : memref<32x128xf32, #tpu.memory_space<vmem>>, vector<32x128xf32>,
    return
  }
  func.func @transform_0(%arg0: i32) -> (i32, i32) {
    %c0_i32 = arith.constant 0 : i32
    %c0_i32_0 = arith.constant 0 : i32
    %c0_i32_1 = arith.constant 0 : i32
    return %c0_i32, %c0_i32_0 : i32, i32
  }
  func.func @transform_1(%arg0: i32) -> (i32, i32) {
    %c0_i32 = arith.constant 0 : i32
    %c0_i32_0 = arith.constant 0 : i32
    %c0_i32_1 = arith.constant 0 : i32
    return %c0_i32, %c0_i32_0 : i32, i32
  }
  func.func @transform_2(%arg0: i32) -> (i32, i32) {
    %c0_i32 = arith.constant 0 : i32
    %c0_i32_0 = arith.constant 0 : i32
    return %c0_i32, %arg0 : i32, i32
  }
  func.func @transform_3(%arg0: i32) -> (i32, i32) {
    %c0_i32 = arith.constant 0 : i32
    %c0_i32_0 = arith.constant 0 : i32
    return %c0_i32, %arg0 : i32, i32
  }
  func.func @transform_4(%arg0: i32) -> (i32, i32) {
    %c0_i32 = arith.constant 0 : i32
    %c0_i32_0 = arith.constant 0 : i32
    return %c0_i32, %arg0 : i32, i32
  }
}

module attributes {stable_mosaic.version = 11 : i64} {
  func.func @pw_gemm_kernel(%arg0: i32, %arg1: memref<8x16xbf16, #tpu.memory_space<vmem>>, %arg2: memref<8x1xf32, #tpu.memory_space<vmem>>, %arg3: memref<16x256xbf16, #tpu.memory_space<vmem>>, %arg4: memref<8x256xbf16, #tpu.memory_space<vmem>>) attributes {dimension_semantics = [#tpu.dimension_semantics<parallel>], iteration_bounds = array<i64: 2>, scalar_prefetch = 0 : i64, scratch_operands = 0 : i64, tpu.core_type = #tpu.core_type<tc>, window_params = [{pipeline_mode = #tpu.pipeline_mode<synchronous>, transform_indices = @transform_0, window_bounds = array<i64: 8, 16>}, {pipeline_mode = #tpu.pipeline_mode<synchronous>, transform_indices = @transform_1, window_bounds = array<i64: 8, 1>}, {transform_indices = @transform_2, window_bounds = array<i64: 16, 256>}, {transform_indices = @transform_3, window_bounds = array<i64: 8, 256>}]} {
    %c0 = arith.constant 0 : index
    %c0_0 = arith.constant 0 : index
    %0 = vector.load %arg1[%c0, %c0_0] : memref<8x16xbf16, #tpu.memory_space<vmem>>, vector<8x16xbf16>
    %c0_1 = arith.constant 0 : index
    %c0_2 = arith.constant 0 : index
    %1 = vector.load %arg3[%c0_1, %c0_2] : memref<16x256xbf16, #tpu.memory_space<vmem>>, vector<16x256xbf16>
    %cst = arith.constant dense<0.000000e+00> : vector<8x256xf32>
    %2 = tpu.matmul %0, %1, %cst {dimension_numbers = #tpu.dot_dimension_numbers<[1], [0], [0], [1], [0, 0, 1, 1], [], []>} : vector<8x16xbf16>, vector<16x256xbf16>, vector<8x256xf32> -> vector<8x256xf32>
    %c0_3 = arith.constant 0 : index
    %c0_4 = arith.constant 0 : index
    %3 = vector.load %arg2[%c0_3, %c0_4] : memref<8x1xf32, #tpu.memory_space<vmem>>, vector<8x1xf32>
    %4 = vector.broadcast %3 : vector<8x1xf32> to vector<8x256xf32>
    %5 = arith.addf %2, %4 : vector<8x256xf32>
    %6 = arith.truncf %5 : vector<8x256xf32> to vector<8x256xbf16>
    %c0_5 = arith.constant 0 : index
    %c0_6 = arith.constant 0 : index
    %7 = vector.load %arg4[%c0_5, %c0_6] : memref<8x256xbf16, #tpu.memory_space<vmem>>, vector<8x256xbf16>
    tpu.vector_store %arg4[%c0_5, %c0_6], %6 {strides = array<i32>} : memref<8x256xbf16, #tpu.memory_space<vmem>>, vector<8x256xbf16>,
    return
  }
  func.func @transform_0(%arg0: i32) -> (i32, i32) {
    %c0_i32 = arith.constant 0 : i32
    %c0_i32_0 = arith.constant 0 : i32
    %c0_i32_1 = arith.constant 0 : i32
    return %c0_i32, %c0_i32_0 : i32, i32
  }
  func.func @transform_1(%arg0: i32) -> (i32, i32) {
    %c0_i32 = arith.constant 0 : i32
    %c0_i32_0 = arith.constant 0 : i32
    %c0_i32_1 = arith.constant 0 : i32
    return %c0_i32, %c0_i32_0 : i32, i32
  }
  func.func @transform_2(%arg0: i32) -> (i32, i32) {
    %c0_i32 = arith.constant 0 : i32
    %c0_i32_0 = arith.constant 0 : i32
    return %c0_i32, %arg0 : i32, i32
  }
  func.func @transform_3(%arg0: i32) -> (i32, i32) {
    %c0_i32 = arith.constant 0 : i32
    %c0_i32_0 = arith.constant 0 : i32
    return %c0_i32, %arg0 : i32, i32
  }
}

module attributes {stable_mosaic.version = 11 : i64} {
  func.func @up_res_kernel(%arg0: i32, %arg1: memref<32x16xbf16, #tpu.memory_space<vmem>>, %arg2: memref<16x32xbf16, #tpu.memory_space<vmem>>, %arg3: memref<8x1x16x16xbf16, #tpu.memory_space<vmem>>, %arg4: memref<1x8x32x32xf32, #tpu.memory_space<vmem>>, %arg5: memref<1x8x32x32xf32, #tpu.memory_space<vmem>>) attributes {dimension_semantics = [#tpu.dimension_semantics<parallel>], iteration_bounds = array<i64: 2>, scalar_prefetch = 0 : i64, scratch_operands = 0 : i64, tpu.core_type = #tpu.core_type<tc>, window_params = [{pipeline_mode = #tpu.pipeline_mode<synchronous>, transform_indices = @transform_0, window_bounds = array<i64: 32, 16>}, {pipeline_mode = #tpu.pipeline_mode<synchronous>, transform_indices = @transform_1, window_bounds = array<i64: 16, 32>}, {transform_indices = @transform_2, window_bounds = array<i64: 8, 1, 16, 16>}, {transform_indices = @transform_3, window_bounds = array<i64: 1, 8, 32, 32>}, {transform_indices = @transform_4, window_bounds = array<i64: 1, 8, 32, 32>}]} {
    %c0 = arith.constant 0 : index
    %c0_0 = arith.constant 0 : index
    %c0_1 = arith.constant 0 : index
    %c0_2 = arith.constant 0 : index
    %0 = vector.load %arg3[%c0, %c0_0, %c0_1, %c0_2] : memref<8x1x16x16xbf16, #tpu.memory_space<vmem>>, vector<8x1x16x16xbf16>
    %1 = vector.shape_cast %0 : vector<8x1x16x16xbf16> to vector<8x16x16xbf16>
    %2 = vector.shape_cast %1 : vector<8x16x16xbf16> to vector<128x16xbf16>
    %c0_3 = arith.constant 0 : index
    %c0_4 = arith.constant 0 : index
    %3 = vector.load %arg2[%c0_3, %c0_4] : memref<16x32xbf16, #tpu.memory_space<vmem>>, vector<16x32xbf16>
    %cst = arith.constant dense<0.000000e+00> : vector<128x32xf32>
    %4 = tpu.matmul %2, %3, %cst {dimension_numbers = #tpu.dot_dimension_numbers<[1], [0], [0], [1], [0, 0, 1, 1], [], []>} : vector<128x16xbf16>, vector<16x32xbf16>, vector<128x32xf32> -> vector<128x32xf32>
    %5 = arith.truncf %4 : vector<128x32xf32> to vector<128x32xbf16>
    %6 = vector.shape_cast %5 : vector<128x32xbf16> to vector<8x16x32xbf16>
    %c0_5 = arith.constant 0 : index
    %c0_6 = arith.constant 0 : index
    %7 = vector.load %arg1[%c0_5, %c0_6] : memref<32x16xbf16, #tpu.memory_space<vmem>>, vector<32x16xbf16>
    %8 = vector.shape_cast %7 : vector<32x16xbf16> to vector<1x32x16xbf16>
    %9 = vector.shape_cast %8 : vector<1x32x16xbf16> to vector<1x32x16xbf16>
    %10 = vector.broadcast %9 : vector<1x32x16xbf16> to vector<8x32x16xbf16>
    "tpu.trace_start"() <{level = 10 : i32, message = "coh,chw->cow"}> : () -> ()
    %cst_7 = arith.constant dense<0.000000e+00> : vector<8x32x32xf32>
    %11 = tpu.matmul %10, %6, %cst_7 {dimension_numbers = #tpu.dot_dimension_numbers<[2], [1], [1], [2], [0, 0, 0, 1, 1, 2], [0], [0]>} : vector<8x32x16xbf16>, vector<8x16x32xbf16>, vector<8x32x32xf32> -> vector<8x32x32xf32>
    "tpu.trace_stop"() : () -> ()
    %c0_8 = arith.constant 0 : index
    %c0_9 = arith.constant 0 : index
    %c0_10 = arith.constant 0 : index
    %c0_11 = arith.constant 0 : index
    %12 = vector.load %arg4[%c0_8, %c0_9, %c0_10, %c0_11] : memref<1x8x32x32xf32, #tpu.memory_space<vmem>>, vector<1x8x32x32xf32>
    %13 = vector.shape_cast %12 : vector<1x8x32x32xf32> to vector<8x32x32xf32>
    %14 = arith.addf %11, %13 : vector<8x32x32xf32>
    %cst_12 = arith.constant 0.000000e+00 : f32
    %15 = vector.broadcast %cst_12 : f32 to vector<8x32x32xf32>
    %16 = arith.maximumf %14, %15 : vector<8x32x32xf32>
    %c0_13 = arith.constant 0 : index
    %c0_14 = arith.constant 0 : index
    %c0_15 = arith.constant 0 : index
    %c0_16 = arith.constant 0 : index
    %17 = vector.load %arg5[%c0_13, %c0_14, %c0_15, %c0_16] : memref<1x8x32x32xf32, #tpu.memory_space<vmem>>, vector<1x8x32x32xf32>
    %18 = vector.shape_cast %17 : vector<1x8x32x32xf32> to vector<8x32x32xf32>
    %19 = vector.shape_cast %16 : vector<8x32x32xf32> to vector<1x8x32x32xf32>
    tpu.vector_store %arg5[%c0_13, %c0_14, %c0_15, %c0_16], %19 {strides = array<i32>} : memref<1x8x32x32xf32, #tpu.memory_space<vmem>>, vector<1x8x32x32xf32>,
    return
  }
  func.func @transform_0(%arg0: i32) -> (i32, i32) {
    %c0_i32 = arith.constant 0 : i32
    %c0_i32_0 = arith.constant 0 : i32
    %c0_i32_1 = arith.constant 0 : i32
    return %c0_i32, %c0_i32_0 : i32, i32
  }
  func.func @transform_1(%arg0: i32) -> (i32, i32) {
    %c0_i32 = arith.constant 0 : i32
    %c0_i32_0 = arith.constant 0 : i32
    %c0_i32_1 = arith.constant 0 : i32
    return %c0_i32, %c0_i32_0 : i32, i32
  }
  func.func @transform_2(%arg0: i32) -> (i32, i32, i32, i32) {
    %c0_i32 = arith.constant 0 : i32
    %c0_i32_0 = arith.constant 0 : i32
    %c0_i32_1 = arith.constant 0 : i32
    %c0_i32_2 = arith.constant 0 : i32
    return %c0_i32, %arg0, %c0_i32_0, %c0_i32_1 : i32, i32, i32, i32
  }
  func.func @transform_3(%arg0: i32) -> (i32, i32, i32, i32) {
    %c0_i32 = arith.constant 0 : i32
    %c0_i32_0 = arith.constant 0 : i32
    %c0_i32_1 = arith.constant 0 : i32
    %c0_i32_2 = arith.constant 0 : i32
    return %arg0, %c0_i32, %c0_i32_0, %c0_i32_1 : i32, i32, i32, i32
  }
  func.func @transform_4(%arg0: i32) -> (i32, i32, i32, i32) {
    %c0_i32 = arith.constant 0 : i32
    %c0_i32_0 = arith.constant 0 : i32
    %c0_i32_1 = arith.constant 0 : i32
    %c0_i32_2 = arith.constant 0 : i32
    return %arg0, %c0_i32, %c0_i32_0, %c0_i32_1 : i32, i32, i32, i32
  }
}

</mosaic_0001>

<llo_original>
// kernel: _lambda_.6
$region0: #{_lambda_.6}
  #allocation0 [shape = 'u32[]', space=smem, size = 0x4, offset = 0x4, fixed_abs, tag = 'smem constant byte address 0x4 - core index']
  #allocation1 [shape = 'u32[144,128]{1,0:T(1,128)}', space=vmem, size = 0x12000, scoped, tag = 'internal scratch']
  %s0 = inlined_call_operand.vmem [shape: bf16[32,32], index: 0, kind: input, shape index: {}]
  %s1 = inlined_call_operand.vmem [shape: f32[32,1], index: 1, kind: input, shape index: {}]
  %s2 = inlined_call_operand.vmem [shape: bf16[32,128], index: 2, kind: input, shape index: {}]
  %s3 = inlined_call_operand.vmem [shape: bf16[32,128], index: 3, kind: output, shape index: {}]
  %s4 = sld [smem:[#allocation0]]
  $region22: #{_lambda_.6} parent=0
    _
  %s6 = ssub.s32 1, %s4
  %s7 = scalar_select 0, %s6, %s4
  // Predicated region
  $region2: #{_lambda_.6} parent=0 // pred_check
    _
  $region3: #{_lambda_.6} parent=0 // pred_check_branch
    %9 = sbr.rel (0) target = $region5
  $region4: #{_lambda_.6} parent=0 // pred_region
    _
  $region5: #{_lambda_.6} parent=0 // pred_fallthru
    _
  // Predicated region
  $region6: #{_lambda_.6} parent=0 // pred_check
    _
  $region7: #{_lambda_.6} parent=0 // pred_check_branch
    %11 = sbr.rel (0) target = $region9
  $region8: #{_lambda_.6} parent=0 // pred_region
    _
  $region9: #{_lambda_.6} parent=0 // pred_fallthru
    _
  // Predicated region
  $region10: #{_lambda_.6} parent=0 // pred_check
    _
  $region11: #{_lambda_.6} parent=0 // pred_check_branch
    %13 = sbr.rel (0) target = $region13
  $region12: #{_lambda_.6} parent=0 // pred_region
    _
  $region13: #{_lambda_.6} parent=0 // pred_fallthru
    _
  %v15 = vld [vmem:[%s0] sm:$0xf]
  %v16 = vld [vmem:[%s0 + $0x4] sm:$0xf]
  %v17 = vld [vmem:[%s0 + $0x8] sm:$0xf]
  %v18 = vld [vmem:[%s0 + $0xc] sm:$0xf]
  %v19 = vld [vmem:[%s2] sm:$0xf]
  %v20 = vld [vmem:[%s2 + $0x4] sm:$0xf]
  %v21 = vld [vmem:[%s2 + $0x8] sm:$0xf]
  %v22 = vld [vmem:[%s2 + $0xc] sm:$0xf]
  %v23 = vld [vmem:[%s1] sm:$0xff]
  %v24 = vld [vmem:[%s1 + $0x8] sm:$0xff]
  %v25 = vld [vmem:[%s1 + $0x10] sm:$0xff]
  %v26 = vld [vmem:[%s1 + $0x18] sm:$0xff]
  %28 = vset.pattern.permute.xlu0 0
  %29 = vperm.xlu0 %28, %v23
  %v30 = vpop.permute.xlu0 %29
  %33 = vset.pattern.permute.xlu0 0
  %34 = vperm.xlu0 %33, %v24
  %v35 = vpop.permute.xlu0 %34
  %38 = vset.pattern.permute.xlu0 0
  %39 = vperm.xlu0 %38, %v25
  %v40 = vpop.permute.xlu0 %39
  %43 = vset.pattern.permute.xlu0 0
  %44 = vperm.xlu0 %43, %v26
  %v45 = vpop.permute.xlu0 %44
  %v51 = vunpack.c.l.b16 %v15
  %v52 = vunpack.c.l.b16 %v16
  %v53 = vunpack.c.l.b16 %v17
  %v54 = vunpack.c.l.b16 %v18
  %v55 = vpack.c.b16 %v52, %v51
  %v56 = vpack.c.b16 %v54, %v53
  %v61 = vunpack.c.l.b16 %v19
  %v62 = vunpack.c.l.b16 %v20
  %v63 = vunpack.c.l.b16 %v21
  %v64 = vunpack.c.l.b16 %v22
  %v65 = vpack.c.b16 %v62, %v61
  %v66 = vpack.c.b16 %v64, %v63
  %vm69 = vcmask 261120
  %v71 = vsel %vm69, %v55, 0
  %v74 = vsel %vm69, %v56, 0
  %76 = vmatprep.subr.bf16.mxu0 0
  %77 = vmatpush1.bf16.msra.mxu0 %v65
  %78 = vmatprep.subr.bf16.mxu0 0
  %79 = vmatpush1.bf16.msra.mxu0 %v66
  %80 = vmatprep.subr.bf16.mxu0 0
  %81 = vmatpush1.bf16.msra.mxu0 0
  %82 = vmatprep.subr.bf16.mxu0 0
  %83 = vmatpush1.bf16.msra.mxu0 0
  %84 = vmatprep.subr.bf16.mxu0 0
  %85 = vmatpush1.bf16.msra.mxu0 0
  %86 = vmatprep.subr.bf16.mxu0 0
  %87 = vmatpush1.bf16.msra.mxu0 0
  %88 = vmatprep.subr.bf16.mxu0 0
  %89 = vmatpush1.bf16.msra.mxu0 0
  %90 = vmatprep.subr.bf16.mxu0 0
  %91 = vmatpush1.bf16.msra.mxu0 0
  %92 = vmatprep.subr.bf16.mxu0 0
  %93 = vmatpush1.bf16.msra.mxu0 0
  %94 = vmatprep.subr.bf16.mxu0 0
  %95 = vmatpush1.bf16.msra.mxu0 0
  %96 = vmatprep.subr.bf16.mxu0 0
  %97 = vmatpush1.bf16.msra.mxu0 0
  %98 = vmatprep.subr.bf16.mxu0 0
  %99 = vmatpush1.bf16.msra.mxu0 0
  %100 = vmatprep.subr.bf16.mxu0 0
  %101 = vmatpush1.bf16.msra.mxu0 0
  %102 = vmatprep.subr.bf16.mxu0 0
  %103 = vmatpush1.bf16.msra.mxu0 0
  %104 = vmatprep.subr.bf16.mxu0 0
  %105 = vmatpush1.bf16.msra.mxu0 0
  %106 = vmatprep.subr.bf16.mxu0 0
  %107 = vmatpush1.bf16.msra.mxu0 0
  %108 = vmatprep.mubr.bf16.mxu0 0
  %109 = vmatmul.mubr.bf16.gmra.mrb[0].mxu0 %v71
  %v110 = vpop.f32.mrb[0].mxu0
  %v111 = vadd.f32 %v30, %v110
  %v112 = vpop.f32.mrb[0].mxu0
  %v113 = vpop.f32.mrb[0].mxu0
  %v114 = vadd.f32 %v35, %v113
  %v115 = vpop.f32.mrb[0].mxu0
  %116 = vmatprep.mubr.bf16.mxu0 0
  %117 = vmatmul.mubr.bf16.gmra.mrb[0].mxu0 %v74
  %v118 = vpop.f32.mrb[0].mxu0
  %v119 = vadd.f32 %v40, %v118
  %v120 = vpop.f32.mrb[0].mxu0
  %v121 = vpop.f32.mrb[0].mxu0
  %v122 = vadd.f32 %v45, %v121
  %v123 = vpop.f32.mrb[0].mxu0
  %124 = vdwg.mxu0
  %v125 = vpack.c.bf16 %v114, %v111
  %v126 = vpack.c.bf16 %v122, %v119
  %v129 = vunpack.c.l.b16 %v125
  %v130 = vunpack.c.h.b16 %v125
  %v131 = vunpack.c.l.b16 %v126
  %v132 = vunpack.c.h.b16 %v126
  %v133 = vpack.c.b16 %v129, %v129
  %v134 = vpack.c.b16 %v130, %v130
  %v135 = vpack.c.b16 %v131, %v131
  %v136 = vpack.c.b16 %v132, %v132
  %141 = vst [vmem:[%s3] sm:$0xf] %v133
  %142 = vst [vmem:[%s3 + $0x4] sm:$0xf] %v134
  %143 = vst [vmem:[%s3 + $0x8] sm:$0xf] %v135
  %144 = vst [vmem:[%s3 + $0xc] sm:$0xf] %v136
  // Predicated region
  $region14: #{_lambda_.6} parent=0 // pred_check
    _
  $region15: #{_lambda_.6} parent=0 // pred_check_branch
    %146 = sbr.rel (0) target = $region17
  $region16: #{_lambda_.6} parent=0 // pred_region
    _
  $region17: #{_lambda_.6} parent=0 // pred_fallthru
    _
  // Predicated region
  $region18: #{_lambda_.6} parent=0 // pred_check
    _
  $region19: #{_lambda_.6} parent=0 // pred_check_branch
    %148 = sbr.rel (0) target = $region21
  $region20: #{_lambda_.6} parent=0 // pred_region
    _
  $region21: #{_lambda_.6} parent=0 // pred_fallthru
    _

// kernel: _lambda_.7
$region0: #{_lambda_.7}
  #allocation0 [shape = 'u32[]', space=smem, size = 0x4, offset = 0x4, fixed_abs, tag = 'smem constant byte address 0x4 - core index']
  #allocation1 [shape = 'u32[144,128]{1,0:T(1,128)}', space=vmem, size = 0x12000, scoped, tag = 'internal scratch']
  %s0 = inlined_call_operand.vmem [shape: bf16[16,8], index: 0, kind: input, shape index: {}]
  %s1 = inlined_call_operand.vmem [shape: bf16[8,16], index: 1, kind: input, shape index: {}]
  %s2 = inlined_call_operand.vmem [shape: bf16[32,2,8,8], index: 2, kind: input, shape index: {}]
  %s3 = inlined_call_operand.vmem [shape: bf16[16,2,16,16], index: 3, kind: input, shape index: {}]
  %s4 = inlined_call_operand.vmem [shape: bf16[32,2,16,16], index: 4, kind: output, shape index: {}]
  %s5 = sld [smem:[#allocation0]]
  $region168: #{_lambda_.7} parent=0
    _
  %s7 = ssub.s32 1, %s5
  %s8 = scalar_select 0, %s7, %s5
  $region1: #{_lambda_.7} parent=0
    #allocation2 [shape = 'u8[65536]{0}', space=vmem, size = 0x10000, scoped, tag = 'input window, operand 2']
    #allocation3 [shape = 'u8[131072]{0}', space=vmem, size = 0x20000, scoped, tag = 'input window, operand 3']
    #allocation4 [shape = 'u8[131072]{0}', space=vmem, size = 0x20000, scoped, tag = 'output window, operand 0']
    loop: start=0, step=1, limit=6
    $region2: #{_lambda_.7} parent=1 // loop_pre_header
      _
    $region3: #{_lambda_.7} parent=1 // loop_header
      %s10 = sphi 0, %s14
      %p11 = scmp.ge.s32.totalorder %s10, 6
      %s17 = sphi 0, %s29
      %s18 = sphi 0, %s25
      %s19 = sphi 0, %s17
      %s20 = sphi 0, %s18
      %s21 = sphi 0, %s19
      %s22 = sphi 0, %s20
      %s30 = sphi 0, %s30
      %s32 = sphi 0, %s30
      %s33 = sphi 0, %s32
      %s47 = sphi 0, %s33
      %s51 = sphi 0, %s51
      %s53 = sphi 0, %s51
      %s54 = sphi 0, %s53
      %s68 = sphi 0, %s54
      %s76 = sphi 0, %s78
      %s79 = sphi 0, %s76
      %s80 = sphi 0, %s79
      %s96 = sphi 0, %s80
      %s102 = sphi 0, %s104
      %s105 = sphi 0, %s102
      %s106 = sphi 0, %s105
      %s122 = sphi 0, %s106
      %s130 = sphi 0, %s132
      %s133 = sphi 0, %s130
      %s134 = sphi 0, %s133
      %s150 = sphi 0, %s134
    $region4: #{_lambda_.7} parent=1 // loop_header_branch
      %13 = sbr.rel (%p11) target = $region8
    $region5: #{_lambda_.7} parent=1 // loop_body
      %s15 = ssub.s32 %s10, 1
      %s16 = ssub.s32 %s10, 2
      %s23 = sadd.s32 1, %s18
      %p24 = scmp.ge.s32.totalorder %s23, 2
      %s25 = scalar_select %p24, 0, %s23
      %s26 = sadd.s32 1, %s17
      %s27 = scalar_select %p24, %s26, %s17
      %p28 = scmp.ge.s32.totalorder %s27, 2
      %s29 = scalar_select %p28, 0, %s27
      %s31 = sadd.s32 %s30, 1
      %p34 = scmp.eq.s32.totalorder %s10, 3
      %p35 = scmp.ne.s32.totalorder %s30, %s32
      %p36 = scmp.eq.s32.totalorder %s10, 0
      %p37 = por %p35, %p36
      %p38 = scmp.ne.s32.totalorder %s30, %s32
      %p39 = scmp.eq.s32.totalorder %s15, 3
      %p40 = por %p38, %p39
      %p41 = scmp.ne.s32.totalorder %s32, %s33
      %p42 = scmp.eq.s32.totalorder %s15, 0
      %p43 = por %p41, %p42
      %p44 = scmp.ne.s32.totalorder %s32, %s33
      %p45 = scmp.eq.s32.totalorder %s16, 3
      %p46 = por %p44, %p45
      %p48 = scmp.ne.s32.totalorder %s33, %s47
      %p49 = scmp.eq.s32.totalorder %s16, 0
      %p50 = por %p48, %p49
      %s52 = sadd.s32 %s51, 1
      %p55 = scmp.eq.s32.totalorder %s10, 3
      %p56 = scmp.ne.s32.totalorder %s51, %s53
      %p57 = scmp.eq.s32.totalorder %s10, 0
      %p58 = por %p56, %p57
      %p59 = scmp.ne.s32.totalorder %s51, %s53
      %p60 = scmp.eq.s32.totalorder %s15, 3
      %p61 = por %p59, %p60
      %p62 = scmp.ne.s32.totalorder %s53, %s54
      %p63 = scmp.eq.s32.totalorder %s15, 0
      %p64 = por %p62, %p63
      %p65 = scmp.ne.s32.totalorder %s53, %s54
      %p66 = scmp.eq.s32.totalorder %s16, 3
      %p67 = por %p65, %p66
      %p69 = scmp.ne.s32.totalorder %s54, %s68
      %p70 = scmp.eq.s32.totalorder %s16, 0
      %p71 = por %p69, %p70
      %s72 = ssub.s32 %s18, %s25
      %s73 = ssub.s32 %s17, %s29
      %s74 = sor.u32 %s72, %s73
      %p75 = scmp.eq.s32.totalorder %s74, 0
      %s77 = sadd.s32 %s76, 1
      %s78 = scalar_select %p75, %s76, %s77
      %p81 = pneg %p75
      %p82 = scmp.eq.s32.totalorder %s10, 3
      %p83 = por %p81, %p82
      %p84 = scmp.ne.s32.totalorder %s76, %s79
      %p85 = scmp.eq.s32.totalorder %s10, 0
      %p86 = por %p84, %p85
      %p87 = scmp.ne.s32.totalorder %s76, %s79
      %p88 = scmp.eq.s32.totalorder %s15, 3
      %p89 = por %p87, %p88
      %p90 = scmp.ne.s32.totalorder %s79, %s80
      %p91 = scmp.eq.s32.totalorder %s15, 0
      %p92 = por %p90, %p91
      %p93 = scmp.ne.s32.totalorder %s79, %s80
      %p94 = scmp.eq.s32.totalorder %s16, 3
      %p95 = por %p93, %p94
      %p97 = scmp.ne.s32.totalorder %s80, %s96
      %p98 = scmp.eq.s32.totalorder %s16, 0
      %p99 = por %p97, %p98
      %s100 = ssub.s32 %s17, %s29
      %p101 = scmp.eq.s32.totalorder %s100, 0
      %s103 = sadd.s32 %s102, 1
      %s104 = scalar_select %p101, %s102, %s103
      %p107 = pneg %p101
      %p108 = scmp.eq.s32.totalorder %s10, 3
      %p109 = por %p107, %p108
      %p110 = scmp.ne.s32.totalorder %s102, %s105
      %p111 = scmp.eq.s32.totalorder %s10, 0
      %p112 = por %p110, %p111
      %p113 = scmp.ne.s32.totalorder %s102, %s105
      %p114 = scmp.eq.s32.totalorder %s15, 3
      %p115 = por %p113, %p114
      %p116 = scmp.ne.s32.totalorder %s105, %s106
      %p117 = scmp.eq.s32.totalorder %s15, 0
      %p118 = por %p116, %p117
      %p119 = scmp.ne.s32.totalorder %s105, %s106
      %p120 = scmp.eq.s32.totalorder %s16, 3
      %p121 = por %p119, %p120
      %p123 = scmp.ne.s32.totalorder %s106, %s122
      %p124 = scmp.eq.s32.totalorder %s16, 0
      %p125 = por %p123, %p124
      %s126 = ssub.s32 %s18, %s25
      %s127 = ssub.s32 %s17, %s29
      %s128 = sor.u32 %s126, %s127
      %p129 = scmp.eq.s32.totalorder %s128, 0
      %s131 = sadd.s32 %s130, 1
      %s132 = scalar_select %p129, %s130, %s131
      %p135 = pneg %p129
      %p136 = scmp.eq.s32.totalorder %s10, 3
      %p137 = por %p135, %p136
      %p138 = scmp.ne.s32.totalorder %s130, %s133
      %p139 = scmp.eq.s32.totalorder %s10, 0
      %p140 = por %p138, %p139
      %p141 = scmp.ne.s32.totalorder %s130, %s133
      %p142 = scmp.eq.s32.totalorder %s15, 3
      %p143 = por %p141, %p142
      %p144 = scmp.ne.s32.totalorder %s133, %s134
      %p145 = scmp.eq.s32.totalorder %s15, 0
      %p146 = por %p144, %p145
      %p147 = scmp.ne.s32.totalorder %s133, %s134
      %p148 = scmp.eq.s32.totalorder %s16, 3
      %p149 = por %p147, %p148
      %p151 = scmp.ne.s32.totalorder %s134, %s150
      %p152 = scmp.eq.s32.totalorder %s16, 0
      %p153 = por %p151, %p152
      %p154 = scmp.le.s32.totalorder 1, %s10
      %p155 = scmp.lt.s32.totalorder %s10, 5
      %p156 = pnand %p154, %p155
      %p157 = pneg %p156
      // Predicated region
      $region9: #{_lambda_.7} parent=5 // pred_check
        _
      $region10: #{_lambda_.7} parent=5 // pred_check_branch
        %159 = sbr.rel (%p156) target = $region12
      $region11: #{_lambda_.7} parent=5 // pred_region
        %s160 = ssub.s32 %s10, 1
        // Predicated region
        $region13: #{_lambda_.7} parent=11 // pred_check
          %p161 = pneg %p43
        $region14: #{_lambda_.7} parent=11 // pred_check_branch
          %163 = sbr.rel (%p161) target = $region16
        $region15: #{_lambda_.7} parent=11 // pred_region
          _
        $region16: #{_lambda_.7} parent=11 // pred_fallthru
          _
        // Predicated region
        $region17: #{_lambda_.7} parent=11 // pred_check
          %p164 = pneg %p64
        $region18: #{_lambda_.7} parent=11 // pred_check_branch
          %166 = sbr.rel (%p164) target = $region20
        $region19: #{_lambda_.7} parent=11 // pred_region
          _
        $region20: #{_lambda_.7} parent=11 // pred_fallthru
          _
      $region12: #{_lambda_.7} parent=5 // pred_fallthru
        _
      %p167 = scmp.lt.s32.totalorder %s10, 4
      // Predicated region
      $region21: #{_lambda_.7} parent=5 // pred_check
        %p168 = pneg %p167
      $region22: #{_lambda_.7} parent=5 // pred_check_branch
        %170 = sbr.rel (%p168) target = $region24
      $region23: #{_lambda_.7} parent=5 // pred_region
        // Predicated region
        $region25: #{_lambda_.7} parent=23 // pred_check
          %p171 = pneg %p86
        $region26: #{_lambda_.7} parent=23 // pred_check_branch
          %173 = sbr.rel (%p171) target = $region28
        $region27: #{_lambda_.7} parent=23 // pred_region
          %s174 = sand.u32 %s76, 1
          %s175 = sand.u32 %s76, 1
          %s176 = smul.addr %s175, 64
          %s177 = scalar_lea.vmem [#allocation2], %s176
          %s178 = smul.u32 16, %s18
          %s179 = smul.addr %s178, 2
          %s180 = sadd.s32 %s17, %s179
          %s181 = smul.addr %s180, 4
          %s182 = scalar_lea.vmem %s2, %s181
          // Predicated region
          $region29: #{_lambda_.7} parent=27 // pred_check
            _
          $region30: #{_lambda_.7} parent=27 // pred_check_branch
            %184 = sbr.rel (0) target = $region32
          $region31: #{_lambda_.7} parent=27 // pred_region
            // Predicated region
            $region33: #{_lambda_.7} parent=31 // pred_check
              _
            $region34: #{_lambda_.7} parent=31 // pred_check_branch
              %186 = sbr.rel target = $region36
            $region35: #{_lambda_.7} parent=31 // pred_region
              // Predicated region
              $region48: #{_lambda_.7} parent=35 // pred_check
                _
              $region49: #{_lambda_.7} parent=35 // pred_check_branch
                %231 = sbr.rel (0) target = $region51
              $region50: #{_lambda_.7} parent=35 // pred_region
                loop: start=0, step=1, limit=1
                $region52: #{_lambda_.7} parent=50 // loop_pre_header
                  _
                $region53: #{_lambda_.7} parent=50 // loop_header
                  %s233 = sphi 0, %s237
                  %p234 = scmp.ge.s32.totalorder %s233, 1
                  %s238 = sphi %s182, %s182
                  %s239 = sphi %s177, %s177
                $region54: #{_lambda_.7} parent=50 // loop_header_branch
                  %236 = sbr.rel (%p234) target = $region58
                $region55: #{_lambda_.7} parent=50 // loop_body
                  _
                $region56: #{_lambda_.7} parent=50 // loop_footer
                  %s237 = sadd.s32 1, %s233
                $region57: #{_lambda_.7} parent=50 // loop_footer_branch
                  %232 = sbr.rel target = $region53
                $region58: #{_lambda_.7} parent=50 // loop_exit
                  _
                loop: start=0, step=1, limit=1
                $region59: #{_lambda_.7} parent=50 // loop_pre_header
                  _
                $region60: #{_lambda_.7} parent=50 // loop_header
                  %s242 = sphi 0, %s246
                  %p243 = scmp.ge.s32.totalorder %s242, 1
                  %s247 = sphi %s182, %s182
                  %s248 = sphi %s177, %s177
                $region61: #{_lambda_.7} parent=50 // loop_header_branch
                  %245 = sbr.rel (%p243) target = $region65
                $region62: #{_lambda_.7} parent=50 // loop_body
                  %v249 = vld [vmem:[%s247] sm:$0xf]
                  %250 = vst [vmem:[%s248] sm:$0xf] %v249
                  %v251 = vld [vmem:[%s247 + $0x8] sm:$0xf]
                  %252 = vst [vmem:[%s248 + $0x4] sm:$0xf] %v251
                  %v253 = vld [vmem:[%s247 + $0x10] sm:$0xf]
                  %254 = vst [vmem:[%s248 + $0x8] sm:$0xf] %v253
                  %v255 = vld [vmem:[%s247 + $0x18] sm:$0xf]
                  %256 = vst [vmem:[%s248 + $0xc] sm:$0xf] %v255
                  %v257 = vld [vmem:[%s247 + $0x20] sm:$0xf]
                  %258 = vst [vmem:[%s248 + $0x10] sm:$0xf] %v257
                  %v259 = vld [vmem:[%s247 + $0x28] sm:$0xf]
                  %260 = vst [vmem:[%s248 + $0x14] sm:$0xf] %v259
                  %v261 = vld [vmem:[%s247 + $0x30] sm:$0xf]
                  %262 = vst [vmem:[%s248 + $0x18] sm:$0xf] %v261
                  %v263 = vld [vmem:[%s247 + $0x38] sm:$0xf]
                  %264 = vst [vmem:[%s248 + $0x1c] sm:$0xf] %v263
                  %v265 = vld [vmem:[%s247 + $0x40] sm:$0xf]
                  %266 = vst [vmem:[%s248 + $0x20] sm:$0xf] %v265
                  %v267 = vld [vmem:[%s247 + $0x48] sm:$0xf]
                  %268 = vst [vmem:[%s248 + $0x24] sm:$0xf] %v267
                  %v269 = vld [vmem:[%s247 + $0x50] sm:$0xf]
                  %270 = vst [vmem:[%s248 + $0x28] sm:$0xf] %v269
                  %v271 = vld [vmem:[%s247 + $0x58] sm:$0xf]
                  %272 = vst [vmem:[%s248 + $0x2c] sm:$0xf] %v271
                  %v273 = vld [vmem:[%s247 + $0x60] sm:$0xf]
                  %274 = vst [vmem:[%s248 + $0x30] sm:$0xf] %v273
                  %v275 = vld [vmem:[%s247 + $0x68] sm:$0xf]
                  %276 = vst [vmem:[%s248 + $0x34] sm:$0xf] %v275
                  %v277 = vld [vmem:[%s247 + $0x70] sm:$0xf]
                  %278 = vst [vmem:[%s248 + $0x38] sm:$0xf] %v277
                  %v279 = vld [vmem:[%s247 + $0x78] sm:$0xf]
                  %280 = vst [vmem:[%s248 + $0x3c] sm:$0xf] %v279
                $region63: #{_lambda_.7} parent=50 // loop_footer
                  %s246 = sadd.s32 1, %s242
                $region64: #{_lambda_.7} parent=50 // loop_footer_branch
                  %241 = sbr.rel target = $region60
                $region65: #{_lambda_.7} parent=50 // loop_exit
                  _
              $region51: #{_lambda_.7} parent=35 // pred_fallthru
                _
            $region36: #{_lambda_.7} parent=31 // pred_fallthru
              _
            // Predicated region
            $region37: #{_lambda_.7} parent=31 // pred_check
              _
            $region38: #{_lambda_.7} parent=31 // pred_check_branch
              %188 = sbr.rel (0) target = $region40
            $region39: #{_lambda_.7} parent=31 // pred_region
              loop: start=0, step=1, limit=1
              $region41: #{_lambda_.7} parent=39 // loop_pre_header
                _
              $region42: #{_lambda_.7} parent=39 // loop_header
                %s191 = sphi 0, %s195
                %p192 = scmp.ge.s32.totalorder %s191, 1
                %s196 = sphi %s182, %s182
                %s197 = sphi %s177, %s177
              $region43: #{_lambda_.7} parent=39 // loop_header_branch
                %194 = sbr.rel (%p192) target = $region47
              $region44: #{_lambda_.7} parent=39 // loop_body
                %v198 = vld [vmem:[%s196] sm:$0xf]
                %199 = vst [vmem:[%s197] sm:$0xf] %v198
                %v200 = vld [vmem:[%s196 + $0x8] sm:$0xf]
                %201 = vst [vmem:[%s197 + $0x4] sm:$0xf] %v200
                %v202 = vld [vmem:[%s196 + $0x10] sm:$0xf]
                %203 = vst [vmem:[%s197 + $0x8] sm:$0xf] %v202
                %v204 = vld [vmem:[%s196 + $0x18] sm:$0xf]
                %205 = vst [vmem:[%s197 + $0xc] sm:$0xf] %v204
                %v206 = vld [vmem:[%s196 + $0x20] sm:$0xf]
                %207 = vst [vmem:[%s197 + $0x10] sm:$0xf] %v206
                %v208 = vld [vmem:[%s196 + $0x28] sm:$0xf]
                %209 = vst [vmem:[%s197 + $0x14] sm:$0xf] %v208
                %v210 = vld [vmem:[%s196 + $0x30] sm:$0xf]
                %211 = vst [vmem:[%s197 + $0x18] sm:$0xf] %v210
                %v212 = vld [vmem:[%s196 + $0x38] sm:$0xf]
                %213 = vst [vmem:[%s197 + $0x1c] sm:$0xf] %v212
                %v214 = vld [vmem:[%s196 + $0x40] sm:$0xf]
                %215 = vst [vmem:[%s197 + $0x20] sm:$0xf] %v214
                %v216 = vld [vmem:[%s196 + $0x48] sm:$0xf]
                %217 = vst [vmem:[%s197 + $0x24] sm:$0xf] %v216
                %v218 = vld [vmem:[%s196 + $0x50] sm:$0xf]
                %219 = vst [vmem:[%s197 + $0x28] sm:$0xf] %v218
                %v220 = vld [vmem:[%s196 + $0x58] sm:$0xf]
                %221 = vst [vmem:[%s197 + $0x2c] sm:$0xf] %v220
                %v222 = vld [vmem:[%s196 + $0x60] sm:$0xf]
                %223 = vst [vmem:[%s197 + $0x30] sm:$0xf] %v222
                %v224 = vld [vmem:[%s196 + $0x68] sm:$0xf]
                %225 = vst [vmem:[%s197 + $0x34] sm:$0xf] %v224
                %v226 = vld [vmem:[%s196 + $0x70] sm:$0xf]
                %227 = vst [vmem:[%s197 + $0x38] sm:$0xf] %v226
                %v228 = vld [vmem:[%s196 + $0x78] sm:$0xf]
                %229 = vst [vmem:[%s197 + $0x3c] sm:$0xf] %v228
              $region45: #{_lambda_.7} parent=39 // loop_footer
                %s195 = sadd.s32 1, %s191
              $region46: #{_lambda_.7} parent=39 // loop_footer_branch
                %190 = sbr.rel target = $region42
              $region47: #{_lambda_.7} parent=39 // loop_exit
                _
            $region40: #{_lambda_.7} parent=31 // pred_fallthru
              _
          $region32: #{_lambda_.7} parent=27 // pred_fallthru
            _
          %281 = vnop
        $region28: #{_lambda_.7} parent=23 // pred_fallthru
          _
        // Predicated region
        $region66: #{_lambda_.7} parent=23 // pred_check
          %p282 = pneg %p112
        $region67: #{_lambda_.7} parent=23 // pred_check_branch
          %284 = sbr.rel (%p282) target = $region69
        $region68: #{_lambda_.7} parent=23 // pred_region
          %s285 = sand.u32 %s102, 1
          %s286 = sand.u32 %s102, 1
          %s287 = smul.addr %s286, 128
          %s288 = scalar_lea.vmem [#allocation3], %s287
          %s289 = smul.addr %s17, 2
          %s290 = smul.addr %s289, 4
          %s291 = scalar_lea.vmem %s3, %s290
          // Predicated region
          $region70: #{_lambda_.7} parent=68 // pred_check
            _
          $region71: #{_lambda_.7} parent=68 // pred_check_branch
            %293 = sbr.rel (0) target = $region73
          $region72: #{_lambda_.7} parent=68 // pred_region
            // Predicated region
            $region74: #{_lambda_.7} parent=72 // pred_check
              _
            $region75: #{_lambda_.7} parent=72 // pred_check_branch
              %295 = sbr.rel target = $region77
            $region76: #{_lambda_.7} parent=72 // pred_region
              // Predicated region
              $region89: #{_lambda_.7} parent=76 // pred_check
                _
              $region90: #{_lambda_.7} parent=76 // pred_check_branch
                %372 = sbr.rel (0) target = $region92
              $region91: #{_lambda_.7} parent=76 // pred_region
                loop: start=0, step=1, limit=1
                $region93: #{_lambda_.7} parent=91 // loop_pre_header
                  _
                $region94: #{_lambda_.7} parent=91 // loop_header
                  %s374 = sphi 0, %s378
                  %p375 = scmp.ge.s32.totalorder %s374, 1
                  %s379 = sphi %s291, %s291
                  %s380 = sphi %s288, %s288
                $region95: #{_lambda_.7} parent=91 // loop_header_branch
                  %377 = sbr.rel (%p375) target = $region99
                $region96: #{_lambda_.7} parent=91 // loop_body
                  _
                $region97: #{_lambda_.7} parent=91 // loop_footer
                  %s378 = sadd.s32 1, %s374
                $region98: #{_lambda_.7} parent=91 // loop_footer_branch
                  %373 = sbr.rel target = $region94
                $region99: #{_lambda_.7} parent=91 // loop_exit
                  _
                loop: start=0, step=1, limit=1
                $region100: #{_lambda_.7} parent=91 // loop_pre_header
                  _
                $region101: #{_lambda_.7} parent=91 // loop_header
                  %s383 = sphi 0, %s387
                  %p384 = scmp.ge.s32.totalorder %s383, 1
                  %s388 = sphi %s291, %s291
                  %s389 = sphi %s288, %s288
                $region102: #{_lambda_.7} parent=91 // loop_header_branch
                  %386 = sbr.rel (%p384) target = $region106
                $region103: #{_lambda_.7} parent=91 // loop_body
                  %v390 = vld [vmem:[%s388] sm:$0xf]
                  %391 = vst [vmem:[%s389] sm:$0xf] %v390
                  %v392 = vld [vmem:[%s388 + $0x4] sm:$0xf]
                  %393 = vst [vmem:[%s389 + $0x4] sm:$0xf] %v392
                  %v394 = vld [vmem:[%s388 + $0x10] sm:$0xf]
                  %395 = vst [vmem:[%s389 + $0x8] sm:$0xf] %v394
                  %v396 = vld [vmem:[%s388 + $0x14] sm:$0xf]
                  %397 = vst [vmem:[%s389 + $0xc] sm:$0xf] %v396
                  %v398 = vld [vmem:[%s388 + $0x20] sm:$0xf]
                  %399 = vst [vmem:[%s389 + $0x10] sm:$0xf] %v398
                  %v400 = vld [vmem:[%s388 + $0x24] sm:$0xf]
                  %401 = vst [vmem:[%s389 + $0x14] sm:$0xf] %v400
                  %v402 = vld [vmem:[%s388 + $0x30] sm:$0xf]
                  %403 = vst [vmem:[%s389 + $0x18] sm:$0xf] %v402
                  %v404 = vld [vmem:[%s388 + $0x34] sm:$0xf]
                  %405 = vst [vmem:[%s389 + $0x1c] sm:$0xf] %v404
                  %v406 = vld [vmem:[%s388 + $0x40] sm:$0xf]
                  %407 = vst [vmem:[%s389 + $0x20] sm:$0xf] %v406
                  %v408 = vld [vmem:[%s388 + $0x44] sm:$0xf]
                  %409 = vst [vmem:[%s389 + $0x24] sm:$0xf] %v408
                  %v410 = vld [vmem:[%s388 + $0x50] sm:$0xf]
                  %411 = vst [vmem:[%s389 + $0x28] sm:$0xf] %v410
                  %v412 = vld [vmem:[%s388 + $0x54] sm:$0xf]
                  %413 = vst [vmem:[%s389 + $0x2c] sm:$0xf] %v412
                  %v414 = vld [vmem:[%s388 + $0x60] sm:$0xf]
                  %415 = vst [vmem:[%s389 + $0x30] sm:$0xf] %v414
                  %v416 = vld [vmem:[%s388 + $0x64] sm:$0xf]
                  %417 = vst [vmem:[%s389 + $0x34] sm:$0xf] %v416
                  %v418 = vld [vmem:[%s388 + $0x70] sm:$0xf]
                  %419 = vst [vmem:[%s389 + $0x38] sm:$0xf] %v418
                  %v420 = vld [vmem:[%s388 + $0x74] sm:$0xf]
                  %421 = vst [vmem:[%s389 + $0x3c] sm:$0xf] %v420
                  %v422 = vld [vmem:[%s388 + $0x80] sm:$0xf]
                  %423 = vst [vmem:[%s389 + $0x40] sm:$0xf] %v422
                  %v424 = vld [vmem:[%s388 + $0x84] sm:$0xf]
                  %425 = vst [vmem:[%s389 + $0x44] sm:$0xf] %v424
                  %v426 = vld [vmem:[%s388 + $0x90] sm:$0xf]
                  %427 = vst [vmem:[%s389 + $0x48] sm:$0xf] %v426
                  %v428 = vld [vmem:[%s388 + $0x94] sm:$0xf]
                  %429 = vst [vmem:[%s389 + $0x4c] sm:$0xf] %v428
                  %v430 = vld [vmem:[%s388 + $0xa0] sm:$0xf]
                  %431 = vst [vmem:[%s389 + $0x50] sm:$0xf] %v430
                  %v432 = vld [vmem:[%s388 + $0xa4] sm:$0xf]
                  %433 = vst [vmem:[%s389 + $0x54] sm:$0xf] %v432
                  %v434 = vld [vmem:[%s388 + $0xb0] sm:$0xf]
                  %435 = vst [vmem:[%s389 + $0x58] sm:$0xf] %v434
                  %v436 = vld [vmem:[%s388 + $0xb4] sm:$0xf]
                  %437 = vst [vmem:[%s389 + $0x5c] sm:$0xf] %v436
                  %v438 = vld [vmem:[%s388 + $0xc0] sm:$0xf]
                  %439 = vst [vmem:[%s389 + $0x60] sm:$0xf] %v438
                  %v440 = vld [vmem:[%s388 + $0xc4] sm:$0xf]
                  %441 = vst [vmem:[%s389 + $0x64] sm:$0xf] %v440
                  %v442 = vld [vmem:[%s388 + $0xd0] sm:$0xf]
                  %443 = vst [vmem:[%s389 + $0x68] sm:$0xf] %v442
                  %v444 = vld [vmem:[%s388 + $0xd4] sm:$0xf]
                  %445 = vst [vmem:[%s389 + $0x6c] sm:$0xf] %v444
                  %v446 = vld [vmem:[%s388 + $0xe0] sm:$0xf]
                  %447 = vst [vmem:[%s389 + $0x70] sm:$0xf] %v446
                  %v448 = vld [vmem:[%s388 + $0xe4] sm:$0xf]
                  %449 = vst [vmem:[%s389 + $0x74] sm:$0xf] %v448
                  %v450 = vld [vmem:[%s388 + $0xf0] sm:$0xf]
                  %451 = vst [vmem:[%s389 + $0x78] sm:$0xf] %v450
                  %v452 = vld [vmem:[%s388 + $0xf4] sm:$0xf]
                  %453 = vst [vmem:[%s389 + $0x7c] sm:$0xf] %v452
                $region104: #{_lambda_.7} parent=91 // loop_footer
                  %s387 = sadd.s32 1, %s383
                $region105: #{_lambda_.7} parent=91 // loop_footer_branch
                  %382 = sbr.rel target = $region101
                $region106: #{_lambda_.7} parent=91 // loop_exit
                  _
              $region92: #{_lambda_.7} parent=76 // pred_fallthru
                _
            $region77: #{_lambda_.7} parent=72 // pred_fallthru
              _
            // Predicated region
            $region78: #{_lambda_.7} parent=72 // pred_check
              _
            $region79: #{_lambda_.7} parent=72 // pred_check_branch
              %297 = sbr.rel (0) target = $region81
            $region80: #{_lambda_.7} parent=72 // pred_region
              loop: start=0, step=1, limit=1
              $region82: #{_lambda_.7} parent=80 // loop_pre_header
                _
              $region83: #{_lambda_.7} parent=80 // loop_header
                %s300 = sphi 0, %s304
                %p301 = scmp.ge.s32.totalorder %s300, 1
                %s305 = sphi %s291, %s291
                %s306 = sphi %s288, %s288
              $region84: #{_lambda_.7} parent=80 // loop_header_branch
                %303 = sbr.rel (%p301) target = $region88
              $region85: #{_lambda_.7} parent=80 // loop_body
                %v307 = vld [vmem:[%s305] sm:$0xf]
                %308 = vst [vmem:[%s306] sm:$0xf] %v307
                %v309 = vld [vmem:[%s305 + $0x4] sm:$0xf]
                %310 = vst [vmem:[%s306 + $0x4] sm:$0xf] %v309
                %v311 = vld [vmem:[%s305 + $0x10] sm:$0xf]
                %312 = vst [vmem:[%s306 + $0x8] sm:$0xf] %v311
                %v313 = vld [vmem:[%s305 + $0x14] sm:$0xf]
                %314 = vst [vmem:[%s306 + $0xc] sm:$0xf] %v313
                %v315 = vld [vmem:[%s305 + $0x20] sm:$0xf]
                %316 = vst [vmem:[%s306 + $0x10] sm:$0xf] %v315
                %v317 = vld [vmem:[%s305 + $0x24] sm:$0xf]
                %318 = vst [vmem:[%s306 + $0x14] sm:$0xf] %v317
                %v319 = vld [vmem:[%s305 + $0x30] sm:$0xf]
                %320 = vst [vmem:[%s306 + $0x18] sm:$0xf] %v319
                %v321 = vld [vmem:[%s305 + $0x34] sm:$0xf]
                %322 = vst [vmem:[%s306 + $0x1c] sm:$0xf] %v321
                %v323 = vld [vmem:[%s305 + $0x40] sm:$0xf]
                %324 = vst [vmem:[%s306 + $0x20] sm:$0xf] %v323
                %v325 = vld [vmem:[%s305 + $0x44] sm:$0xf]
                %326 = vst [vmem:[%s306 + $0x24] sm:$0xf] %v325
                %v327 = vld [vmem:[%s305 + $0x50] sm:$0xf]
                %328 = vst [vmem:[%s306 + $0x28] sm:$0xf] %v327
                %v329 = vld [vmem:[%s305 + $0x54] sm:$0xf]
                %330 = vst [vmem:[%s306 + $0x2c] sm:$0xf] %v329
                %v331 = vld [vmem:[%s305 + $0x60] sm:$0xf]
                %332 = vst [vmem:[%s306 + $0x30] sm:$0xf] %v331
                %v333 = vld [vmem:[%s305 + $0x64] sm:$0xf]
                %334 = vst [vmem:[%s306 + $0x34] sm:$0xf] %v333
                %v335 = vld [vmem:[%s305 + $0x70] sm:$0xf]
                %336 = vst [vmem:[%s306 + $0x38] sm:$0xf] %v335
                %v337 = vld [vmem:[%s305 + $0x74] sm:$0xf]
                %338 = vst [vmem:[%s306 + $0x3c] sm:$0xf] %v337
                %v339 = vld [vmem:[%s305 + $0x80] sm:$0xf]
                %340 = vst [vmem:[%s306 + $0x40] sm:$0xf] %v339
                %v341 = vld [vmem:[%s305 + $0x84] sm:$0xf]
                %342 = vst [vmem:[%s306 + $0x44] sm:$0xf] %v341
                %v343 = vld [vmem:[%s305 + $0x90] sm:$0xf]
                %344 = vst [vmem:[%s306 + $0x48] sm:$0xf] %v343
                %v345 = vld [vmem:[%s305 + $0x94] sm:$0xf]
                %346 = vst [vmem:[%s306 + $0x4c] sm:$0xf] %v345
                %v347 = vld [vmem:[%s305 + $0xa0] sm:$0xf]
                %348 = vst [vmem:[%s306 + $0x50] sm:$0xf] %v347
                %v349 = vld [vmem:[%s305 + $0xa4] sm:$0xf]
                %350 = vst [vmem:[%s306 + $0x54] sm:$0xf] %v349
                %v351 = vld [vmem:[%s305 + $0xb0] sm:$0xf]
                %352 = vst [vmem:[%s306 + $0x58] sm:$0xf] %v351
                %v353 = vld [vmem:[%s305 + $0xb4] sm:$0xf]
                %354 = vst [vmem:[%s306 + $0x5c] sm:$0xf] %v353
                %v355 = vld [vmem:[%s305 + $0xc0] sm:$0xf]
                %356 = vst [vmem:[%s306 + $0x60] sm:$0xf] %v355
                %v357 = vld [vmem:[%s305 + $0xc4] sm:$0xf]
                %358 = vst [vmem:[%s306 + $0x64] sm:$0xf] %v357
                %v359 = vld [vmem:[%s305 + $0xd0] sm:$0xf]
                %360 = vst [vmem:[%s306 + $0x68] sm:$0xf] %v359
                %v361 = vld [vmem:[%s305 + $0xd4] sm:$0xf]
                %362 = vst [vmem:[%s306 + $0x6c] sm:$0xf] %v361
                %v363 = vld [vmem:[%s305 + $0xe0] sm:$0xf]
                %364 = vst [vmem:[%s306 + $0x70] sm:$0xf] %v363
                %v365 = vld [vmem:[%s305 + $0xe4] sm:$0xf]
                %366 = vst [vmem:[%s306 + $0x74] sm:$0xf] %v365
                %v367 = vld [vmem:[%s305 + $0xf0] sm:$0xf]
                %368 = vst [vmem:[%s306 + $0x78] sm:$0xf] %v367
                %v369 = vld [vmem:[%s305 + $0xf4] sm:$0xf]
                %370 = vst [vmem:[%s306 + $0x7c] sm:$0xf] %v369
              $region86: #{_lambda_.7} parent=80 // loop_footer
                %s304 = sadd.s32 1, %s300
              $region87: #{_lambda_.7} parent=80 // loop_footer_branch
                %299 = sbr.rel target = $region83
              $region88: #{_lambda_.7} parent=80 // loop_exit
                _
            $region81: #{_lambda_.7} parent=72 // pred_fallthru
              _
          $region73: #{_lambda_.7} parent=68 // pred_fallthru
            _
          %454 = vnop
        $region69: #{_lambda_.7} parent=23 // pred_fallthru
          _
      $region24: #{_lambda_.7} parent=5 // pred_fallthru
        _
      %p455 = scmp.le.s32.totalorder 1, %s10
      %p456 = scmp.lt.s32.totalorder %s10, 5
      %p457 = pnand %p455, %p456
      %p458 = pneg %p457
      // Predicated region
      $region107: #{_lambda_.7} parent=5 // pred_check
        _
      $region108: #{_lambda_.7} parent=5 // pred_check_branch
        %460 = sbr.rel (%p457) target = $region110
      $region109: #{_lambda_.7} parent=5 // pred_region
        %s461 = ssub.s32 %s10, 1
        %s462 = sand.u32 %s79, 1
        %s463 = sand.u32 %s79, 1
        %s464 = smul.addr %s463, 64
        %s465 = scalar_lea.vmem [#allocation2], %s464
        // Predicated region
        $region111: #{_lambda_.7} parent=109 // pred_check
          %p466 = pneg %p92
        $region112: #{_lambda_.7} parent=109 // pred_check_branch
          %468 = sbr.rel (%p466) target = $region114
        $region113: #{_lambda_.7} parent=109 // pred_region
          _
        $region114: #{_lambda_.7} parent=109 // pred_fallthru
          _
        %s469 = sand.u32 %s105, 1
        %s470 = sand.u32 %s105, 1
        %s471 = smul.addr %s470, 128
        %s472 = scalar_lea.vmem [#allocation3], %s471
        // Predicated region
        $region115: #{_lambda_.7} parent=109 // pred_check
          %p473 = pneg %p118
        $region116: #{_lambda_.7} parent=109 // pred_check_branch
          %475 = sbr.rel (%p473) target = $region118
        $region117: #{_lambda_.7} parent=109 // pred_region
          _
        $region118: #{_lambda_.7} parent=109 // pred_fallthru
          _
        %p476 = pneg %p43
        %p477 = pneg %p40
        %p478 = pneg %p64
        %p479 = pneg %p61
        %s480 = sand.u32 %s79, 1
        %s481 = sand.u32 %s79, 1
        %s482 = smul.addr %s481, 64
        %s483 = scalar_lea.vmem [#allocation2], %s482
        %p484 = pneg %p92
        %p485 = pneg %p89
        %s486 = sand.u32 %s105, 1
        %s487 = sand.u32 %s105, 1
        %s488 = smul.addr %s487, 128
        %s489 = scalar_lea.vmem [#allocation3], %s488
        %p490 = pneg %p118
        %p491 = pneg %p115
        %p492 = pneg %p146
        %p493 = pneg %p143
        %s494 = sand.u32 %s133, 1
        %s495 = sand.u32 %s133, 1
        %s496 = smul.addr %s495, 128
        %s497 = scalar_lea.vmem [#allocation4], %s496
        %s498 = smul.u32 16, %s20
        %s499 = smul.u32 16, %s20
        %v501 = vld [vmem:[%s465] sm:$0xf]
        %v502 = vld [vmem:[%s465 + $0x4] sm:$0xf]
        %v503 = vld [vmem:[%s465 + $0x8] sm:$0xf]
        %v504 = vld [vmem:[%s465 + $0xc] sm:$0xf]
        %v505 = vld [vmem:[%s465 + $0x10] sm:$0xf]
        %v506 = vld [vmem:[%s465 + $0x14] sm:$0xf]
        %v507 = vld [vmem:[%s465 + $0x18] sm:$0xf]
        %v508 = vld [vmem:[%s465 + $0x1c] sm:$0xf]
        %v509 = vld [vmem:[%s465 + $0x20] sm:$0xf]
        %v510 = vld [vmem:[%s465 + $0x24] sm:$0xf]
        %v511 = vld [vmem:[%s465 + $0x28] sm:$0xf]
        %v512 = vld [vmem:[%s465 + $0x2c] sm:$0xf]
        %v513 = vld [vmem:[%s465 + $0x30] sm:$0xf]
        %v514 = vld [vmem:[%s465 + $0x34] sm:$0xf]
        %v515 = vld [vmem:[%s465 + $0x38] sm:$0xf]
        %v516 = vld [vmem:[%s465 + $0x3c] sm:$0xf]
        %v517 = vld [vmem:[%s1] sm:$0xf]
        %v534 = vunpack.c.l.b16 %v501
        %v535 = vunpack.c.l.b16 %v502
        %v536 = vunpack.c.l.b16 %v503
        %v537 = vunpack.c.l.b16 %v504
        %v538 = vunpack.c.l.b16 %v505
        %v539 = vunpack.c.l.b16 %v506
        %v540 = vunpack.c.l.b16 %v507
        %v541 = vunpack.c.l.b16 %v508
        %v542 = vunpack.c.l.b16 %v509
        %v543 = vunpack.c.l.b16 %v510
        %v544 = vunpack.c.l.b16 %v511
        %v545 = vunpack.c.l.b16 %v512
        %v546 = vunpack.c.l.b16 %v513
        %v547 = vunpack.c.l.b16 %v514
        %v548 = vunpack.c.l.b16 %v515
        %v549 = vunpack.c.l.b16 %v516
        %v550 = vpack.c.b16 %v535, %v534
        %v551 = vpack.c.b16 %v537, %v536
        %v552 = vpack.c.b16 %v539, %v538
        %v553 = vpack.c.b16 %v541, %v540
        %v554 = vpack.c.b16 %v543, %v542
        %v555 = vpack.c.b16 %v545, %v544
        %v556 = vpack.c.b16 %v547, %v546
        %v557 = vpack.c.b16 %v549, %v548
        %vm558 = vcmask 64512
        %v560 = vsel %vm558, %v550, 0
        %v563 = vsel %vm558, %v551, 0
        %v566 = vsel %vm558, %v552, 0
        %v569 = vsel %vm558, %v553, 0
        %v572 = vsel %vm558, %v554, 0
        %v575 = vsel %vm558, %v555, 0
        %v578 = vsel %vm558, %v556, 0
        %v581 = vsel %vm558, %v557, 0
        %vm583 = vcmask 1043456
        %v585 = vsel %vm583, %v517, 0
        %587 = vmatprep.subr.bf16.mxu0 0
        %588 = vmatpush1.bf16.msra.mxu0 %v585
        %589 = vmatprep.subr.bf16.mxu0 0
        %590 = vmatpush1.bf16.msra.mxu0 0
        %591 = vmatprep.subr.bf16.mxu0 0
        %592 = vmatpush1.bf16.msra.mxu0 0
        %593 = vmatprep.subr.bf16.mxu0 0
        %594 = vmatpush1.bf16.msra.mxu0 0
        %595 = vmatprep.subr.bf16.mxu0 0
        %596 = vmatpush1.bf16.msra.mxu0 0
        %597 = vmatprep.subr.bf16.mxu0 0
        %598 = vmatpush1.bf16.msra.mxu0 0
        %599 = vmatprep.subr.bf16.mxu0 0
        %600 = vmatpush1.bf16.msra.mxu0 0
        %601 = vmatprep.subr.bf16.mxu0 0
        %602 = vmatpush1.bf16.msra.mxu0 0
        %603 = vmatprep.subr.bf16.mxu0 0
        %604 = vmatpush1.bf16.msra.mxu0 0
        %605 = vmatprep.subr.bf16.mxu0 0
        %606 = vmatpush1.bf16.msra.mxu0 0
        %607 = vmatprep.subr.bf16.mxu0 0
        %608 = vmatpush1.bf16.msra.mxu0 0
        %609 = vmatprep.subr.bf16.mxu0 0
        %610 = vmatpush1.bf16.msra.mxu0 0
        %611 = vmatprep.subr.bf16.mxu0 0
        %612 = vmatpush1.bf16.msra.mxu0 0
        %613 = vmatprep.subr.bf16.mxu0 0
        %614 = vmatpush1.bf16.msra.mxu0 0
        %615 = vmatprep.subr.bf16.mxu0 0
        %616 = vmatpush1.bf16.msra.mxu0 0
        %617 = vmatprep.subr.bf16.mxu0 0
        %618 = vmatpush1.bf16.msra.mxu0 0
        %619 = vmatprep.mubr.bf16.mxu0 0
        %620 = vmatmul.mubr.bf16.gmra.mrb[0].mxu0 %v560
        %v621 = vpop.f32.mrb[0].mxu0
        %v622 = vadd.f32 0.0, %v621
        %v623 = vpop.f32.mrb[0].mxu0
        %v624 = vpop.f32.mrb[0].mxu0
        %v625 = vadd.f32 0.0, %v624
        %v626 = vpop.f32.mrb[0].mxu0
        %627 = vmatprep.mubr.bf16.mxu0 0
        %628 = vmatmul.mubr.bf16.gmra.mrb[0].mxu0 %v563
        %v629 = vpop.f32.mrb[0].mxu0
        %v630 = vadd.f32 0.0, %v629
        %v631 = vpop.f32.mrb[0].mxu0
        %v632 = vpop.f32.mrb[0].mxu0
        %v633 = vadd.f32 0.0, %v632
        %v634 = vpop.f32.mrb[0].mxu0
        %635 = vmatprep.mubr.bf16.mxu0 0
        %636 = vmatmul.mubr.bf16.gmra.mrb[0].mxu0 %v566
        %v637 = vpop.f32.mrb[0].mxu0
        %v638 = vadd.f32 0.0, %v637
        %v639 = vpop.f32.mrb[0].mxu0
        %v640 = vpop.f32.mrb[0].mxu0
        %v641 = vadd.f32 0.0, %v640
        %v642 = vpop.f32.mrb[0].mxu0
        %643 = vmatprep.mubr.bf16.mxu0 0
        %644 = vmatmul.mubr.bf16.gmra.mrb[0].mxu0 %v569
        %v645 = vpop.f32.mrb[0].mxu0
        %v646 = vadd.f32 0.0, %v645
        %v647 = vpop.f32.mrb[0].mxu0
        %v648 = vpop.f32.mrb[0].mxu0
        %v649 = vadd.f32 0.0, %v648
        %v650 = vpop.f32.mrb[0].mxu0
        %651 = vmatprep.mubr.bf16.mxu0 0
        %652 = vmatmul.mubr.bf16.gmra.mrb[0].mxu0 %v572
        %v653 = vpop.f32.mrb[0].mxu0
        %v654 = vadd.f32 0.0, %v653
        %v655 = vpop.f32.mrb[0].mxu0
        %v656 = vpop.f32.mrb[0].mxu0
        %v657 = vadd.f32 0.0, %v656
        %v658 = vpop.f32.mrb[0].mxu0
        %659 = vmatprep.mubr.bf16.mxu0 0
        %660 = vmatmul.mubr.bf16.gmra.mrb[0].mxu0 %v575
        %v661 = vpop.f32.mrb[0].mxu0
        %v662 = vadd.f32 0.0, %v661
        %v663 = vpop.f32.mrb[0].mxu0
        %v664 = vpop.f32.mrb[0].mxu0
        %v665 = vadd.f32 0.0, %v664
        %v666 = vpop.f32.mrb[0].mxu0
        %667 = vmatprep.mubr.bf16.mxu0 0
        %668 = vmatmul.mubr.bf16.gmra.mrb[0].mxu0 %v578
        %v669 = vpop.f32.mrb[0].mxu0
        %v670 = vadd.f32 0.0, %v669
        %v671 = vpop.f32.mrb[0].mxu0
        %v672 = vpop.f32.mrb[0].mxu0
        %v673 = vadd.f32 0.0, %v672
        %v674 = vpop.f32.mrb[0].mxu0
        %675 = vmatprep.mubr.bf16.mxu0 0
        %676 = vmatmul.mubr.bf16.gmra.mrb[0].mxu0 %v581
        %v677 = vpop.f32.mrb[0].mxu0
        %v678 = vadd.f32 0.0, %v677
        %v679 = vpop.f32.mrb[0].mxu0
        %v680 = vpop.f32.mrb[0].mxu0
        %v681 = vadd.f32 0.0, %v680
        %v682 = vpop.f32.mrb[0].mxu0
        %683 = vdwg.mxu0
        %v684 = vpack.c.bf16 %v625, %v622
        %v685 = vpack.c.bf16 %v633, %v630
        %v686 = vpack.c.bf16 %v641, %v638
        %v687 = vpack.c.bf16 %v649, %v646
        %v688 = vpack.c.bf16 %v657, %v654
        %v689 = vpack.c.bf16 %v665, %v662
        %v690 = vpack.c.bf16 %v673, %v670
        %v691 = vpack.c.bf16 %v681, %v678
        %v700 = vunpack.c.l.b16 %v684
        %v701 = vunpack.c.h.b16 %v684
        %v702 = vunpack.c.l.b16 %v685
        %v703 = vunpack.c.h.b16 %v685
        %v704 = vunpack.c.l.b16 %v686
        %v705 = vunpack.c.h.b16 %v686
        %v706 = vunpack.c.l.b16 %v687
        %v707 = vunpack.c.h.b16 %v687
        %v708 = vunpack.c.l.b16 %v688
        %v709 = vunpack.c.h.b16 %v688
        %v710 = vunpack.c.l.b16 %v689
        %v711 = vunpack.c.h.b16 %v689
        %v712 = vunpack.c.l.b16 %v690
        %v713 = vunpack.c.h.b16 %v690
        %v714 = vunpack.c.l.b16 %v691
        %v715 = vunpack.c.h.b16 %v691
        %v716 = vpack.c.b16 %v700, %v700
        %v717 = vpack.c.b16 %v701, %v701
        %v718 = vpack.c.b16 %v702, %v702
        %v719 = vpack.c.b16 %v703, %v703
        %v720 = vpack.c.b16 %v704, %v704
        %v721 = vpack.c.b16 %v705, %v705
        %v722 = vpack.c.b16 %v706, %v706
        %v723 = vpack.c.b16 %v707, %v707
        %v724 = vpack.c.b16 %v708, %v708
        %v725 = vpack.c.b16 %v709, %v709
        %v726 = vpack.c.b16 %v710, %v710
        %v727 = vpack.c.b16 %v711, %v711
        %v728 = vpack.c.b16 %v712, %v712
        %v729 = vpack.c.b16 %v713, %v713
        %v730 = vpack.c.b16 %v714, %v714
        %v731 = vpack.c.b16 %v715, %v715
        %v732 = vld [vmem:[%s0] sm:$0xf]
        %v733 = vld [vmem:[%s0 + $0x4] sm:$0xf]
        %v734 = vld [vmem:[%s472] sm:$0xf]
        %v735 = vld [vmem:[%s472 + $0x4] sm:$0xf]
        %v736 = vld [vmem:[%s472 + $0x8] sm:$0xf]
        %v737 = vld [vmem:[%s472 + $0xc] sm:$0xf]
        %v738 = vld [vmem:[%s472 + $0x10] sm:$0xf]
        %v739 = vld [vmem:[%s472 + $0x14] sm:$0xf]
        %v740 = vld [vmem:[%s472 + $0x18] sm:$0xf]
        %v741 = vld [vmem:[%s472 + $0x1c] sm:$0xf]
        %v742 = vld [vmem:[%s472 + $0x20] sm:$0xf]
        %v743 = vld [vmem:[%s472 + $0x24] sm:$0xf]
        %v744 = vld [vmem:[%s472 + $0x28] sm:$0xf]
        %v745 = vld [vmem:[%s472 + $0x2c] sm:$0xf]
        %v746 = vld [vmem:[%s472 + $0x30] sm:$0xf]
        %v747 = vld [vmem:[%s472 + $0x34] sm:$0xf]
        %v748 = vld [vmem:[%s472 + $0x38] sm:$0xf]
        %v749 = vld [vmem:[%s472 + $0x3c] sm:$0xf]
        %v750 = vld [vmem:[%s472 + $0x40] sm:$0xf]
        %v751 = vld [vmem:[%s472 + $0x44] sm:$0xf]
        %v752 = vld [vmem:[%s472 + $0x48] sm:$0xf]
        %v753 = vld [vmem:[%s472 + $0x4c] sm:$0xf]
        %v754 = vld [vmem:[%s472 + $0x50] sm:$0xf]
        %v755 = vld [vmem:[%s472 + $0x54] sm:$0xf]
        %v756 = vld [vmem:[%s472 + $0x58] sm:$0xf]
        %v757 = vld [vmem:[%s472 + $0x5c] sm:$0xf]
        %v758 = vld [vmem:[%s472 + $0x60] sm:$0xf]
        %v759 = vld [vmem:[%s472 + $0x64] sm:$0xf]
        %v760 = vld [vmem:[%s472 + $0x68] sm:$0xf]
        %v761 = vld [vmem:[%s472 + $0x6c] sm:$0xf]
        %v762 = vld [vmem:[%s472 + $0x70] sm:$0xf]
        %v763 = vld [vmem:[%s472 + $0x74] sm:$0xf]
        %v764 = vld [vmem:[%s472 + $0x78] sm:$0xf]
        %v765 = vld [vmem:[%s472 + $0x7c] sm:$0xf]
        %v766 = vunpack.c.l.bf16 %v734
        %v767 = vunpack.c.l.bf16 %v735
        %v768 = vunpack.c.l.bf16 %v736
        %v769 = vunpack.c.l.bf16 %v737
        %v770 = vunpack.c.l.bf16 %v738
        %v771 = vunpack.c.l.bf16 %v739
        %v772 = vunpack.c.l.bf16 %v740
        %v773 = vunpack.c.l.bf16 %v741
        %v774 = vunpack.c.l.bf16 %v742
        %v775 = vunpack.c.l.bf16 %v743
        %v776 = vunpack.c.l.bf16 %v744
        %v777 = vunpack.c.l.bf16 %v745
        %v778 = vunpack.c.l.bf16 %v746
        %v779 = vunpack.c.l.bf16 %v747
        %v780 = vunpack.c.l.bf16 %v748
        %v781 = vunpack.c.l.bf16 %v749
        %v782 = vunpack.c.l.bf16 %v750
        %v783 = vunpack.c.l.bf16 %v751
        %v784 = vunpack.c.l.bf16 %v752
        %v785 = vunpack.c.l.bf16 %v753
        %v786 = vunpack.c.l.bf16 %v754
        %v787 = vunpack.c.l.bf16 %v755
        %v788 = vunpack.c.l.bf16 %v756
        %v789 = vunpack.c.l.bf16 %v757
        %v790 = vunpack.c.l.bf16 %v758
        %v791 = vunpack.c.l.bf16 %v759
        %v792 = vunpack.c.l.bf16 %v760
        %v793 = vunpack.c.l.bf16 %v761
        %v794 = vunpack.c.l.bf16 %v762
        %v795 = vunpack.c.l.bf16 %v763
        %v796 = vunpack.c.l.bf16 %v764
        %v797 = vunpack.c.l.bf16 %v765
        %v800 = vunpack.c.l.b16 %v732
        %v801 = vunpack.c.l.b16 %v733
        %v802 = vpack.c.b16 %v801, %v800
        %v804 = vsel %vm558, %v802, 0
        %v807 = vsel %vm583, %v716, 0
        %809 = vmatprep.subr.bf16.mxu0 0
        %810 = vmatpush1.bf16.msra.mxu0 %v807
        %811 = vmatprep.subr.bf16.mxu0 0
        %812 = vmatpush1.bf16.msra.mxu0 0
        %813 = vmatprep.subr.bf16.mxu0 0
        %814 = vmatpush1.bf16.msra.mxu0 0
        %815 = vmatprep.subr.bf16.mxu0 0
        %816 = vmatpush1.bf16.msra.mxu0 0
        %817 = vmatprep.subr.bf16.mxu0 0
        %818 = vmatpush1.bf16.msra.mxu0 0
        %819 = vmatprep.subr.bf16.mxu0 0
        %820 = vmatpush1.bf16.msra.mxu0 0
        %821 = vmatprep.subr.bf16.mxu0 0
        %822 = vmatpush1.bf16.msra.mxu0 0
        %823 = vmatprep.subr.bf16.mxu0 0
        %824 = vmatpush1.bf16.msra.mxu0 0
        %825 = vmatprep.subr.bf16.mxu0 0
        %826 = vmatpush1.bf16.msra.mxu0 0
        %827 = vmatprep.subr.bf16.mxu0 0
        %828 = vmatpush1.bf16.msra.mxu0 0
        %829 = vmatprep.subr.bf16.mxu0 0
        %830 = vmatpush1.bf16.msra.mxu0 0
        %831 = vmatprep.subr.bf16.mxu0 0
        %832 = vmatpush1.bf16.msra.mxu0 0
        %833 = vmatprep.subr.bf16.mxu0 0
        %834 = vmatpush1.bf16.msra.mxu0 0
        %835 = vmatprep.subr.bf16.mxu0 0
        %836 = vmatpush1.bf16.msra.mxu0 0
        %837 = vmatprep.subr.bf16.mxu0 0
        %838 = vmatpush1.bf16.msra.mxu0 0
        %839 = vmatprep.subr.bf16.mxu0 0
        %840 = vmatpush1.bf16.msra.mxu0 0
        %841 = vmatprep.mubr.bf16.mxu0 0
        %842 = vmatmul.mubr.bf16.gmra.mrb[0].mxu0 %v804
        %v843 = vpop.f32.mrb[0].mxu0
        %v844 = vadd.f32 %v766, %v843
        %v845 = vpop.f32.mrb[0].mxu0
        %v846 = vpop.f32.mrb[0].mxu0
        %v847 = vadd.f32 %v767, %v846
        %v848 = vpop.f32.mrb[0].mxu0
        %849 = vdwg.mxu0
        %v851 = vsel %vm583, %v717, 0
        %853 = vmatprep.subr.bf16.mxu0 0
        %854 = vmatpush1.bf16.msra.mxu0 %v851
        %855 = vmatprep.subr.bf16.mxu0 0
        %856 = vmatpush1.bf16.msra.mxu0 0
        %857 = vmatprep.subr.bf16.mxu0 0
        %858 = vmatpush1.bf16.msra.mxu0 0
        %859 = vmatprep.subr.bf16.mxu0 0
        %860 = vmatpush1.bf16.msra.mxu0 0
        %861 = vmatprep.subr.bf16.mxu0 0
        %862 = vmatpush1.bf16.msra.mxu0 0
        %863 = vmatprep.subr.bf16.mxu0 0
        %864 = vmatpush1.bf16.msra.mxu0 0
        %865 = vmatprep.subr.bf16.mxu0 0
        %866 = vmatpush1.bf16.msra.mxu0 0
        %867 = vmatprep.subr.bf16.mxu0 0
        %868 = vmatpush1.bf16.msra.mxu0 0
        %869 = vmatprep.subr.bf16.mxu0 0
        %870 = vmatpush1.bf16.msra.mxu0 0
        %871 = vmatprep.subr.bf16.mxu0 0
        %872 = vmatpush1.bf16.msra.mxu0 0
        %873 = vmatprep.subr.bf16.mxu0 0
        %874 = vmatpush1.bf16.msra.mxu0 0
        %875 = vmatprep.subr.bf16.mxu0 0
        %876 = vmatpush1.bf16.msra.mxu0 0
        %877 = vmatprep.subr.bf16.mxu0 0
        %878 = vmatpush1.bf16.msra.mxu0 0
        %879 = vmatprep.subr.bf16.mxu0 0
        %880 = vmatpush1.bf16.msra.mxu0 0
        %881 = vmatprep.subr.bf16.mxu0 0
        %882 = vmatpush1.bf16.msra.mxu0 0
        %883 = vmatprep.subr.bf16.mxu0 0
        %884 = vmatpush1.bf16.msra.mxu0 0
        %885 = vmatprep.mubr.bf16.mxu0 0
        %886 = vmatmul.mubr.bf16.gmra.mrb[0].mxu0 %v804
        %v887 = vpop.f32.mrb[0].mxu0
        %v888 = vadd.f32 %v768, %v887
        %v889 = vpop.f32.mrb[0].mxu0
        %v890 = vpop.f32.mrb[0].mxu0
        %v891 = vadd.f32 %v769, %v890
        %v892 = vpop.f32.mrb[0].mxu0
        %893 = vdwg.mxu0
        %v895 = vsel %vm583, %v718, 0
        %897 = vmatprep.subr.bf16.mxu0 0
        %898 = vmatpush1.bf16.msra.mxu0 %v895
        %899 = vmatprep.subr.bf16.mxu0 0
        %900 = vmatpush1.bf16.msra.mxu0 0
        %901 = vmatprep.subr.bf16.mxu0 0
        %902 = vmatpush1.bf16.msra.mxu0 0
        %903 = vmatprep.subr.bf16.mxu0 0
        %904 = vmatpush1.bf16.msra.mxu0 0
        %905 = vmatprep.subr.bf16.mxu0 0
        %906 = vmatpush1.bf16.msra.mxu0 0
        %907 = vmatprep.subr.bf16.mxu0 0
        %908 = vmatpush1.bf16.msra.mxu0 0
        %909 = vmatprep.subr.bf16.mxu0 0
        %910 = vmatpush1.bf16.msra.mxu0 0
        %911 = vmatprep.subr.bf16.mxu0 0
        %912 = vmatpush1.bf16.msra.mxu0 0
        %913 = vmatprep.subr.bf16.mxu0 0
        %914 = vmatpush1.bf16.msra.mxu0 0
        %915 = vmatprep.subr.bf16.mxu0 0
        %916 = vmatpush1.bf16.msra.mxu0 0
        %917 = vmatprep.subr.bf16.mxu0 0
        %918 = vmatpush1.bf16.msra.mxu0 0
        %919 = vmatprep.subr.bf16.mxu0 0
        %920 = vmatpush1.bf16.msra.mxu0 0
        %921 = vmatprep.subr.bf16.mxu0 0
        %922 = vmatpush1.bf16.msra.mxu0 0
        %923 = vmatprep.subr.bf16.mxu0 0
        %924 = vmatpush1.bf16.msra.mxu0 0
        %925 = vmatprep.subr.bf16.mxu0 0
        %926 = vmatpush1.bf16.msra.mxu0 0
        %927 = vmatprep.subr.bf16.mxu0 0
        %928 = vmatpush1.bf16.msra.mxu0 0
        %929 = vmatprep.mubr.bf16.mxu0 0
        %930 = vmatmul.mubr.bf16.gmra.mrb[0].mxu0 %v804
        %v931 = vpop.f32.mrb[0].mxu0
        %v932 = vadd.f32 %v770, %v931
        %v933 = vpop.f32.mrb[0].mxu0
        %v934 = vpop.f32.mrb[0].mxu0
        %v935 = vadd.f32 %v771, %v934
        %v936 = vpop.f32.mrb[0].mxu0
        %937 = vdwg.mxu0
        %v939 = vsel %vm583, %v719, 0
        %941 = vmatprep.subr.bf16.mxu0 0
        %942 = vmatpush1.bf16.msra.mxu0 %v939
        %943 = vmatprep.subr.bf16.mxu0 0
        %944 = vmatpush1.bf16.msra.mxu0 0
        %945 = vmatprep.subr.bf16.mxu0 0
        %946 = vmatpush1.bf16.msra.mxu0 0
        %947 = vmatprep.subr.bf16.mxu0 0
        %948 = vmatpush1.bf16.msra.mxu0 0
        %949 = vmatprep.subr.bf16.mxu0 0
        %950 = vmatpush1.bf16.msra.mxu0 0
        %951 = vmatprep.subr.bf16.mxu0 0
        %952 = vmatpush1.bf16.msra.mxu0 0
        %953 = vmatprep.subr.bf16.mxu0 0
        %954 = vmatpush1.bf16.msra.mxu0 0
        %955 = vmatprep.subr.bf16.mxu0 0
        %956 = vmatpush1.bf16.msra.mxu0 0
        %957 = vmatprep.subr.bf16.mxu0 0
        %958 = vmatpush1.bf16.msra.mxu0 0
        %959 = vmatprep.subr.bf16.mxu0 0
        %960 = vmatpush1.bf16.msra.mxu0 0
        %961 = vmatprep.subr.bf16.mxu0 0
        %962 = vmatpush1.bf16.msra.mxu0 0
        %963 = vmatprep.subr.bf16.mxu0 0
        %964 = vmatpush1.bf16.msra.mxu0 0
        %965 = vmatprep.subr.bf16.mxu0 0
        %966 = vmatpush1.bf16.msra.mxu0 0
        %967 = vmatprep.subr.bf16.mxu0 0
        %968 = vmatpush1.bf16.msra.mxu0 0
        %969 = vmatprep.subr.bf16.mxu0 0
        %970 = vmatpush1.bf16.msra.mxu0 0
        %971 = vmatprep.subr.bf16.mxu0 0
        %972 = vmatpush1.bf16.msra.mxu0 0
        %973 = vmatprep.mubr.bf16.mxu0 0
        %974 = vmatmul.mubr.bf16.gmra.mrb[0].mxu0 %v804
        %v975 = vpop.f32.mrb[0].mxu0
        %v976 = vadd.f32 %v772, %v975
        %v977 = vpop.f32.mrb[0].mxu0
        %v978 = vpop.f32.mrb[0].mxu0
        %v979 = vadd.f32 %v773, %v978
        %v980 = vpop.f32.mrb[0].mxu0
        %981 = vdwg.mxu0
        %v983 = vsel %vm583, %v720, 0
        %985 = vmatprep.subr.bf16.mxu0 0
        %986 = vmatpush1.bf16.msra.mxu0 %v983
        %987 = vmatprep.subr.bf16.mxu0 0
        %988 = vmatpush1.bf16.msra.mxu0 0
        %989 = vmatprep.subr.bf16.mxu0 0
        %990 = vmatpush1.bf16.msra.mxu0 0
        %991 = vmatprep.subr.bf16.mxu0 0
        %992 = vmatpush1.bf16.msra.mxu0 0
        %993 = vmatprep.subr.bf16.mxu0 0
        %994 = vmatpush1.bf16.msra.mxu0 0
        %995 = vmatprep.subr.bf16.mxu0 0
        %996 = vmatpush1.bf16.msra.mxu0 0
        %997 = vmatprep.subr.bf16.mxu0 0
        %998 = vmatpush1.bf16.msra.mxu0 0
        %999 = vmatprep.subr.bf16.mxu0 0
        %1000 = vmatpush1.bf16.msra.mxu0 0
        %1001 = vmatprep.subr.bf16.mxu0 0
        %1002 = vmatpush1.bf16.msra.mxu0 0
        %1003 = vmatprep.subr.bf16.mxu0 0
        %1004 = vmatpush1.bf16.msra.mxu0 0
        %1005 = vmatprep.subr.bf16.mxu0 0
        %1006 = vmatpush1.bf16.msra.mxu0 0
        %1007 = vmatprep.subr.bf16.mxu0 0
        %1008 = vmatpush1.bf16.msra.mxu0 0
        %1009 = vmatprep.subr.bf16.mxu0 0
        %1010 = vmatpush1.bf16.msra.mxu0 0
        %1011 = vmatprep.subr.bf16.mxu0 0
        %1012 = vmatpush1.bf16.msra.mxu0 0
        %1013 = vmatprep.subr.bf16.mxu0 0
        %1014 = vmatpush1.bf16.msra.mxu0 0
        %1015 = vmatprep.subr.bf16.mxu0 0
        %1016 = vmatpush1.bf16.msra.mxu0 0
        %1017 = vmatprep.mubr.bf16.mxu0 0
        %1018 = vmatmul.mubr.bf16.gmra.mrb[0].mxu0 %v804
        %v1019 = vpop.f32.mrb[0].mxu0
        %v1020 = vadd.f32 %v774, %v1019
        %v1021 = vpop.f32.mrb[0].mxu0
        %v1022 = vpop.f32.mrb[0].mxu0
        %v1023 = vadd.f32 %v775, %v1022
        %v1024 = vpop.f32.mrb[0].mxu0
        %1025 = vdwg.mxu0
        %v1027 = vsel %vm583, %v721, 0
        %1029 = vmatprep.subr.bf16.mxu0 0
        %1030 = vmatpush1.bf16.msra.mxu0 %v1027
        %1031 = vmatprep.subr.bf16.mxu0 0
        %1032 = vmatpush1.bf16.msra.mxu0 0
        %1033 = vmatprep.subr.bf16.mxu0 0
        %1034 = vmatpush1.bf16.msra.mxu0 0
        %1035 = vmatprep.subr.bf16.mxu0 0
        %1036 = vmatpush1.bf16.msra.mxu0 0
        %1037 = vmatprep.subr.bf16.mxu0 0
        %1038 = vmatpush1.bf16.msra.mxu0 0
        %1039 = vmatprep.subr.bf16.mxu0 0
        %1040 = vmatpush1.bf16.msra.mxu0 0
        %1041 = vmatprep.subr.bf16.mxu0 0
        %1042 = vmatpush1.bf16.msra.mxu0 0
        %1043 = vmatprep.subr.bf16.mxu0 0
        %1044 = vmatpush1.bf16.msra.mxu0 0
        %1045 = vmatprep.subr.bf16.mxu0 0
        %1046 = vmatpush1.bf16.msra.mxu0 0
        %1047 = vmatprep.subr.bf16.mxu0 0
        %1048 = vmatpush1.bf16.msra.mxu0 0
        %1049 = vmatprep.subr.bf16.mxu0 0
        %1050 = vmatpush1.bf16.msra.mxu0 0
        %1051 = vmatprep.subr.bf16.mxu0 0
        %1052 = vmatpush1.bf16.msra.mxu0 0
        %1053 = vmatprep.subr.bf16.mxu0 0
        %1054 = vmatpush1.bf16.msra.mxu0 0
        %1055 = vmatprep.subr.bf16.mxu0 0
        %1056 = vmatpush1.bf16.msra.mxu0 0
        %1057 = vmatprep.subr.bf16.mxu0 0
        %1058 = vmatpush1.bf16.msra.mxu0 0
        %1059 = vmatprep.subr.bf16.mxu0 0
        %1060 = vmatpush1.bf16.msra.mxu0 0
        %1061 = vmatprep.mubr.bf16.mxu0 0
        %1062 = vmatmul.mubr.bf16.gmra.mrb[0].mxu0 %v804
        %v1063 = vpop.f32.mrb[0].mxu0
        %v1064 = vadd.f32 %v776, %v1063
        %v1065 = vpop.f32.mrb[0].mxu0
        %v1066 = vpop.f32.mrb[0].mxu0
        %v1067 = vadd.f32 %v777, %v1066
        %v1068 = vpop.f32.mrb[0].mxu0
        %1069 = vdwg.mxu0
        %v1071 = vsel %vm583, %v722, 0
        %1073 = vmatprep.subr.bf16.mxu0 0
        %1074 = vmatpush1.bf16.msra.mxu0 %v1071
        %1075 = vmatprep.subr.bf16.mxu0 0
        %1076 = vmatpush1.bf16.msra.mxu0 0
        %1077 = vmatprep.subr.bf16.mxu0 0
        %1078 = vmatpush1.bf16.msra.mxu0 0
        %1079 = vmatprep.subr.bf16.mxu0 0
        %1080 = vmatpush1.bf16.msra.mxu0 0
        %1081 = vmatprep.subr.bf16.mxu0 0
        %1082 = vmatpush1.bf16.msra.mxu0 0
        %1083 = vmatprep.subr.bf16.mxu0 0
        %1084 = vmatpush1.bf16.msra.mxu0 0
        %1085 = vmatprep.subr.bf16.mxu0 0
        %1086 = vmatpush1.bf16.msra.mxu0 0
        %1087 = vmatprep.subr.bf16.mxu0 0
        %1088 = vmatpush1.bf16.msra.mxu0 0
        %1089 = vmatprep.subr.bf16.mxu0 0
        %1090 = vmatpush1.bf16.msra.mxu0 0
        %1091 = vmatprep.subr.bf16.mxu0 0
        %1092 = vmatpush1.bf16.msra.mxu0 0
        %1093 = vmatprep.subr.bf16.mxu0 0
        %1094 = vmatpush1.bf16.msra.mxu0 0
        %1095 = vmatprep.subr.bf16.mxu0 0
        %1096 = vmatpush1.bf16.msra.mxu0 0
        %1097 = vmatprep.subr.bf16.mxu0 0
        %1098 = vmatpush1.bf16.msra.mxu0 0
        %1099 = vmatprep.subr.bf16.mxu0 0
        %1100 = vmatpush1.bf16.msra.mxu0 0
        %1101 = vmatprep.subr.bf16.mxu0 0
        %1102 = vmatpush1.bf16.msra.mxu0 0
        %1103 = vmatprep.subr.bf16.mxu0 0
        %1104 = vmatpush1.bf16.msra.mxu0 0
        %1105 = vmatprep.mubr.bf16.mxu0 0
        %1106 = vmatmul.mubr.bf16.gmra.mrb[0].mxu0 %v804
        %v1107 = vpop.f32.mrb[0].mxu0
        %v1108 = vadd.f32 %v778, %v1107
        %v1109 = vpop.f32.mrb[0].mxu0
        %v1110 = vpop.f32.mrb[0].mxu0
        %v1111 = vadd.f32 %v779, %v1110
        %v1112 = vpop.f32.mrb[0].mxu0
        %1113 = vdwg.mxu0
        %v1115 = vsel %vm583, %v723, 0
        %1117 = vmatprep.subr.bf16.mxu0 0
        %1118 = vmatpush1.bf16.msra.mxu0 %v1115
        %1119 = vmatprep.subr.bf16.mxu0 0
        %1120 = vmatpush1.bf16.msra.mxu0 0
        %1121 = vmatprep.subr.bf16.mxu0 0
        %1122 = vmatpush1.bf16.msra.mxu0 0
        %1123 = vmatprep.subr.bf16.mxu0 0
        %1124 = vmatpush1.bf16.msra.mxu0 0
        %1125 = vmatprep.subr.bf16.mxu0 0
        %1126 = vmatpush1.bf16.msra.mxu0 0
        %1127 = vmatprep.subr.bf16.mxu0 0
        %1128 = vmatpush1.bf16.msra.mxu0 0
        %1129 = vmatprep.subr.bf16.mxu0 0
        %1130 = vmatpush1.bf16.msra.mxu0 0
        %1131 = vmatprep.subr.bf16.mxu0 0
        %1132 = vmatpush1.bf16.msra.mxu0 0
        %1133 = vmatprep.subr.bf16.mxu0 0
        %1134 = vmatpush1.bf16.msra.mxu0 0
        %1135 = vmatprep.subr.bf16.mxu0 0
        %1136 = vmatpush1.bf16.msra.mxu0 0
        %1137 = vmatprep.subr.bf16.mxu0 0
        %1138 = vmatpush1.bf16.msra.mxu0 0
        %1139 = vmatprep.subr.bf16.mxu0 0
        %1140 = vmatpush1.bf16.msra.mxu0 0
        %1141 = vmatprep.subr.bf16.mxu0 0
        %1142 = vmatpush1.bf16.msra.mxu0 0
        %1143 = vmatprep.subr.bf16.mxu0 0
        %1144 = vmatpush1.bf16.msra.mxu0 0
        %1145 = vmatprep.subr.bf16.mxu0 0
        %1146 = vmatpush1.bf16.msra.mxu0 0
        %1147 = vmatprep.subr.bf16.mxu0 0
        %1148 = vmatpush1.bf16.msra.mxu0 0
        %1149 = vmatprep.mubr.bf16.mxu0 0
        %1150 = vmatmul.mubr.bf16.gmra.mrb[0].mxu0 %v804
        %v1151 = vpop.f32.mrb[0].mxu0
        %v1152 = vadd.f32 %v780, %v1151
        %v1153 = vpop.f32.mrb[0].mxu0
        %v1154 = vpop.f32.mrb[0].mxu0
        %v1155 = vadd.f32 %v781, %v1154
        %v1156 = vpop.f32.mrb[0].mxu0
        %1157 = vdwg.mxu0
        %v1159 = vsel %vm583, %v724, 0
        %1161 = vmatprep.subr.bf16.mxu0 0
        %1162 = vmatpush1.bf16.msra.mxu0 %v1159
        %1163 = vmatprep.subr.bf16.mxu0 0
        %1164 = vmatpush1.bf16.msra.mxu0 0
        %1165 = vmatprep.subr.bf16.mxu0 0
        %1166 = vmatpush1.bf16.msra.mxu0 0
        %1167 = vmatprep.subr.bf16.mxu0 0
        %1168 = vmatpush1.bf16.msra.mxu0 0
        %1169 = vmatprep.subr.bf16.mxu0 0
        %1170 = vmatpush1.bf16.msra.mxu0 0
        %1171 = vmatprep.subr.bf16.mxu0 0
        %1172 = vmatpush1.bf16.msra.mxu0 0
        %1173 = vmatprep.subr.bf16.mxu0 0
        %1174 = vmatpush1.bf16.msra.mxu0 0
        %1175 = vmatprep.subr.bf16.mxu0 0
        %1176 = vmatpush1.bf16.msra.mxu0 0
        %1177 = vmatprep.subr.bf16.mxu0 0
        %1178 = vmatpush1.bf16.msra.mxu0 0
        %1179 = vmatprep.subr.bf16.mxu0 0
        %1180 = vmatpush1.bf16.msra.mxu0 0
        %1181 = vmatprep.subr.bf16.mxu0 0
        %1182 = vmatpush1.bf16.msra.mxu0 0
        %1183 = vmatprep.subr.bf16.mxu0 0
        %1184 = vmatpush1.bf16.msra.mxu0 0
        %1185 = vmatprep.subr.bf16.mxu0 0
        %1186 = vmatpush1.bf16.msra.mxu0 0
        %1187 = vmatprep.subr.bf16.mxu0 0
        %1188 = vmatpush1.bf16.msra.mxu0 0
        %1189 = vmatprep.subr.bf16.mxu0 0
        %1190 = vmatpush1.bf16.msra.mxu0 0
        %1191 = vmatprep.subr.bf16.mxu0 0
        %1192 = vmatpush1.bf16.msra.mxu0 0
        %1193 = vmatprep.mubr.bf16.mxu0 0
        %1194 = vmatmul.mubr.bf16.gmra.mrb[0].mxu0 %v804
        %v1195 = vpop.f32.mrb[0].mxu0
        %v1196 = vadd.f32 %v782, %v1195
        %v1197 = vpop.f32.mrb[0].mxu0
        %v1198 = vpop.f32.mrb[0].mxu0
        %v1199 = vadd.f32 %v783, %v1198
        %v1200 = vpop.f32.mrb[0].mxu0
        %1201 = vdwg.mxu0
        %v1203 = vsel %vm583, %v725, 0
        %1205 = vmatprep.subr.bf16.mxu0 0
        %1206 = vmatpush1.bf16.msra.mxu0 %v1203
        %1207 = vmatprep.subr.bf16.mxu0 0
        %1208 = vmatpush1.bf16.msra.mxu0 0
        %1209 = vmatprep.subr.bf16.mxu0 0
        %1210 = vmatpush1.bf16.msra.mxu0 0
        %1211 = vmatprep.subr.bf16.mxu0 0
        %1212 = vmatpush1.bf16.msra.mxu0 0
        %1213 = vmatprep.subr.bf16.mxu0 0
        %1214 = vmatpush1.bf16.msra.mxu0 0
        %1215 = vmatprep.subr.bf16.mxu0 0
        %1216 = vmatpush1.bf16.msra.mxu0 0
        %1217 = vmatprep.subr.bf16.mxu0 0
        %1218 = vmatpush1.bf16.msra.mxu0 0
        %1219 = vmatprep.subr.bf16.mxu0 0
        %1220 = vmatpush1.bf16.msra.mxu0 0
        %1221 = vmatprep.subr.bf16.mxu0 0
        %1222 = vmatpush1.bf16.msra.mxu0 0
        %1223 = vmatprep.subr.bf16.mxu0 0
        %1224 = vmatpush1.bf16.msra.mxu0 0
        %1225 = vmatprep.subr.bf16.mxu0 0
        %1226 = vmatpush1.bf16.msra.mxu0 0
        %1227 = vmatprep.subr.bf16.mxu0 0
        %1228 = vmatpush1.bf16.msra.mxu0 0
        %1229 = vmatprep.subr.bf16.mxu0 0
        %1230 = vmatpush1.bf16.msra.mxu0 0
        %1231 = vmatprep.subr.bf16.mxu0 0
        %1232 = vmatpush1.bf16.msra.mxu0 0
        %1233 = vmatprep.subr.bf16.mxu0 0
        %1234 = vmatpush1.bf16.msra.mxu0 0
        %1235 = vmatprep.subr.bf16.mxu0 0
        %1236 = vmatpush1.bf16.msra.mxu0 0
        %1237 = vmatprep.mubr.bf16.mxu0 0
        %1238 = vmatmul.mubr.bf16.gmra.mrb[0].mxu0 %v804
        %v1239 = vpop.f32.mrb[0].mxu0
        %v1240 = vadd.f32 %v784, %v1239
        %v1241 = vpop.f32.mrb[0].mxu0
        %v1242 = vpop.f32.mrb[0].mxu0
        %v1243 = vadd.f32 %v785, %v1242
        %v1244 = vpop.f32.mrb[0].mxu0
        %1245 = vdwg.mxu0
        %v1247 = vsel %vm583, %v726, 0
        %1249 = vmatprep.subr.bf16.mxu0 0
        %1250 = vmatpush1.bf16.msra.mxu0 %v1247
        %1251 = vmatprep.subr.bf16.mxu0 0
        %1252 = vmatpush1.bf16.msra.mxu0 0
        %1253 = vmatprep.subr.bf16.mxu0 0
        %1254 = vmatpush1.bf16.msra.mxu0 0
        %1255 = vmatprep.subr.bf16.mxu0 0
        %1256 = vmatpush1.bf16.msra.mxu0 0
        %1257 = vmatprep.subr.bf16.mxu0 0
        %1258 = vmatpush1.bf16.msra.mxu0 0
        %1259 = vmatprep.subr.bf16.mxu0 0
        %1260 = vmatpush1.bf16.msra.mxu0 0
        %1261 = vmatprep.subr.bf16.mxu0 0
        %1262 = vmatpush1.bf16.msra.mxu0 0
        %1263 = vmatprep.subr.bf16.mxu0 0
        %1264 = vmatpush1.bf16.msra.mxu0 0
        %1265 = vmatprep.subr.bf16.mxu0 0
        %1266 = vmatpush1.bf16.msra.mxu0 0
        %1267 = vmatprep.subr.bf16.mxu0 0
        %1268 = vmatpush1.bf16.msra.mxu0 0
        %1269 = vmatprep.subr.bf16.mxu0 0
        %1270 = vmatpush1.bf16.msra.mxu0 0
        %1271 = vmatprep.subr.bf16.mxu0 0
        %1272 = vmatpush1.bf16.msra.mxu0 0
        %1273 = vmatprep.subr.bf16.mxu0 0
        %1274 = vmatpush1.bf16.msra.mxu0 0
        %1275 = vmatprep.subr.bf16.mxu0 0
        %1276 = vmatpush1.bf16.msra.mxu0 0
        %1277 = vmatprep.subr.bf16.mxu0 0
        %1278 = vmatpush1.bf16.msra.mxu0 0
        %1279 = vmatprep.subr.bf16.mxu0 0
        %1280 = vmatpush1.bf16.msra.mxu0 0
        %1281 = vmatprep.mubr.bf16.mxu0 0
        %1282 = vmatmul.mubr.bf16.gmra.mrb[0].mxu0 %v804
        %v1283 = vpop.f32.mrb[0].mxu0
        %v1284 = vadd.f32 %v786, %v1283
        %v1285 = vpop.f32.mrb[0].mxu0
        %v1286 = vpop.f32.mrb[0].mxu0
        %v1287 = vadd.f32 %v787, %v1286
        %v1288 = vpop.f32.mrb[0].mxu0
        %1289 = vdwg.mxu0
        %v1291 = vsel %vm583, %v727, 0
        %1293 = vmatprep.subr.bf16.mxu0 0
        %1294 = vmatpush1.bf16.msra.mxu0 %v1291
        %1295 = vmatprep.subr.bf16.mxu0 0
        %1296 = vmatpush1.bf16.msra.mxu0 0
        %1297 = vmatprep.subr.bf16.mxu0 0
        %1298 = vmatpush1.bf16.msra.mxu0 0
        %1299 = vmatprep.subr.bf16.mxu0 0
        %1300 = vmatpush1.bf16.msra.mxu0 0
        %1301 = vmatprep.subr.bf16.mxu0 0
        %1302 = vmatpush1.bf16.msra.mxu0 0
        %1303 = vmatprep.subr.bf16.mxu0 0
        %1304 = vmatpush1.bf16.msra.mxu0 0
        %1305 = vmatprep.subr.bf16.mxu0 0
        %1306 = vmatpush1.bf16.msra.mxu0 0
        %1307 = vmatprep.subr.bf16.mxu0 0
        %1308 = vmatpush1.bf16.msra.mxu0 0
        %1309 = vmatprep.subr.bf16.mxu0 0
        %1310 = vmatpush1.bf16.msra.mxu0 0
        %1311 = vmatprep.subr.bf16.mxu0 0
        %1312 = vmatpush1.bf16.msra.mxu0 0
        %1313 = vmatprep.subr.bf16.mxu0 0
        %1314 = vmatpush1.bf16.msra.mxu0 0
        %1315 = vmatprep.subr.bf16.mxu0 0
        %1316 = vmatpush1.bf16.msra.mxu0 0
        %1317 = vmatprep.subr.bf16.mxu0 0
        %1318 = vmatpush1.bf16.msra.mxu0 0
        %1319 = vmatprep.subr.bf16.mxu0 0
        %1320 = vmatpush1.bf16.msra.mxu0 0
        %1321 = vmatprep.subr.bf16.mxu0 0
        %1322 = vmatpush1.bf16.msra.mxu0 0
        %1323 = vmatprep.subr.bf16.mxu0 0
        %1324 = vmatpush1.bf16.msra.mxu0 0
        %1325 = vmatprep.mubr.bf16.mxu0 0
        %1326 = vmatmul.mubr.bf16.gmra.mrb[0].mxu0 %v804
        %v1327 = vpop.f32.mrb[0].mxu0
        %v1328 = vadd.f32 %v788, %v1327
        %v1329 = vpop.f32.mrb[0].mxu0
        %v1330 = vpop.f32.mrb[0].mxu0
        %v1331 = vadd.f32 %v789, %v1330
        %v1332 = vpop.f32.mrb[0].mxu0
        %1333 = vdwg.mxu0
        %v1335 = vsel %vm583, %v728, 0
        %1337 = vmatprep.subr.bf16.mxu0 0
        %1338 = vmatpush1.bf16.msra.mxu0 %v1335
        %1339 = vmatprep.subr.bf16.mxu0 0
        %1340 = vmatpush1.bf16.msra.mxu0 0
        %1341 = vmatprep.subr.bf16.mxu0 0
        %1342 = vmatpush1.bf16.msra.mxu0 0
        %1343 = vmatprep.subr.bf16.mxu0 0
        %1344 = vmatpush1.bf16.msra.mxu0 0
        %1345 = vmatprep.subr.bf16.mxu0 0
        %1346 = vmatpush1.bf16.msra.mxu0 0
        %1347 = vmatprep.subr.bf16.mxu0 0
        %1348 = vmatpush1.bf16.msra.mxu0 0
        %1349 = vmatprep.subr.bf16.mxu0 0
        %1350 = vmatpush1.bf16.msra.mxu0 0
        %1351 = vmatprep.subr.bf16.mxu0 0
        %1352 = vmatpush1.bf16.msra.mxu0 0
        %1353 = vmatprep.subr.bf16.mxu0 0
        %1354 = vmatpush1.bf16.msra.mxu0 0
        %1355 = vmatprep.subr.bf16.mxu0 0
        %1356 = vmatpush1.bf16.msra.mxu0 0
        %1357 = vmatprep.subr.bf16.mxu0 0
        %1358 = vmatpush1.bf16.msra.mxu0 0
        %1359 = vmatprep.subr.bf16.mxu0 0
        %1360 = vmatpush1.bf16.msra.mxu0 0
        %1361 = vmatprep.subr.bf16.mxu0 0
        %1362 = vmatpush1.bf16.msra.mxu0 0
        %1363 = vmatprep.subr.bf16.mxu0 0
        %1364 = vmatpush1.bf16.msra.mxu0 0
        %1365 = vmatprep.subr.bf16.mxu0 0
        %1366 = vmatpush1.bf16.msra.mxu0 0
        %1367 = vmatprep.subr.bf16.mxu0 0
        %1368 = vmatpush1.bf16.msra.mxu0 0
        %1369 = vmatprep.mubr.bf16.mxu0 0
        %1370 = vmatmul.mubr.bf16.gmra.mrb[0].mxu0 %v804
        %v1371 = vpop.f32.mrb[0].mxu0
        %v1372 = vadd.f32 %v790, %v1371
        %v1373 = vpop.f32.mrb[0].mxu0
        %v1374 = vpop.f32.mrb[0].mxu0
        %v1375 = vadd.f32 %v791, %v1374
        %v1376 = vpop.f32.mrb[0].mxu0
        %1377 = vdwg.mxu0
        %v1379 = vsel %vm583, %v729, 0
        %1381 = vmatprep.subr.bf16.mxu0 0
        %1382 = vmatpush1.bf16.msra.mxu0 %v1379
        %1383 = vmatprep.subr.bf16.mxu0 0
        %1384 = vmatpush1.bf16.msra.mxu0 0
        %1385 = vmatprep.subr.bf16.mxu0 0
        %1386 = vmatpush1.bf16.msra.mxu0 0
        %1387 = vmatprep.subr.bf16.mxu0 0
        %1388 = vmatpush1.bf16.msra.mxu0 0
        %1389 = vmatprep.subr.bf16.mxu0 0
        %1390 = vmatpush1.bf16.msra.mxu0 0
        %1391 = vmatprep.subr.bf16.mxu0 0
        %1392 = vmatpush1.bf16.msra.mxu0 0
        %1393 = vmatprep.subr.bf16.mxu0 0
        %1394 = vmatpush1.bf16.msra.mxu0 0
        %1395 = vmatprep.subr.bf16.mxu0 0
        %1396 = vmatpush1.bf16.msra.mxu0 0
        %1397 = vmatprep.subr.bf16.mxu0 0
        %1398 = vmatpush1.bf16.msra.mxu0 0
        %1399 = vmatprep.subr.bf16.mxu0 0
        %1400 = vmatpush1.bf16.msra.mxu0 0
        %1401 = vmatprep.subr.bf16.mxu0 0
        %1402 = vmatpush1.bf16.msra.mxu0 0
        %1403 = vmatprep.subr.bf16.mxu0 0
        %1404 = vmatpush1.bf16.msra.mxu0 0
        %1405 = vmatprep.subr.bf16.mxu0 0
        %1406 = vmatpush1.bf16.msra.mxu0 0
        %1407 = vmatprep.subr.bf16.mxu0 0
        %1408 = vmatpush1.bf16.msra.mxu0 0
        %1409 = vmatprep.subr.bf16.mxu0 0
        %1410 = vmatpush1.bf16.msra.mxu0 0
        %1411 = vmatprep.subr.bf16.mxu0 0
        %1412 = vmatpush1.bf16.msra.mxu0 0
        %1413 = vmatprep.mubr.bf16.mxu0 0
        %1414 = vmatmul.mubr.bf16.gmra.mrb[0].mxu0 %v804
        %v1415 = vpop.f32.mrb[0].mxu0
        %v1416 = vadd.f32 %v792, %v1415
        %v1417 = vpop.f32.mrb[0].mxu0
        %v1418 = vpop.f32.mrb[0].mxu0
        %v1419 = vadd.f32 %v793, %v1418
        %v1420 = vpop.f32.mrb[0].mxu0
        %1421 = vdwg.mxu0
        %v1423 = vsel %vm583, %v730, 0
        %1425 = vmatprep.subr.bf16.mxu0 0
        %1426 = vmatpush1.bf16.msra.mxu0 %v1423
        %1427 = vmatprep.subr.bf16.mxu0 0
        %1428 = vmatpush1.bf16.msra.mxu0 0
        %1429 = vmatprep.subr.bf16.mxu0 0
        %1430 = vmatpush1.bf16.msra.mxu0 0
        %1431 = vmatprep.subr.bf16.mxu0 0
        %1432 = vmatpush1.bf16.msra.mxu0 0
        %1433 = vmatprep.subr.bf16.mxu0 0
        %1434 = vmatpush1.bf16.msra.mxu0 0
        %1435 = vmatprep.subr.bf16.mxu0 0
        %1436 = vmatpush1.bf16.msra.mxu0 0
        %1437 = vmatprep.subr.bf16.mxu0 0
        %1438 = vmatpush1.bf16.msra.mxu0 0
        %1439 = vmatprep.subr.bf16.mxu0 0
        %1440 = vmatpush1.bf16.msra.mxu0 0
        %1441 = vmatprep.subr.bf16.mxu0 0
        %1442 = vmatpush1.bf16.msra.mxu0 0
        %1443 = vmatprep.subr.bf16.mxu0 0
        %1444 = vmatpush1.bf16.msra.mxu0 0
        %1445 = vmatprep.subr.bf16.mxu0 0
        %1446 = vmatpush1.bf16.msra.mxu0 0
        %1447 = vmatprep.subr.bf16.mxu0 0
        %1448 = vmatpush1.bf16.msra.mxu0 0
        %1449 = vmatprep.subr.bf16.mxu0 0
        %1450 = vmatpush1.bf16.msra.mxu0 0
        %1451 = vmatprep.subr.bf16.mxu0 0
        %1452 = vmatpush1.bf16.msra.mxu0 0
        %1453 = vmatprep.subr.bf16.mxu0 0
        %1454 = vmatpush1.bf16.msra.mxu0 0
        %1455 = vmatprep.subr.bf16.mxu0 0
        %1456 = vmatpush1.bf16.msra.mxu0 0
        %1457 = vmatprep.mubr.bf16.mxu0 0
        %1458 = vmatmul.mubr.bf16.gmra.mrb[0].mxu0 %v804
        %v1459 = vpop.f32.mrb[0].mxu0
        %v1460 = vadd.f32 %v794, %v1459
        %v1461 = vpop.f32.mrb[0].mxu0
        %v1462 = vpop.f32.mrb[0].mxu0
        %v1463 = vadd.f32 %v795, %v1462
        %v1464 = vpop.f32.mrb[0].mxu0
        %1465 = vdwg.mxu0
        %v1467 = vsel %vm583, %v731, 0
        %1469 = vmatprep.subr.bf16.mxu0 0
        %1470 = vmatpush1.bf16.msra.mxu0 %v1467
        %1471 = vmatprep.subr.bf16.mxu0 0
        %1472 = vmatpush1.bf16.msra.mxu0 0
        %1473 = vmatprep.subr.bf16.mxu0 0
        %1474 = vmatpush1.bf16.msra.mxu0 0
        %1475 = vmatprep.subr.bf16.mxu0 0
        %1476 = vmatpush1.bf16.msra.mxu0 0
        %1477 = vmatprep.subr.bf16.mxu0 0
        %1478 = vmatpush1.bf16.msra.mxu0 0
        %1479 = vmatprep.subr.bf16.mxu0 0
        %1480 = vmatpush1.bf16.msra.mxu0 0
        %1481 = vmatprep.subr.bf16.mxu0 0
        %1482 = vmatpush1.bf16.msra.mxu0 0
        %1483 = vmatprep.subr.bf16.mxu0 0
        %1484 = vmatpush1.bf16.msra.mxu0 0
        %1485 = vmatprep.subr.bf16.mxu0 0
        %1486 = vmatpush1.bf16.msra.mxu0 0
        %1487 = vmatprep.subr.bf16.mxu0 0
        %1488 = vmatpush1.bf16.msra.mxu0 0
        %1489 = vmatprep.subr.bf16.mxu0 0
        %1490 = vmatpush1.bf16.msra.mxu0 0
        %1491 = vmatprep.subr.bf16.mxu0 0
        %1492 = vmatpush1.bf16.msra.mxu0 0
        %1493 = vmatprep.subr.bf16.mxu0 0
        %1494 = vmatpush1.bf16.msra.mxu0 0
        %1495 = vmatprep.subr.bf16.mxu0 0
        %1496 = vmatpush1.bf16.msra.mxu0 0
        %1497 = vmatprep.subr.bf16.mxu0 0
        %1498 = vmatpush1.bf16.msra.mxu0 0
        %1499 = vmatprep.subr.bf16.mxu0 0
        %1500 = vmatpush1.bf16.msra.mxu0 0
        %1501 = vmatprep.mubr.bf16.mxu0 0
        %1502 = vmatmul.mubr.bf16.gmra.mrb[0].mxu0 %v804
        %v1503 = vpop.f32.mrb[0].mxu0
        %v1504 = vadd.f32 %v796, %v1503
        %v1505 = vpop.f32.mrb[0].mxu0
        %v1506 = vpop.f32.mrb[0].mxu0
        %v1507 = vadd.f32 %v797, %v1506
        %v1508 = vpop.f32.mrb[0].mxu0
        %1509 = vdwg.mxu0
        %v1510 = vmax.f32 %v844, 0.0
        %v1511 = vmax.f32 %v847, 0.0
        %v1512 = vmax.f32 %v888, 0.0
        %v1513 = vmax.f32 %v891, 0.0
        %v1514 = vmax.f32 %v932, 0.0
        %v1515 = vmax.f32 %v935, 0.0
        %v1516 = vmax.f32 %v976, 0.0
        %v1517 = vmax.f32 %v979, 0.0
        %v1518 = vmax.f32 %v1020, 0.0
        %v1519 = vmax.f32 %v1023, 0.0
        %v1520 = vmax.f32 %v1064, 0.0
        %v1521 = vmax.f32 %v1067, 0.0
        %v1522 = vmax.f32 %v1108, 0.0
        %v1523 = vmax.f32 %v1111, 0.0
        %v1524 = vmax.f32 %v1152, 0.0
        %v1525 = vmax.f32 %v1155, 0.0
        %v1526 = vmax.f32 %v1196, 0.0
        %v1527 = vmax.f32 %v1199, 0.0
        %v1528 = vmax.f32 %v1240, 0.0
        %v1529 = vmax.f32 %v1243, 0.0
        %v1530 = vmax.f32 %v1284, 0.0
        %v1531 = vmax.f32 %v1287, 0.0
        %v1532 = vmax.f32 %v1328, 0.0
        %v1533 = vmax.f32 %v1331, 0.0
        %v1534 = vmax.f32 %v1372, 0.0
        %v1535 = vmax.f32 %v1375, 0.0
        %v1536 = vmax.f32 %v1416, 0.0
        %v1537 = vmax.f32 %v1419, 0.0
        %v1538 = vmax.f32 %v1460, 0.0
        %v1539 = vmax.f32 %v1463, 0.0
        %v1540 = vmax.f32 %v1504, 0.0
        %v1541 = vmax.f32 %v1507, 0.0
        %v1542 = vpack.c.bf16 %v1511, %v1510
        %v1543 = vpack.c.bf16 %v1513, %v1512
        %v1544 = vpack.c.bf16 %v1515, %v1514
        %v1545 = vpack.c.bf16 %v1517, %v1516
        %v1546 = vpack.c.bf16 %v1519, %v1518
        %v1547 = vpack.c.bf16 %v1521, %v1520
        %v1548 = vpack.c.bf16 %v1523, %v1522
        %v1549 = vpack.c.bf16 %v1525, %v1524
        %v1550 = vpack.c.bf16 %v1527, %v1526
        %v1551 = vpack.c.bf16 %v1529, %v1528
        %v1552 = vpack.c.bf16 %v1531, %v1530
        %v1553 = vpack.c.bf16 %v1533, %v1532
        %v1554 = vpack.c.bf16 %v1535, %v1534
        %v1555 = vpack.c.bf16 %v1537, %v1536
        %v1556 = vpack.c.bf16 %v1539, %v1538
        %v1557 = vpack.c.bf16 %v1541, %v1540
        %v1574 = vunpack.c.l.b16 %v1542
        %v1575 = vunpack.c.h.b16 %v1542
        %v1576 = vunpack.c.l.b16 %v1543
        %v1577 = vunpack.c.h.b16 %v1543
        %v1578 = vunpack.c.l.b16 %v1544
        %v1579 = vunpack.c.h.b16 %v1544
        %v1580 = vunpack.c.l.b16 %v1545
        %v1581 = vunpack.c.h.b16 %v1545
        %v1582 = vunpack.c.l.b16 %v1546
        %v1583 = vunpack.c.h.b16 %v1546
        %v1584 = vunpack.c.l.b16 %v1547
        %v1585 = vunpack.c.h.b16 %v1547
        %v1586 = vunpack.c.l.b16 %v1548
        %v1587 = vunpack.c.h.b16 %v1548
        %v1588 = vunpack.c.l.b16 %v1549
        %v1589 = vunpack.c.h.b16 %v1549
        %v1590 = vunpack.c.l.b16 %v1550
        %v1591 = vunpack.c.h.b16 %v1550
        %v1592 = vunpack.c.l.b16 %v1551
        %v1593 = vunpack.c.h.b16 %v1551
        %v1594 = vunpack.c.l.b16 %v1552
        %v1595 = vunpack.c.h.b16 %v1552
        %v1596 = vunpack.c.l.b16 %v1553
        %v1597 = vunpack.c.h.b16 %v1553
        %v1598 = vunpack.c.l.b16 %v1554
        %v1599 = vunpack.c.h.b16 %v1554
        %v1600 = vunpack.c.l.b16 %v1555
        %v1601 = vunpack.c.h.b16 %v1555
        %v1602 = vunpack.c.l.b16 %v1556
        %v1603 = vunpack.c.h.b16 %v1556
        %v1604 = vunpack.c.l.b16 %v1557
        %v1605 = vunpack.c.h.b16 %v1557
        %v1606 = vpack.c.b16 %v1574, %v1574
        %v1607 = vpack.c.b16 %v1575, %v1575
        %v1608 = vpack.c.b16 %v1576, %v1576
        %v1609 = vpack.c.b16 %v1577, %v1577
        %v1610 = vpack.c.b16 %v1578, %v1578
        %v1611 = vpack.c.b16 %v1579, %v1579
        %v1612 = vpack.c.b16 %v1580, %v1580
        %v1613 = vpack.c.b16 %v1581, %v1581
        %v1614 = vpack.c.b16 %v1582, %v1582
        %v1615 = vpack.c.b16 %v1583, %v1583
        %v1616 = vpack.c.b16 %v1584, %v1584
        %v1617 = vpack.c.b16 %v1585, %v1585
        %v1618 = vpack.c.b16 %v1586, %v1586
        %v1619 = vpack.c.b16 %v1587, %v1587
        %v1620 = vpack.c.b16 %v1588, %v1588
        %v1621 = vpack.c.b16 %v1589, %v1589
        %v1622 = vpack.c.b16 %v1590, %v1590
        %v1623 = vpack.c.b16 %v1591, %v1591
        %v1624 = vpack.c.b16 %v1592, %v1592
        %v1625 = vpack.c.b16 %v1593, %v1593
        %v1626 = vpack.c.b16 %v1594, %v1594
        %v1627 = vpack.c.b16 %v1595, %v1595
        %v1628 = vpack.c.b16 %v1596, %v1596
        %v1629 = vpack.c.b16 %v1597, %v1597
        %v1630 = vpack.c.b16 %v1598, %v1598
        %v1631 = vpack.c.b16 %v1599, %v1599
        %v1632 = vpack.c.b16 %v1600, %v1600
        %v1633 = vpack.c.b16 %v1601, %v1601
        %v1634 = vpack.c.b16 %v1602, %v1602
        %v1635 = vpack.c.b16 %v1603, %v1603
        %v1636 = vpack.c.b16 %v1604, %v1604
        %v1637 = vpack.c.b16 %v1605, %v1605
        %vm1670 = vcmask 125952
        %1671 = vst.msk [vmem:[%s497] sm:$0xf] %vm1670, %v1606
        %1672 = vst.msk [vmem:[%s497 + $0x4] sm:$0xf] %vm1670, %v1607
        %1673 = vst.msk [vmem:[%s497 + $0x8] sm:$0xf] %vm1670, %v1608
        %1674 = vst.msk [vmem:[%s497 + $0xc] sm:$0xf] %vm1670, %v1609
        %1675 = vst.msk [vmem:[%s497 + $0x10] sm:$0xf] %vm1670, %v1610
        %1676 = vst.msk [vmem:[%s497 + $0x14] sm:$0xf] %vm1670, %v1611
        %1677 = vst.msk [vmem:[%s497 + $0x18] sm:$0xf] %vm1670, %v1612
        %1678 = vst.msk [vmem:[%s497 + $0x1c] sm:$0xf] %vm1670, %v1613
        %1679 = vst.msk [vmem:[%s497 + $0x20] sm:$0xf] %vm1670, %v1614
        %1680 = vst.msk [vmem:[%s497 + $0x24] sm:$0xf] %vm1670, %v1615
        %1681 = vst.msk [vmem:[%s497 + $0x28] sm:$0xf] %vm1670, %v1616
        %1682 = vst.msk [vmem:[%s497 + $0x2c] sm:$0xf] %vm1670, %v1617
        %1683 = vst.msk [vmem:[%s497 + $0x30] sm:$0xf] %vm1670, %v1618
        %1684 = vst.msk [vmem:[%s497 + $0x34] sm:$0xf] %vm1670, %v1619
        %1685 = vst.msk [vmem:[%s497 + $0x38] sm:$0xf] %vm1670, %v1620
        %1686 = vst.msk [vmem:[%s497 + $0x3c] sm:$0xf] %vm1670, %v1621
        %1687 = vst.msk [vmem:[%s497 + $0x40] sm:$0xf] %vm1670, %v1622
        %1688 = vst.msk [vmem:[%s497 + $0x44] sm:$0xf] %vm1670, %v1623
        %1689 = vst.msk [vmem:[%s497 + $0x48] sm:$0xf] %vm1670, %v1624
        %1690 = vst.msk [vmem:[%s497 + $0x4c] sm:$0xf] %vm1670, %v1625
        %1691 = vst.msk [vmem:[%s497 + $0x50] sm:$0xf] %vm1670, %v1626
        %1692 = vst.msk [vmem:[%s497 + $0x54] sm:$0xf] %vm1670, %v1627
        %1693 = vst.msk [vmem:[%s497 + $0x58] sm:$0xf] %vm1670, %v1628
        %1694 = vst.msk [vmem:[%s497 + $0x5c] sm:$0xf] %vm1670, %v1629
        %1695 = vst.msk [vmem:[%s497 + $0x60] sm:$0xf] %vm1670, %v1630
        %1696 = vst.msk [vmem:[%s497 + $0x64] sm:$0xf] %vm1670, %v1631
        %1697 = vst.msk [vmem:[%s497 + $0x68] sm:$0xf] %vm1670, %v1632
        %1698 = vst.msk [vmem:[%s497 + $0x6c] sm:$0xf] %vm1670, %v1633
        %1699 = vst.msk [vmem:[%s497 + $0x70] sm:$0xf] %vm1670, %v1634
        %1700 = vst.msk [vmem:[%s497 + $0x74] sm:$0xf] %vm1670, %v1635
        %1701 = vst.msk [vmem:[%s497 + $0x78] sm:$0xf] %vm1670, %v1636
        %1702 = vst.msk [vmem:[%s497 + $0x7c] sm:$0xf] %vm1670, %v1637
        %s1703 = sand.u32 %s133, 1
        %s1704 = sand.u32 %s133, 1
        %s1705 = smul.addr %s1704, 128
        %s1706 = scalar_lea.vmem [#allocation4], %s1705
        // Predicated region
        $region119: #{_lambda_.7} parent=109 // pred_check
          %p1707 = pneg %p143
        $region120: #{_lambda_.7} parent=109 // pred_check_branch
          %1709 = sbr.rel (%p1707) target = $region122
        $region121: #{_lambda_.7} parent=109 // pred_region
          %s1710 = smul.u32 16, %s20
          %s1711 = smul.addr %s19, 2
          %s1712 = smul.addr %s1710, 4
          %s1713 = sadd.s32 %s1711, %s1712
          %s1714 = smul.addr %s1713, 4
          %s1715 = scalar_lea.vmem %s4, %s1714
          // Predicated region
          $region123: #{_lambda_.7} parent=121 // pred_check
            _
          $region124: #{_lambda_.7} parent=121 // pred_check_branch
            %1717 = sbr.rel (0) target = $region126
          $region125: #{_lambda_.7} parent=121 // pred_region
            // Predicated region
            $region127: #{_lambda_.7} parent=125 // pred_check
              _
            $region128: #{_lambda_.7} parent=125 // pred_check_branch
              %1719 = sbr.rel target = $region130
            $region129: #{_lambda_.7} parent=125 // pred_region
              // Predicated region
              $region142: #{_lambda_.7} parent=129 // pred_check
                _
              $region143: #{_lambda_.7} parent=129 // pred_check_branch
                %1796 = sbr.rel (0) target = $region145
              $region144: #{_lambda_.7} parent=129 // pred_region
                loop: start=0, step=1, limit=1
                $region146: #{_lambda_.7} parent=144 // loop_pre_header
                  _
                $region147: #{_lambda_.7} parent=144 // loop_header
                  %s1798 = sphi 0, %s1802
                  %p1799 = scmp.ge.s32.totalorder %s1798, 1
                  %s1803 = sphi %s1706, %s1706
                  %s1804 = sphi %s1715, %s1715
                $region148: #{_lambda_.7} parent=144 // loop_header_branch
                  %1801 = sbr.rel (%p1799) target = $region152
                $region149: #{_lambda_.7} parent=144 // loop_body
                  _
                $region150: #{_lambda_.7} parent=144 // loop_footer
                  %s1802 = sadd.s32 1, %s1798
                $region151: #{_lambda_.7} parent=144 // loop_footer_branch
                  %1797 = sbr.rel target = $region147
                $region152: #{_lambda_.7} parent=144 // loop_exit
                  _
                loop: start=0, step=1, limit=1
                $region153: #{_lambda_.7} parent=144 // loop_pre_header
                  _
                $region154: #{_lambda_.7} parent=144 // loop_header
                  %s1807 = sphi 0, %s1811
                  %p1808 = scmp.ge.s32.totalorder %s1807, 1
                  %s1812 = sphi %s1706, %s1706
                  %s1813 = sphi %s1715, %s1715
                $region155: #{_lambda_.7} parent=144 // loop_header_branch
                  %1810 = sbr.rel (%p1808) target = $region159
                $region156: #{_lambda_.7} parent=144 // loop_body
                  %v1814 = vld [vmem:[%s1812] sm:$0xf]
                  %1815 = vst [vmem:[%s1813] sm:$0xf] %v1814
                  %v1816 = vld [vmem:[%s1812 + $0x4] sm:$0xf]
                  %1817 = vst [vmem:[%s1813 + $0x4] sm:$0xf] %v1816
                  %v1818 = vld [vmem:[%s1812 + $0x8] sm:$0xf]
                  %1819 = vst [vmem:[%s1813 + $0x10] sm:$0xf] %v1818
                  %v1820 = vld [vmem:[%s1812 + $0xc] sm:$0xf]
                  %1821 = vst [vmem:[%s1813 + $0x14] sm:$0xf] %v1820
                  %v1822 = vld [vmem:[%s1812 + $0x10] sm:$0xf]
                  %1823 = vst [vmem:[%s1813 + $0x20] sm:$0xf] %v1822
                  %v1824 = vld [vmem:[%s1812 + $0x14] sm:$0xf]
                  %1825 = vst [vmem:[%s1813 + $0x24] sm:$0xf] %v1824
                  %v1826 = vld [vmem:[%s1812 + $0x18] sm:$0xf]
                  %1827 = vst [vmem:[%s1813 + $0x30] sm:$0xf] %v1826
                  %v1828 = vld [vmem:[%s1812 + $0x1c] sm:$0xf]
                  %1829 = vst [vmem:[%s1813 + $0x34] sm:$0xf] %v1828
                  %v1830 = vld [vmem:[%s1812 + $0x20] sm:$0xf]
                  %1831 = vst [vmem:[%s1813 + $0x40] sm:$0xf] %v1830
                  %v1832 = vld [vmem:[%s1812 + $0x24] sm:$0xf]
                  %1833 = vst [vmem:[%s1813 + $0x44] sm:$0xf] %v1832
                  %v1834 = vld [vmem:[%s1812 + $0x28] sm:$0xf]
                  %1835 = vst [vmem:[%s1813 + $0x50] sm:$0xf] %v1834
                  %v1836 = vld [vmem:[%s1812 + $0x2c] sm:$0xf]
                  %1837 = vst [vmem:[%s1813 + $0x54] sm:$0xf] %v1836
                  %v1838 = vld [vmem:[%s1812 + $0x30] sm:$0xf]
                  %1839 = vst [vmem:[%s1813 + $0x60] sm:$0xf] %v1838
                  %v1840 = vld [vmem:[%s1812 + $0x34] sm:$0xf]
                  %1841 = vst [vmem:[%s1813 + $0x64] sm:$0xf] %v1840
                  %v1842 = vld [vmem:[%s1812 + $0x38] sm:$0xf]
                  %1843 = vst [vmem:[%s1813 + $0x70] sm:$0xf] %v1842
                  %v1844 = vld [vmem:[%s1812 + $0x3c] sm:$0xf]
                  %1845 = vst [vmem:[%s1813 + $0x74] sm:$0xf] %v1844
                  %v1846 = vld [vmem:[%s1812 + $0x40] sm:$0xf]
                  %1847 = vst [vmem:[%s1813 + $0x80] sm:$0xf] %v1846
                  %v1848 = vld [vmem:[%s1812 + $0x44] sm:$0xf]
                  %1849 = vst [vmem:[%s1813 + $0x84] sm:$0xf] %v1848
                  %v1850 = vld [vmem:[%s1812 + $0x48] sm:$0xf]
                  %1851 = vst [vmem:[%s1813 + $0x90] sm:$0xf] %v1850
                  %v1852 = vld [vmem:[%s1812 + $0x4c] sm:$0xf]
                  %1853 = vst [vmem:[%s1813 + $0x94] sm:$0xf] %v1852
                  %v1854 = vld [vmem:[%s1812 + $0x50] sm:$0xf]
                  %1855 = vst [vmem:[%s1813 + $0xa0] sm:$0xf] %v1854
                  %v1856 = vld [vmem:[%s1812 + $0x54] sm:$0xf]
                  %1857 = vst [vmem:[%s1813 + $0xa4] sm:$0xf] %v1856
                  %v1858 = vld [vmem:[%s1812 + $0x58] sm:$0xf]
                  %1859 = vst [vmem:[%s1813 + $0xb0] sm:$0xf] %v1858
                  %v1860 = vld [vmem:[%s1812 + $0x5c] sm:$0xf]
                  %1861 = vst [vmem:[%s1813 + $0xb4] sm:$0xf] %v1860
                  %v1862 = vld [vmem:[%s1812 + $0x60] sm:$0xf]
                  %1863 = vst [vmem:[%s1813 + $0xc0] sm:$0xf] %v1862
                  %v1864 = vld [vmem:[%s1812 + $0x64] sm:$0xf]
                  %1865 = vst [vmem:[%s1813 + $0xc4] sm:$0xf] %v1864
                  %v1866 = vld [vmem:[%s1812 + $0x68] sm:$0xf]
                  %1867 = vst [vmem:[%s1813 + $0xd0] sm:$0xf] %v1866
                  %v1868 = vld [vmem:[%s1812 + $0x6c] sm:$0xf]
                  %1869 = vst [vmem:[%s1813 + $0xd4] sm:$0xf] %v1868
                  %v1870 = vld [vmem:[%s1812 + $0x70] sm:$0xf]
                  %1871 = vst [vmem:[%s1813 + $0xe0] sm:$0xf] %v1870
                  %v1872 = vld [vmem:[%s1812 + $0x74] sm:$0xf]
                  %1873 = vst [vmem:[%s1813 + $0xe4] sm:$0xf] %v1872
                  %v1874 = vld [vmem:[%s1812 + $0x78] sm:$0xf]
                  %1875 = vst [vmem:[%s1813 + $0xf0] sm:$0xf] %v1874
                  %v1876 = vld [vmem:[%s1812 + $0x7c] sm:$0xf]
                  %1877 = vst [vmem:[%s1813 + $0xf4] sm:$0xf] %v1876
                $region157: #{_lambda_.7} parent=144 // loop_footer
                  %s1811 = sadd.s32 1, %s1807
                $region158: #{_lambda_.7} parent=144 // loop_footer_branch
                  %1806 = sbr.rel target = $region154
                $region159: #{_lambda_.7} parent=144 // loop_exit
                  _
              $region145: #{_lambda_.7} parent=129 // pred_fallthru
                _
            $region130: #{_lambda_.7} parent=125 // pred_fallthru
              _
            // Predicated region
            $region131: #{_lambda_.7} parent=125 // pred_check
              _
            $region132: #{_lambda_.7} parent=125 // pred_check_branch
              %1721 = sbr.rel (0) target = $region134
            $region133: #{_lambda_.7} parent=125 // pred_region
              loop: start=0, step=1, limit=1
              $region135: #{_lambda_.7} parent=133 // loop_pre_header
                _
              $region136: #{_lambda_.7} parent=133 // loop_header
                %s1724 = sphi 0, %s1728
                %p1725 = scmp.ge.s32.totalorder %s1724, 1
                %s1729 = sphi %s1706, %s1706
                %s1730 = sphi %s1715, %s1715
              $region137: #{_lambda_.7} parent=133 // loop_header_branch
                %1727 = sbr.rel (%p1725) target = $region141
              $region138: #{_lambda_.7} parent=133 // loop_body
                %v1731 = vld [vmem:[%s1729] sm:$0xf]
                %1732 = vst [vmem:[%s1730] sm:$0xf] %v1731
                %v1733 = vld [vmem:[%s1729 + $0x4] sm:$0xf]
                %1734 = vst [vmem:[%s1730 + $0x4] sm:$0xf] %v1733
                %v1735 = vld [vmem:[%s1729 + $0x8] sm:$0xf]
                %1736 = vst [vmem:[%s1730 + $0x10] sm:$0xf] %v1735
                %v1737 = vld [vmem:[%s1729 + $0xc] sm:$0xf]
                %1738 = vst [vmem:[%s1730 + $0x14] sm:$0xf] %v1737
                %v1739 = vld [vmem:[%s1729 + $0x10] sm:$0xf]
                %1740 = vst [vmem:[%s1730 + $0x20] sm:$0xf] %v1739
                %v1741 = vld [vmem:[%s1729 + $0x14] sm:$0xf]
                %1742 = vst [vmem:[%s1730 + $0x24] sm:$0xf] %v1741
                %v1743 = vld [vmem:[%s1729 + $0x18] sm:$0xf]
                %1744 = vst [vmem:[%s1730 + $0x30] sm:$0xf] %v1743
                %v1745 = vld [vmem:[%s1729 + $0x1c] sm:$0xf]
                %1746 = vst [vmem:[%s1730 + $0x34] sm:$0xf] %v1745
                %v1747 = vld [vmem:[%s1729 + $0x20] sm:$0xf]
                %1748 = vst [vmem:[%s1730 + $0x40] sm:$0xf] %v1747
                %v1749 = vld [vmem:[%s1729 + $0x24] sm:$0xf]
                %1750 = vst [vmem:[%s1730 + $0x44] sm:$0xf] %v1749
                %v1751 = vld [vmem:[%s1729 + $0x28] sm:$0xf]
                %1752 = vst [vmem:[%s1730 + $0x50] sm:$0xf] %v1751
                %v1753 = vld [vmem:[%s1729 + $0x2c] sm:$0xf]
                %1754 = vst [vmem:[%s1730 + $0x54] sm:$0xf] %v1753
                %v1755 = vld [vmem:[%s1729 + $0x30] sm:$0xf]
                %1756 = vst [vmem:[%s1730 + $0x60] sm:$0xf] %v1755
                %v1757 = vld [vmem:[%s1729 + $0x34] sm:$0xf]
                %1758 = vst [vmem:[%s1730 + $0x64] sm:$0xf] %v1757
                %v1759 = vld [vmem:[%s1729 + $0x38] sm:$0xf]
                %1760 = vst [vmem:[%s1730 + $0x70] sm:$0xf] %v1759
                %v1761 = vld [vmem:[%s1729 + $0x3c] sm:$0xf]
                %1762 = vst [vmem:[%s1730 + $0x74] sm:$0xf] %v1761
                %v1763 = vld [vmem:[%s1729 + $0x40] sm:$0xf]
                %1764 = vst [vmem:[%s1730 + $0x80] sm:$0xf] %v1763
                %v1765 = vld [vmem:[%s1729 + $0x44] sm:$0xf]
                %1766 = vst [vmem:[%s1730 + $0x84] sm:$0xf] %v1765
                %v1767 = vld [vmem:[%s1729 + $0x48] sm:$0xf]
                %1768 = vst [vmem:[%s1730 + $0x90] sm:$0xf] %v1767
                %v1769 = vld [vmem:[%s1729 + $0x4c] sm:$0xf]
                %1770 = vst [vmem:[%s1730 + $0x94] sm:$0xf] %v1769
                %v1771 = vld [vmem:[%s1729 + $0x50] sm:$0xf]
                %1772 = vst [vmem:[%s1730 + $0xa0] sm:$0xf] %v1771
                %v1773 = vld [vmem:[%s1729 + $0x54] sm:$0xf]
                %1774 = vst [vmem:[%s1730 + $0xa4] sm:$0xf] %v1773
                %v1775 = vld [vmem:[%s1729 + $0x58] sm:$0xf]
                %1776 = vst [vmem:[%s1730 + $0xb0] sm:$0xf] %v1775
                %v1777 = vld [vmem:[%s1729 + $0x5c] sm:$0xf]
                %1778 = vst [vmem:[%s1730 + $0xb4] sm:$0xf] %v1777
                %v1779 = vld [vmem:[%s1729 + $0x60] sm:$0xf]
                %1780 = vst [vmem:[%s1730 + $0xc0] sm:$0xf] %v1779
                %v1781 = vld [vmem:[%s1729 + $0x64] sm:$0xf]
                %1782 = vst [vmem:[%s1730 + $0xc4] sm:$0xf] %v1781
                %v1783 = vld [vmem:[%s1729 + $0x68] sm:$0xf]
                %1784 = vst [vmem:[%s1730 + $0xd0] sm:$0xf] %v1783
                %v1785 = vld [vmem:[%s1729 + $0x6c] sm:$0xf]
                %1786 = vst [vmem:[%s1730 + $0xd4] sm:$0xf] %v1785
                %v1787 = vld [vmem:[%s1729 + $0x70] sm:$0xf]
                %1788 = vst [vmem:[%s1730 + $0xe0] sm:$0xf] %v1787
                %v1789 = vld [vmem:[%s1729 + $0x74] sm:$0xf]
                %1790 = vst [vmem:[%s1730 + $0xe4] sm:$0xf] %v1789
                %v1791 = vld [vmem:[%s1729 + $0x78] sm:$0xf]
                %1792 = vst [vmem:[%s1730 + $0xf0] sm:$0xf] %v1791
                %v1793 = vld [vmem:[%s1729 + $0x7c] sm:$0xf]
                %1794 = vst [vmem:[%s1730 + $0xf4] sm:$0xf] %v1793
              $region139: #{_lambda_.7} parent=133 // loop_footer
                %s1728 = sadd.s32 1, %s1724
              $region140: #{_lambda_.7} parent=133 // loop_footer_branch
                %1723 = sbr.rel target = $region136
              $region141: #{_lambda_.7} parent=133 // loop_exit
                _
            $region134: #{_lambda_.7} parent=125 // pred_fallthru
              _
          $region126: #{_lambda_.7} parent=121 // pred_fallthru
            _
          %1878 = vnop
        $region122: #{_lambda_.7} parent=109 // pred_fallthru
          _
      $region110: #{_lambda_.7} parent=5 // pred_fallthru
        _
      %p1879 = scmp.le.s32.totalorder 2, %s10
      // Predicated region
      $region160: #{_lambda_.7} parent=5 // pred_check
        %p1880 = pneg %p1879
      $region161: #{_lambda_.7} parent=5 // pred_check_branch
        %1882 = sbr.rel (%p1880) target = $region163
      $region162: #{_lambda_.7} parent=5 // pred_region
        %s1883 = ssub.s32 %s10, 2
        // Predicated region
        $region164: #{_lambda_.7} parent=162 // pred_check
          %p1884 = pneg %p149
        $region165: #{_lambda_.7} parent=162 // pred_check_branch
          %1886 = sbr.rel (%p1884) target = $region167
        $region166: #{_lambda_.7} parent=162 // pred_region
          %s1887 = sand.u32 %s134, 1
          %s1888 = sand.u32 %s134, 1
          %s1889 = smul.addr %s1888, 128
          %s1890 = scalar_lea.vmem [#allocation4], %s1889
        $region167: #{_lambda_.7} parent=162 // pred_fallthru
          _
      $region163: #{_lambda_.7} parent=5 // pred_fallthru
        _
    $region6: #{_lambda_.7} parent=1 // loop_footer
      %s14 = sadd.s32 1, %s10
    $region7: #{_lambda_.7} parent=1 // loop_footer_branch
      %9 = sbr.rel target = $region3
    $region8: #{_lambda_.7} parent=1 // loop_exit
      _

// kernel: _lambda_.10
$region0: #{_lambda_.10}
  #allocation0 [shape = 'u32[]', space=smem, size = 0x4, offset = 0x4, fixed_abs, tag = 'smem constant byte address 0x4 - core index']
  #allocation1 [shape = 'u32[144,128]{1,0:T(1,128)}', space=vmem, size = 0x12000, scoped, tag = 'internal scratch']
  %s0 = inlined_call_operand.vmem [shape: bf16[32,72], index: 0, kind: input, shape index: {}]
  %s1 = inlined_call_operand.vmem [shape: f32[32,1], index: 1, kind: input, shape index: {}]
  %s2 = inlined_call_operand.vmem [shape: bf16[72,512], index: 2, kind: input, shape index: {}]
  %s3 = inlined_call_operand.vmem [shape: bf16[16,512], index: 3, kind: input, shape index: {}]
  %s4 = inlined_call_operand.vmem [shape: bf16[32,512], index: 4, kind: input, shape index: {}]
  %s5 = inlined_call_operand.vmem [shape: bf16[32,512], index: 5, kind: output, shape index: {}]
  %s6 = sld [smem:[#allocation0]]
  $region201: #{_lambda_.10} parent=0
    _
  %s8 = ssub.s32 1, %s6
  %s9 = scalar_select 0, %s8, %s6
  $region1: #{_lambda_.10} parent=0
    #allocation2 [shape = 'u8[73728]{0}', space=vmem, size = 0x12000, scoped, tag = 'input window, operand 2']
    #allocation3 [shape = 'u8[16384]{0}', space=vmem, size = 0x4000, scoped, tag = 'input window, operand 3']
    #allocation4 [shape = 'u8[16384]{0}', space=vmem, size = 0x4000, scoped, tag = 'input window, operand 4']
    #allocation5 [shape = 'u8[32768]{0}', space=vmem, size = 0x8000, scoped, tag = 'output window, operand 0']
    loop: start=0, step=1, limit=4
    $region2: #{_lambda_.10} parent=1 // loop_pre_header
      _
    $region3: #{_lambda_.10} parent=1 // loop_header
      %s11 = sphi 0, %s15
      %p12 = scmp.ge.s32.totalorder %s11, 4
      %s19 = sphi 0, %s19
      %s21 = sphi 0, %s19
      %s22 = sphi 0, %s21
      %s36 = sphi 0, %s22
      %s40 = sphi 0, %s40
      %s42 = sphi 0, %s40
      %s43 = sphi 0, %s42
      %s57 = sphi 0, %s43
      %s63 = sphi 0, %s65
      %s66 = sphi 0, %s63
      %s67 = sphi 0, %s66
      %s83 = sphi 0, %s67
      %s89 = sphi 0, %s91
      %s92 = sphi 0, %s89
      %s93 = sphi 0, %s92
      %s109 = sphi 0, %s93
      %s115 = sphi 0, %s117
      %s118 = sphi 0, %s115
      %s119 = sphi 0, %s118
      %s135 = sphi 0, %s119
      %s141 = sphi 0, %s143
      %s144 = sphi 0, %s141
      %s145 = sphi 0, %s144
      %s161 = sphi 0, %s145
    $region4: #{_lambda_.10} parent=1 // loop_header_branch
      %14 = sbr.rel (%p12) target = $region8
    $region5: #{_lambda_.10} parent=1 // loop_body
      %s16 = ssub.s32 %s11, 1
      %s17 = ssub.s32 %s11, 2
      %s18 = sadd.s32 %s11, 1
      %s20 = sadd.s32 %s19, 1
      %p23 = scmp.eq.s32.totalorder %s11, 1
      %p24 = scmp.ne.s32.totalorder %s19, %s21
      %p25 = scmp.eq.s32.totalorder %s11, 0
      %p26 = por %p24, %p25
      %p27 = scmp.ne.s32.totalorder %s19, %s21
      %p28 = scmp.eq.s32.totalorder %s16, 1
      %p29 = por %p27, %p28
      %p30 = scmp.ne.s32.totalorder %s21, %s22
      %p31 = scmp.eq.s32.totalorder %s16, 0
      %p32 = por %p30, %p31
      %p33 = scmp.ne.s32.totalorder %s21, %s22
      %p34 = scmp.eq.s32.totalorder %s17, 1
      %p35 = por %p33, %p34
      %p37 = scmp.ne.s32.totalorder %s22, %s36
      %p38 = scmp.eq.s32.totalorder %s17, 0
      %p39 = por %p37, %p38
      %s41 = sadd.s32 %s40, 1
      %p44 = scmp.eq.s32.totalorder %s11, 1
      %p45 = scmp.ne.s32.totalorder %s40, %s42
      %p46 = scmp.eq.s32.totalorder %s11, 0
      %p47 = por %p45, %p46
      %p48 = scmp.ne.s32.totalorder %s40, %s42
      %p49 = scmp.eq.s32.totalorder %s16, 1
      %p50 = por %p48, %p49
      %p51 = scmp.ne.s32.totalorder %s42, %s43
      %p52 = scmp.eq.s32.totalorder %s16, 0
      %p53 = por %p51, %p52
      %p54 = scmp.ne.s32.totalorder %s42, %s43
      %p55 = scmp.eq.s32.totalorder %s17, 1
      %p56 = por %p54, %p55
      %p58 = scmp.ne.s32.totalorder %s43, %s57
      %p59 = scmp.eq.s32.totalorder %s17, 0
      %p60 = por %p58, %p59
      %s61 = ssub.s32 %s11, %s18
      %p62 = scmp.eq.s32.totalorder %s61, 0
      %s64 = sadd.s32 %s63, 1
      %s65 = scalar_select %p62, %s63, %s64
      %p68 = pneg %p62
      %p69 = scmp.eq.s32.totalorder %s11, 1
      %p70 = por %p68, %p69
      %p71 = scmp.ne.s32.totalorder %s63, %s66
      %p72 = scmp.eq.s32.totalorder %s11, 0
      %p73 = por %p71, %p72
      %p74 = scmp.ne.s32.totalorder %s63, %s66
      %p75 = scmp.eq.s32.totalorder %s16, 1
      %p76 = por %p74, %p75
      %p77 = scmp.ne.s32.totalorder %s66, %s67
      %p78 = scmp.eq.s32.totalorder %s16, 0
      %p79 = por %p77, %p78
      %p80 = scmp.ne.s32.totalorder %s66, %s67
      %p81 = scmp.eq.s32.totalorder %s17, 1
      %p82 = por %p80, %p81
      %p84 = scmp.ne.s32.totalorder %s67, %s83
      %p85 = scmp.eq.s32.totalorder %s17, 0
      %p86 = por %p84, %p85
      %s87 = ssub.s32 %s11, %s18
      %p88 = scmp.eq.s32.totalorder %s87, 0
      %s90 = sadd.s32 %s89, 1
      %s91 = scalar_select %p88, %s89, %s90
      %p94 = pneg %p88
      %p95 = scmp.eq.s32.totalorder %s11, 1
      %p96 = por %p94, %p95
      %p97 = scmp.ne.s32.totalorder %s89, %s92
      %p98 = scmp.eq.s32.totalorder %s11, 0
      %p99 = por %p97, %p98
      %p100 = scmp.ne.s32.totalorder %s89, %s92
      %p101 = scmp.eq.s32.totalorder %s16, 1
      %p102 = por %p100, %p101
      %p103 = scmp.ne.s32.totalorder %s92, %s93
      %p104 = scmp.eq.s32.totalorder %s16, 0
      %p105 = por %p103, %p104
      %p106 = scmp.ne.s32.totalorder %s92, %s93
      %p107 = scmp.eq.s32.totalorder %s17, 1
      %p108 = por %p106, %p107
      %p110 = scmp.ne.s32.totalorder %s93, %s109
      %p111 = scmp.eq.s32.totalorder %s17, 0
      %p112 = por %p110, %p111
      %s113 = ssub.s32 %s11, %s18
      %p114 = scmp.eq.s32.totalorder %s113, 0
      %s116 = sadd.s32 %s115, 1
      %s117 = scalar_select %p114, %s115, %s116
      %p120 = pneg %p114
      %p121 = scmp.eq.s32.totalorder %s11, 1
      %p122 = por %p120, %p121
      %p123 = scmp.ne.s32.totalorder %s115, %s118
      %p124 = scmp.eq.s32.totalorder %s11, 0
      %p125 = por %p123, %p124
      %p126 = scmp.ne.s32.totalorder %s115, %s118
      %p127 = scmp.eq.s32.totalorder %s16, 1
      %p128 = por %p126, %p127
      %p129 = scmp.ne.s32.totalorder %s118, %s119
      %p130 = scmp.eq.s32.totalorder %s16, 0
      %p131 = por %p129, %p130
      %p132 = scmp.ne.s32.totalorder %s118, %s119
      %p133 = scmp.eq.s32.totalorder %s17, 1
      %p134 = por %p132, %p133
      %p136 = scmp.ne.s32.totalorder %s119, %s135
      %p137 = scmp.eq.s32.totalorder %s17, 0
      %p138 = por %p136, %p137
      %s139 = ssub.s32 %s11, %s18
      %p140 = scmp.eq.s32.totalorder %s139, 0
      %s142 = sadd.s32 %s141, 1
      %s143 = scalar_select %p140, %s141, %s142
      %p146 = pneg %p140
      %p147 = scmp.eq.s32.totalorder %s11, 1
      %p148 = por %p146, %p147
      %p149 = scmp.ne.s32.totalorder %s141, %s144
      %p150 = scmp.eq.s32.totalorder %s11, 0
      %p151 = por %p149, %p150
      %p152 = scmp.ne.s32.totalorder %s141, %s144
      %p153 = scmp.eq.s32.totalorder %s16, 1
      %p154 = por %p152, %p153
      %p155 = scmp.ne.s32.totalorder %s144, %s145
      %p156 = scmp.eq.s32.totalorder %s16, 0
      %p157 = por %p155, %p156
      %p158 = scmp.ne.s32.totalorder %s144, %s145
      %p159 = scmp.eq.s32.totalorder %s17, 1
      %p160 = por %p158, %p159
      %p162 = scmp.ne.s32.totalorder %s145, %s161
      %p163 = scmp.eq.s32.totalorder %s17, 0
      %p164 = por %p162, %p163
      %p165 = scmp.le.s32.totalorder 1, %s11
      %p166 = scmp.lt.s32.totalorder %s11, 3
      %p167 = pnand %p165, %p166
      %p168 = pneg %p167
      // Predicated region
      $region9: #{_lambda_.10} parent=5 // pred_check
        _
      $region10: #{_lambda_.10} parent=5 // pred_check_branch
        %170 = sbr.rel (%p167) target = $region12
      $region11: #{_lambda_.10} parent=5 // pred_region
        %s171 = ssub.s32 %s11, 1
        // Predicated region
        $region13: #{_lambda_.10} parent=11 // pred_check
          %p172 = pneg %p32
        $region14: #{_lambda_.10} parent=11 // pred_check_branch
          %174 = sbr.rel (%p172) target = $region16
        $region15: #{_lambda_.10} parent=11 // pred_region
          _
        $region16: #{_lambda_.10} parent=11 // pred_fallthru
          _
        // Predicated region
        $region17: #{_lambda_.10} parent=11 // pred_check
          %p175 = pneg %p53
        $region18: #{_lambda_.10} parent=11 // pred_check_branch
          %177 = sbr.rel (%p175) target = $region20
        $region19: #{_lambda_.10} parent=11 // pred_region
          _
        $region20: #{_lambda_.10} parent=11 // pred_fallthru
          _
      $region12: #{_lambda_.10} parent=5 // pred_fallthru
        _
      %p178 = scmp.lt.s32.totalorder %s11, 2
      // Predicated region
      $region21: #{_lambda_.10} parent=5 // pred_check
        %p179 = pneg %p178
      $region22: #{_lambda_.10} parent=5 // pred_check_branch
        %181 = sbr.rel (%p179) target = $region24
      $region23: #{_lambda_.10} parent=5 // pred_region
        // Predicated region
        $region25: #{_lambda_.10} parent=23 // pred_check
          %p182 = pneg %p73
        $region26: #{_lambda_.10} parent=23 // pred_check_branch
          %184 = sbr.rel (%p182) target = $region28
        $region27: #{_lambda_.10} parent=23 // pred_region
          %s185 = sand.u32 %s63, 1
          %s186 = sand.u32 %s63, 1
          %s187 = smul.addr %s186, 72
          %s188 = scalar_lea.vmem [#allocation2], %s187
          %s189 = smul.u32 2, %s11
          %s190 = smul.addr %s189, 4
          %s191 = scalar_lea.vmem %s2, %s190
          // Predicated region
          $region29: #{_lambda_.10} parent=27 // pred_check
            _
          $region30: #{_lambda_.10} parent=27 // pred_check_branch
            %193 = sbr.rel (0) target = $region32
          $region31: #{_lambda_.10} parent=27 // pred_region
            // Predicated region
            $region33: #{_lambda_.10} parent=31 // pred_check
              _
            $region34: #{_lambda_.10} parent=31 // pred_check_branch
              %195 = sbr.rel (0) target = $region36
            $region35: #{_lambda_.10} parent=31 // pred_region
              // Predicated region
              $region48: #{_lambda_.10} parent=35 // pred_check
                _
              $region49: #{_lambda_.10} parent=35 // pred_check_branch
                %226 = sbr.rel (0) target = $region51
              $region50: #{_lambda_.10} parent=35 // pred_region
                loop: start=0, step=1, limit=1
                $region52: #{_lambda_.10} parent=50 // loop_pre_header
                  _
                $region53: #{_lambda_.10} parent=50 // loop_header
                  %s228 = sphi 0, %s232
                  %p229 = scmp.ge.s32.totalorder %s228, 1
                  %s233 = sphi %s191, %s191
                  %s234 = sphi %s188, %s188
                $region54: #{_lambda_.10} parent=50 // loop_header_branch
                  %231 = sbr.rel (%p229) target = $region58
                $region55: #{_lambda_.10} parent=50 // loop_body
                  %v235 = vld [vmem:[%s233] sm:$0xff]
                  %236 = vst [vmem:[%s234] sm:$0xff] %v235
                  %v237 = vld [vmem:[%s233 + $0x10] sm:$0xff]
                  %238 = vst [vmem:[%s234 + $0x8] sm:$0xff] %v237
                  %v239 = vld [vmem:[%s233 + $0x20] sm:$0xff]
                  %240 = vst [vmem:[%s234 + $0x10] sm:$0xff] %v239
                  %v241 = vld [vmem:[%s233 + $0x30] sm:$0xff]
                  %242 = vst [vmem:[%s234 + $0x18] sm:$0xff] %v241
                  %v243 = vld [vmem:[%s233 + $0x40] sm:$0xff]
                  %244 = vst [vmem:[%s234 + $0x20] sm:$0xff] %v243
                  %v245 = vld [vmem:[%s233 + $0x50] sm:$0xff]
                  %246 = vst [vmem:[%s234 + $0x28] sm:$0xff] %v245
                  %v247 = vld [vmem:[%s233 + $0x60] sm:$0xff]
                  %248 = vst [vmem:[%s234 + $0x30] sm:$0xff] %v247
                  %v249 = vld [vmem:[%s233 + $0x70] sm:$0xff]
                  %250 = vst [vmem:[%s234 + $0x38] sm:$0xff] %v249
                  %v251 = vld [vmem:[%s233 + $0x80] sm:$0xff]
                  %252 = vst [vmem:[%s234 + $0x40] sm:$0xff] %v251
                $region56: #{_lambda_.10} parent=50 // loop_footer
                  %s232 = sadd.s32 1, %s228
                $region57: #{_lambda_.10} parent=50 // loop_footer_branch
                  %227 = sbr.rel target = $region53
                $region58: #{_lambda_.10} parent=50 // loop_exit
                  _
              $region51: #{_lambda_.10} parent=35 // pred_fallthru
                _
              // Predicated region
              $region59: #{_lambda_.10} parent=35 // pred_check
                _
              $region60: #{_lambda_.10} parent=35 // pred_check_branch
                %254 = sbr.rel target = $region62
              $region61: #{_lambda_.10} parent=35 // pred_region
                _
              $region62: #{_lambda_.10} parent=35 // pred_fallthru
                _
            $region36: #{_lambda_.10} parent=31 // pred_fallthru
              _
            // Predicated region
            $region37: #{_lambda_.10} parent=31 // pred_check
              _
            $region38: #{_lambda_.10} parent=31 // pred_check_branch
              %197 = sbr.rel target = $region40
            $region39: #{_lambda_.10} parent=31 // pred_region
              loop: start=0, step=1, limit=1
              $region41: #{_lambda_.10} parent=39 // loop_pre_header
                _
              $region42: #{_lambda_.10} parent=39 // loop_header
                %s200 = sphi 0, %s204
                %p201 = scmp.ge.s32.totalorder %s200, 1
                %s205 = sphi %s191, %s191
                %s206 = sphi %s188, %s188
              $region43: #{_lambda_.10} parent=39 // loop_header_branch
                %203 = sbr.rel (%p201) target = $region47
              $region44: #{_lambda_.10} parent=39 // loop_body
                %v207 = vld [vmem:[%s205] sm:$0xff]
                %208 = vst [vmem:[%s206] sm:$0xff] %v207
                %v209 = vld [vmem:[%s205 + $0x10] sm:$0xff]
                %210 = vst [vmem:[%s206 + $0x8] sm:$0xff] %v209
                %v211 = vld [vmem:[%s205 + $0x20] sm:$0xff]
                %212 = vst [vmem:[%s206 + $0x10] sm:$0xff] %v211
                %v213 = vld [vmem:[%s205 + $0x30] sm:$0xff]
                %214 = vst [vmem:[%s206 + $0x18] sm:$0xff] %v213
                %v215 = vld [vmem:[%s205 + $0x40] sm:$0xff]
                %216 = vst [vmem:[%s206 + $0x20] sm:$0xff] %v215
                %v217 = vld [vmem:[%s205 + $0x50] sm:$0xff]
                %218 = vst [vmem:[%s206 + $0x28] sm:$0xff] %v217
                %v219 = vld [vmem:[%s205 + $0x60] sm:$0xff]
                %220 = vst [vmem:[%s206 + $0x30] sm:$0xff] %v219
                %v221 = vld [vmem:[%s205 + $0x70] sm:$0xff]
                %222 = vst [vmem:[%s206 + $0x38] sm:$0xff] %v221
                %v223 = vld [vmem:[%s205 + $0x80] sm:$0xff]
                %224 = vst [vmem:[%s206 + $0x40] sm:$0xff] %v223
              $region45: #{_lambda_.10} parent=39 // loop_footer
                %s204 = sadd.s32 1, %s200
              $region46: #{_lambda_.10} parent=39 // loop_footer_branch
                %199 = sbr.rel target = $region42
              $region47: #{_lambda_.10} parent=39 // loop_exit
                _
            $region40: #{_lambda_.10} parent=31 // pred_fallthru
              _
          $region32: #{_lambda_.10} parent=27 // pred_fallthru
            _
          %255 = vnop
        $region28: #{_lambda_.10} parent=23 // pred_fallthru
          _
        // Predicated region
        $region63: #{_lambda_.10} parent=23 // pred_check
          %p256 = pneg %p99
        $region64: #{_lambda_.10} parent=23 // pred_check_branch
          %258 = sbr.rel (%p256) target = $region66
        $region65: #{_lambda_.10} parent=23 // pred_region
          %s259 = sand.u32 %s89, 1
          %s260 = sand.u32 %s89, 1
          %s261 = smul.addr %s260, 16
          %s262 = scalar_lea.vmem [#allocation3], %s261
          %s263 = smul.u32 2, %s11
          %s264 = smul.addr %s263, 4
          %s265 = scalar_lea.vmem %s3, %s264
          // Predicated region
          $region67: #{_lambda_.10} parent=65 // pred_check
            _
          $region68: #{_lambda_.10} parent=65 // pred_check_branch
            %267 = sbr.rel (0) target = $region70
          $region69: #{_lambda_.10} parent=65 // pred_region
            // Predicated region
            $region71: #{_lambda_.10} parent=69 // pred_check
              _
            $region72: #{_lambda_.10} parent=69 // pred_check_branch
              %269 = sbr.rel (0) target = $region74
            $region73: #{_lambda_.10} parent=69 // pred_region
              // Predicated region
              $region86: #{_lambda_.10} parent=73 // pred_check
                _
              $region87: #{_lambda_.10} parent=73 // pred_check_branch
                %286 = sbr.rel (0) target = $region89
              $region88: #{_lambda_.10} parent=73 // pred_region
                loop: start=0, step=1, limit=1
                $region90: #{_lambda_.10} parent=88 // loop_pre_header
                  _
                $region91: #{_lambda_.10} parent=88 // loop_header
                  %s288 = sphi 0, %s292
                  %p289 = scmp.ge.s32.totalorder %s288, 1
                  %s293 = sphi %s265, %s265
                  %s294 = sphi %s262, %s262
                $region92: #{_lambda_.10} parent=88 // loop_header_branch
                  %291 = sbr.rel (%p289) target = $region96
                $region93: #{_lambda_.10} parent=88 // loop_body
                  %v295 = vld [vmem:[%s293] sm:$0xff]
                  %296 = vst [vmem:[%s294] sm:$0xff] %v295
                  %v297 = vld [vmem:[%s293 + $0x10] sm:$0xff]
                  %298 = vst [vmem:[%s294 + $0x8] sm:$0xff] %v297
                $region94: #{_lambda_.10} parent=88 // loop_footer
                  %s292 = sadd.s32 1, %s288
                $region95: #{_lambda_.10} parent=88 // loop_footer_branch
                  %287 = sbr.rel target = $region91
                $region96: #{_lambda_.10} parent=88 // loop_exit
                  _
              $region89: #{_lambda_.10} parent=73 // pred_fallthru
                _
              // Predicated region
              $region97: #{_lambda_.10} parent=73 // pred_check
                _
              $region98: #{_lambda_.10} parent=73 // pred_check_branch
                %300 = sbr.rel target = $region100
              $region99: #{_lambda_.10} parent=73 // pred_region
                _
              $region100: #{_lambda_.10} parent=73 // pred_fallthru
                _
            $region74: #{_lambda_.10} parent=69 // pred_fallthru
              _
            // Predicated region
            $region75: #{_lambda_.10} parent=69 // pred_check
              _
            $region76: #{_lambda_.10} parent=69 // pred_check_branch
              %271 = sbr.rel target = $region78
            $region77: #{_lambda_.10} parent=69 // pred_region
              loop: start=0, step=1, limit=1
              $region79: #{_lambda_.10} parent=77 // loop_pre_header
                _
              $region80: #{_lambda_.10} parent=77 // loop_header
                %s274 = sphi 0, %s278
                %p275 = scmp.ge.s32.totalorder %s274, 1
                %s279 = sphi %s265, %s265
                %s280 = sphi %s262, %s262
              $region81: #{_lambda_.10} parent=77 // loop_header_branch
                %277 = sbr.rel (%p275) target = $region85
              $region82: #{_lambda_.10} parent=77 // loop_body
                %v281 = vld [vmem:[%s279] sm:$0xff]
                %282 = vst [vmem:[%s280] sm:$0xff] %v281
                %v283 = vld [vmem:[%s279 + $0x10] sm:$0xff]
                %284 = vst [vmem:[%s280 + $0x8] sm:$0xff] %v283
              $region83: #{_lambda_.10} parent=77 // loop_footer
                %s278 = sadd.s32 1, %s274
              $region84: #{_lambda_.10} parent=77 // loop_footer_branch
                %273 = sbr.rel target = $region80
              $region85: #{_lambda_.10} parent=77 // loop_exit
                _
            $region78: #{_lambda_.10} parent=69 // pred_fallthru
              _
          $region70: #{_lambda_.10} parent=65 // pred_fallthru
            _
          %301 = vnop
        $region66: #{_lambda_.10} parent=23 // pred_fallthru
          _
        // Predicated region
        $region101: #{_lambda_.10} parent=23 // pred_check
          %p302 = pneg %p125
        $region102: #{_lambda_.10} parent=23 // pred_check_branch
          %304 = sbr.rel (%p302) target = $region104
        $region103: #{_lambda_.10} parent=23 // pred_region
          %s305 = sand.u32 %s115, 1
          %s306 = sand.u32 %s115, 1
          %s307 = smul.addr %s306, 16
          %s308 = scalar_lea.vmem [#allocation4], %s307
          %s309 = smul.u32 2, %s11
          %s310 = sadd.s32 %s309, 8
          %s311 = smul.addr %s310, 4
          %s312 = scalar_lea.vmem %s4, %s311
          // Predicated region
          $region105: #{_lambda_.10} parent=103 // pred_check
            _
          $region106: #{_lambda_.10} parent=103 // pred_check_branch
            %314 = sbr.rel (0) target = $region108
          $region107: #{_lambda_.10} parent=103 // pred_region
            // Predicated region
            $region109: #{_lambda_.10} parent=107 // pred_check
              _
            $region110: #{_lambda_.10} parent=107 // pred_check_branch
              %316 = sbr.rel (0) target = $region112
            $region111: #{_lambda_.10} parent=107 // pred_region
              // Predicated region
              $region124: #{_lambda_.10} parent=111 // pred_check
                _
              $region125: #{_lambda_.10} parent=111 // pred_check_branch
                %333 = sbr.rel (0) target = $region127
              $region126: #{_lambda_.10} parent=111 // pred_region
                loop: start=0, step=1, limit=1
                $region128: #{_lambda_.10} parent=126 // loop_pre_header
                  _
                $region129: #{_lambda_.10} parent=126 // loop_header
                  %s335 = sphi 0, %s339
                  %p336 = scmp.ge.s32.totalorder %s335, 1
                  %s340 = sphi %s312, %s312
                  %s341 = sphi %s308, %s308
                $region130: #{_lambda_.10} parent=126 // loop_header_branch
                  %338 = sbr.rel (%p336) target = $region134
                $region131: #{_lambda_.10} parent=126 // loop_body
                  %v342 = vld [vmem:[%s340] sm:$0xff]
                  %343 = vst [vmem:[%s341] sm:$0xff] %v342
                  %v344 = vld [vmem:[%s340 + $0x10] sm:$0xff]
                  %345 = vst [vmem:[%s341 + $0x8] sm:$0xff] %v344
                $region132: #{_lambda_.10} parent=126 // loop_footer
                  %s339 = sadd.s32 1, %s335
                $region133: #{_lambda_.10} parent=126 // loop_footer_branch
                  %334 = sbr.rel target = $region129
                $region134: #{_lambda_.10} parent=126 // loop_exit
                  _
              $region127: #{_lambda_.10} parent=111 // pred_fallthru
                _
              // Predicated region
              $region135: #{_lambda_.10} parent=111 // pred_check
                _
              $region136: #{_lambda_.10} parent=111 // pred_check_branch
                %347 = sbr.rel target = $region138
              $region137: #{_lambda_.10} parent=111 // pred_region
                _
              $region138: #{_lambda_.10} parent=111 // pred_fallthru
                _
            $region112: #{_lambda_.10} parent=107 // pred_fallthru
              _
            // Predicated region
            $region113: #{_lambda_.10} parent=107 // pred_check
              _
            $region114: #{_lambda_.10} parent=107 // pred_check_branch
              %318 = sbr.rel target = $region116
            $region115: #{_lambda_.10} parent=107 // pred_region
              loop: start=0, step=1, limit=1
              $region117: #{_lambda_.10} parent=115 // loop_pre_header
                _
              $region118: #{_lambda_.10} parent=115 // loop_header
                %s321 = sphi 0, %s325
                %p322 = scmp.ge.s32.totalorder %s321, 1
                %s326 = sphi %s312, %s312
                %s327 = sphi %s308, %s308
              $region119: #{_lambda_.10} parent=115 // loop_header_branch
                %324 = sbr.rel (%p322) target = $region123
              $region120: #{_lambda_.10} parent=115 // loop_body
                %v328 = vld [vmem:[%s326] sm:$0xff]
                %329 = vst [vmem:[%s327] sm:$0xff] %v328
                %v330 = vld [vmem:[%s326 + $0x10] sm:$0xff]
                %331 = vst [vmem:[%s327 + $0x8] sm:$0xff] %v330
              $region121: #{_lambda_.10} parent=115 // loop_footer
                %s325 = sadd.s32 1, %s321
              $region122: #{_lambda_.10} parent=115 // loop_footer_branch
                %320 = sbr.rel target = $region118
              $region123: #{_lambda_.10} parent=115 // loop_exit
                _
            $region116: #{_lambda_.10} parent=107 // pred_fallthru
              _
          $region108: #{_lambda_.10} parent=103 // pred_fallthru
            _
          %348 = vnop
        $region104: #{_lambda_.10} parent=23 // pred_fallthru
          _
      $region24: #{_lambda_.10} parent=5 // pred_fallthru
        _
      %p349 = scmp.le.s32.totalorder 1, %s11
      %p350 = scmp.lt.s32.totalorder %s11, 3
      %p351 = pnand %p349, %p350
      %p352 = pneg %p351
      // Predicated region
      $region139: #{_lambda_.10} parent=5 // pred_check
        _
      $region140: #{_lambda_.10} parent=5 // pred_check_branch
        %354 = sbr.rel (%p351) target = $region142
      $region141: #{_lambda_.10} parent=5 // pred_region
        %s355 = ssub.s32 %s11, 1
        %s356 = sand.u32 %s66, 1
        %s357 = sand.u32 %s66, 1
        %s358 = smul.addr %s357, 72
        %s359 = scalar_lea.vmem [#allocation2], %s358
        // Predicated region
        $region143: #{_lambda_.10} parent=141 // pred_check
          %p360 = pneg %p79
        $region144: #{_lambda_.10} parent=141 // pred_check_branch
          %362 = sbr.rel (%p360) target = $region146
        $region145: #{_lambda_.10} parent=141 // pred_region
          _
        $region146: #{_lambda_.10} parent=141 // pred_fallthru
          _
        %s363 = sand.u32 %s92, 1
        %s364 = sand.u32 %s92, 1
        %s365 = smul.addr %s364, 16
        %s366 = scalar_lea.vmem [#allocation3], %s365
        // Predicated region
        $region147: #{_lambda_.10} parent=141 // pred_check
          %p367 = pneg %p105
        $region148: #{_lambda_.10} parent=141 // pred_check_branch
          %369 = sbr.rel (%p367) target = $region150
        $region149: #{_lambda_.10} parent=141 // pred_region
          _
        $region150: #{_lambda_.10} parent=141 // pred_fallthru
          _
        %s370 = sand.u32 %s118, 1
        %s371 = sand.u32 %s118, 1
        %s372 = smul.addr %s371, 16
        %s373 = scalar_lea.vmem [#allocation4], %s372
        // Predicated region
        $region151: #{_lambda_.10} parent=141 // pred_check
          %p374 = pneg %p131
        $region152: #{_lambda_.10} parent=141 // pred_check_branch
          %376 = sbr.rel (%p374) target = $region154
        $region153: #{_lambda_.10} parent=141 // pred_region
          _
        $region154: #{_lambda_.10} parent=141 // pred_fallthru
          _
        %p377 = pneg %p32
        %p378 = pneg %p29
        %p379 = pneg %p53
        %p380 = pneg %p50
        %s381 = sand.u32 %s66, 1
        %s382 = sand.u32 %s66, 1
        %s383 = smul.addr %s382, 72
        %s384 = scalar_lea.vmem [#allocation2], %s383
        %p385 = pneg %p79
        %p386 = pneg %p76
        %s387 = sand.u32 %s92, 1
        %s388 = sand.u32 %s92, 1
        %s389 = smul.addr %s388, 16
        %s390 = scalar_lea.vmem [#allocation3], %s389
        %p391 = pneg %p105
        %p392 = pneg %p102
        %s393 = sand.u32 %s118, 1
        %s394 = sand.u32 %s118, 1
        %s395 = smul.addr %s394, 16
        %s396 = scalar_lea.vmem [#allocation4], %s395
        %p397 = pneg %p131
        %p398 = pneg %p128
        %p399 = pneg %p157
        %p400 = pneg %p154
        %s401 = sand.u32 %s144, 1
        %s402 = sand.u32 %s144, 1
        %s403 = smul.addr %s402, 32
        %s404 = scalar_lea.vmem [#allocation5], %s403
        %s405 = smul.u32 2, %s16
        %s406 = smul.u32 2, %s16
        %s407 = smul.u32 2, %s16
        %s408 = smul.u32 2, %s16
        %v410 = vld [vmem:[%s0] sm:$0xf]
        %v411 = vld [vmem:[%s0 + $0x4] sm:$0xf]
        %v412 = vld [vmem:[%s0 + $0x8] sm:$0xf]
        %v413 = vld [vmem:[%s0 + $0xc] sm:$0xf]
        %v414 = vld [vmem:[%s359] sm:$0xff]
        %v415 = vld [vmem:[%s359 + $0x8] sm:$0xff]
        %v416 = vld [vmem:[%s359 + $0x10] sm:$0xff]
        %v417 = vld [vmem:[%s359 + $0x18] sm:$0xff]
        %v418 = vld [vmem:[%s359 + $0x20] sm:$0xff]
        %v419 = vld [vmem:[%s359 + $0x28] sm:$0xff]
        %v420 = vld [vmem:[%s359 + $0x30] sm:$0xff]
        %v421 = vld [vmem:[%s359 + $0x38] sm:$0xff]
        %v422 = vld [vmem:[%s359 + $0x40] sm:$0xff]
        %v423 = vld [vmem:[%s1] sm:$0xff]
        %v424 = vld [vmem:[%s1 + $0x8] sm:$0xff]
        %v425 = vld [vmem:[%s1 + $0x10] sm:$0xff]
        %v426 = vld [vmem:[%s1 + $0x18] sm:$0xff]
        %428 = vset.pattern.permute.xlu0 0
        %429 = vperm.xlu0 %428, %v423
        %v430 = vpop.permute.xlu0 %429
        %433 = vset.pattern.permute.xlu0 0
        %434 = vperm.xlu0 %433, %v424
        %v435 = vpop.permute.xlu0 %434
        %438 = vset.pattern.permute.xlu0 0
        %439 = vperm.xlu0 %438, %v425
        %v440 = vpop.permute.xlu0 %439
        %443 = vset.pattern.permute.xlu0 0
        %444 = vperm.xlu0 %443, %v426
        %v445 = vpop.permute.xlu0 %444
        %v451 = vunpack.c.l.b16 %v410
        %v452 = vunpack.c.l.b16 %v411
        %v453 = vunpack.c.l.b16 %v412
        %v454 = vunpack.c.l.b16 %v413
        %v455 = vpack.c.b16 %v452, %v451
        %v456 = vpack.c.b16 %v454, %v453
        %v466 = vunpack.c.l.b16 %v414
        %v467 = vunpack.c.h.b16 %v414
        %v468 = vunpack.c.l.b16 %v415
        %v469 = vunpack.c.h.b16 %v415
        %v470 = vunpack.c.l.b16 %v416
        %v471 = vunpack.c.h.b16 %v416
        %v472 = vunpack.c.l.b16 %v417
        %v473 = vunpack.c.h.b16 %v417
        %v474 = vunpack.c.l.b16 %v418
        %v475 = vunpack.c.h.b16 %v418
        %v476 = vunpack.c.l.b16 %v419
        %v477 = vunpack.c.h.b16 %v419
        %v478 = vunpack.c.l.b16 %v420
        %v479 = vunpack.c.h.b16 %v420
        %v480 = vunpack.c.l.b16 %v421
        %v481 = vunpack.c.h.b16 %v421
        %v482 = vunpack.c.l.b16 %v422
        %v483 = vunpack.c.h.b16 %v422
        %v484 = vpack.c.b16 %v468, %v466
        %v485 = vpack.c.b16 %v469, %v467
        %v486 = vpack.c.b16 %v472, %v470
        %v487 = vpack.c.b16 %v473, %v471
        %v488 = vpack.c.b16 %v476, %v474
        %v489 = vpack.c.b16 %v477, %v475
        %v490 = vpack.c.b16 %v480, %v478
        %v491 = vpack.c.b16 %v481, %v479
        %v492 = vpack.c.b16 %v482, %v482
        %v493 = vpack.c.b16 %v483, %v483
        %vm502 = vcmask 588800
        %v504 = vsel %vm502, %v455, 0
        %v507 = vsel %vm502, %v456, 0
        %vm509 = vcmask 1043456
        %v511 = vsel %vm509, %v492, 0
        %v514 = vsel %vm509, %v493, 0
        %516 = vmatprep.subr.bf16.mxu0 %v485
        %517 = vmatpush1.bf16.msra.mxu0 %v484
        %518 = vmatprep.subr.bf16.mxu0 %v487
        %519 = vmatpush1.bf16.msra.mxu0 %v486
        %520 = vmatprep.subr.bf16.mxu0 %v489
        %521 = vmatpush1.bf16.msra.mxu0 %v488
        %522 = vmatprep.subr.bf16.mxu0 %v491
        %523 = vmatpush1.bf16.msra.mxu0 %v490
        %524 = vmatprep.subr.bf16.mxu0 %v514
        %525 = vmatpush1.bf16.msra.mxu0 %v511
        %526 = vmatprep.subr.bf16.mxu0 0
        %527 = vmatpush1.bf16.msra.mxu0 0
        %528 = vmatprep.subr.bf16.mxu0 0
        %529 = vmatpush1.bf16.msra.mxu0 0
        %530 = vmatprep.subr.bf16.mxu0 0
        %531 = vmatpush1.bf16.msra.mxu0 0
        %532 = vmatprep.subr.bf16.mxu0 0
        %533 = vmatpush1.bf16.msra.mxu0 0
        %534 = vmatprep.subr.bf16.mxu0 0
        %535 = vmatpush1.bf16.msra.mxu0 0
        %536 = vmatprep.subr.bf16.mxu0 0
        %537 = vmatpush1.bf16.msra.mxu0 0
        %538 = vmatprep.subr.bf16.mxu0 0
        %539 = vmatpush1.bf16.msra.mxu0 0
        %540 = vmatprep.subr.bf16.mxu0 0
        %541 = vmatpush1.bf16.msra.mxu0 0
        %542 = vmatprep.subr.bf16.mxu0 0
        %543 = vmatpush1.bf16.msra.mxu0 0
        %544 = vmatprep.subr.bf16.mxu0 0
        %545 = vmatpush1.bf16.msra.mxu0 0
        %546 = vmatprep.subr.bf16.mxu0 0
        %547 = vmatpush1.bf16.msra.mxu0 0
        %548 = vmatprep.mubr.bf16.mxu0 0
        %549 = vmatmul.mubr.bf16.gmra.mrb[0].mxu0 %v504
        %v550 = vpop.f32.mrb[0].mxu0
        %v551 = vadd.f32 %v430, %v550
        %v552 = vpop.f32.mrb[0].mxu0
        %v553 = vadd.f32 %v430, %v552
        %v554 = vpop.f32.mrb[0].mxu0
        %v555 = vadd.f32 %v435, %v554
        %v556 = vpop.f32.mrb[0].mxu0
        %v557 = vadd.f32 %v435, %v556
        %558 = vmatprep.mubr.bf16.mxu0 0
        %559 = vmatmul.mubr.bf16.gmra.mrb[0].mxu0 %v507
        %v560 = vpop.f32.mrb[0].mxu0
        %v561 = vadd.f32 %v440, %v560
        %v562 = vpop.f32.mrb[0].mxu0
        %v563 = vadd.f32 %v440, %v562
        %v564 = vpop.f32.mrb[0].mxu0
        %v565 = vadd.f32 %v445, %v564
        %v566 = vpop.f32.mrb[0].mxu0
        %v567 = vadd.f32 %v445, %v566
        %568 = vdwg.mxu0
        %v569 = vld [vmem:[%s366] sm:$0xff]
        %v570 = vld [vmem:[%s366 + $0x8] sm:$0xff]
        %v571 = vunpack.c.l.bf16 %v569
        %v572 = vunpack.c.h.bf16 %v569
        %v573 = vunpack.c.l.bf16 %v570
        %v574 = vunpack.c.h.bf16 %v570
        %v575 = vadd.f32 %v551, %v571
        %v576 = vadd.f32 %v553, %v572
        %v577 = vadd.f32 %v555, %v573
        %v578 = vadd.f32 %v557, %v574
        %v579 = vmax.f32 %v575, 0.0
        %v580 = vmax.f32 %v576, 0.0
        %v581 = vmax.f32 %v577, 0.0
        %v582 = vmax.f32 %v578, 0.0
        %v583 = vpack.c.bf16 %v581, %v579
        %v584 = vpack.c.bf16 %v582, %v580
        %v587 = vunpack.c.l.b16 %v583
        %v588 = vunpack.c.l.b16 %v584
        %v589 = vunpack.c.h.b16 %v583
        %v590 = vunpack.c.h.b16 %v584
        %v591 = vpack.c.b16 %v588, %v587
        %v592 = vpack.c.b16 %v590, %v589
        %595 = vst [vmem:[%s404] sm:$0xff] %v591
        %596 = vst [vmem:[%s404 + $0x8] sm:$0xff] %v592
        %v597 = vld [vmem:[%s373] sm:$0xff]
        %v598 = vld [vmem:[%s373 + $0x8] sm:$0xff]
        %v599 = vunpack.c.l.bf16 %v597
        %v600 = vunpack.c.h.bf16 %v597
        %v601 = vunpack.c.l.bf16 %v598
        %v602 = vunpack.c.h.bf16 %v598
        %v603 = vadd.f32 %v561, %v599
        %v604 = vadd.f32 %v563, %v600
        %v605 = vadd.f32 %v565, %v601
        %v606 = vadd.f32 %v567, %v602
        %v607 = vmax.f32 %v603, 0.0
        %v608 = vmax.f32 %v604, 0.0
        %v609 = vmax.f32 %v605, 0.0
        %v610 = vmax.f32 %v606, 0.0
        %v611 = vpack.c.bf16 %v609, %v607
        %v612 = vpack.c.bf16 %v610, %v608
        %v615 = vunpack.c.l.b16 %v611
        %v616 = vunpack.c.l.b16 %v612
        %v617 = vunpack.c.h.b16 %v611
        %v618 = vunpack.c.h.b16 %v612
        %v619 = vpack.c.b16 %v616, %v615
        %v620 = vpack.c.b16 %v618, %v617
        %623 = vst [vmem:[%s404 + $0x10] sm:$0xff] %v619
        %624 = vst [vmem:[%s404 + $0x18] sm:$0xff] %v620
        %s625 = sand.u32 %s144, 1
        %s626 = sand.u32 %s144, 1
        %s627 = smul.addr %s626, 32
        %s628 = scalar_lea.vmem [#allocation5], %s627
        // Predicated region
        $region155: #{_lambda_.10} parent=141 // pred_check
          %p629 = pneg %p154
        $region156: #{_lambda_.10} parent=141 // pred_check_branch
          %631 = sbr.rel (%p629) target = $region158
        $region157: #{_lambda_.10} parent=141 // pred_region
          %s632 = smul.u32 2, %s16
          %s633 = smul.addr %s632, 4
          %s634 = scalar_lea.vmem %s5, %s633
          // Predicated region
          $region159: #{_lambda_.10} parent=157 // pred_check
            _
          $region160: #{_lambda_.10} parent=157 // pred_check_branch
            %636 = sbr.rel (0) target = $region162
          $region161: #{_lambda_.10} parent=157 // pred_region
            // Predicated region
            $region163: #{_lambda_.10} parent=161 // pred_check
              _
            $region164: #{_lambda_.10} parent=161 // pred_check_branch
              %638 = sbr.rel (0) target = $region166
            $region165: #{_lambda_.10} parent=161 // pred_region
              // Predicated region
              $region178: #{_lambda_.10} parent=165 // pred_check
                _
              $region179: #{_lambda_.10} parent=165 // pred_check_branch
                %659 = sbr.rel (0) target = $region181
              $region180: #{_lambda_.10} parent=165 // pred_region
                loop: start=0, step=1, limit=1
                $region182: #{_lambda_.10} parent=180 // loop_pre_header
                  _
                $region183: #{_lambda_.10} parent=180 // loop_header
                  %s661 = sphi 0, %s665
                  %p662 = scmp.ge.s32.totalorder %s661, 1
                  %s666 = sphi %s628, %s628
                  %s667 = sphi %s634, %s634
                $region184: #{_lambda_.10} parent=180 // loop_header_branch
                  %664 = sbr.rel (%p662) target = $region188
                $region185: #{_lambda_.10} parent=180 // loop_body
                  %v668 = vld [vmem:[%s666] sm:$0xff]
                  %669 = vst [vmem:[%s667] sm:$0xff] %v668
                  %v670 = vld [vmem:[%s666 + $0x8] sm:$0xff]
                  %671 = vst [vmem:[%s667 + $0x10] sm:$0xff] %v670
                  %v672 = vld [vmem:[%s666 + $0x10] sm:$0xff]
                  %673 = vst [vmem:[%s667 + $0x20] sm:$0xff] %v672
                  %v674 = vld [vmem:[%s666 + $0x18] sm:$0xff]
                  %675 = vst [vmem:[%s667 + $0x30] sm:$0xff] %v674
                $region186: #{_lambda_.10} parent=180 // loop_footer
                  %s665 = sadd.s32 1, %s661
                $region187: #{_lambda_.10} parent=180 // loop_footer_branch
                  %660 = sbr.rel target = $region183
                $region188: #{_lambda_.10} parent=180 // loop_exit
                  _
              $region181: #{_lambda_.10} parent=165 // pred_fallthru
                _
              // Predicated region
              $region189: #{_lambda_.10} parent=165 // pred_check
                _
              $region190: #{_lambda_.10} parent=165 // pred_check_branch
                %677 = sbr.rel target = $region192
              $region191: #{_lambda_.10} parent=165 // pred_region
                _
              $region192: #{_lambda_.10} parent=165 // pred_fallthru
                _
            $region166: #{_lambda_.10} parent=161 // pred_fallthru
              _
            // Predicated region
            $region167: #{_lambda_.10} parent=161 // pred_check
              _
            $region168: #{_lambda_.10} parent=161 // pred_check_branch
              %640 = sbr.rel target = $region170
            $region169: #{_lambda_.10} parent=161 // pred_region
              loop: start=0, step=1, limit=1
              $region171: #{_lambda_.10} parent=169 // loop_pre_header
                _
              $region172: #{_lambda_.10} parent=169 // loop_header
                %s643 = sphi 0, %s647
                %p644 = scmp.ge.s32.totalorder %s643, 1
                %s648 = sphi %s628, %s628
                %s649 = sphi %s634, %s634
              $region173: #{_lambda_.10} parent=169 // loop_header_branch
                %646 = sbr.rel (%p644) target = $region177
              $region174: #{_lambda_.10} parent=169 // loop_body
                %v650 = vld [vmem:[%s648] sm:$0xff]
                %651 = vst [vmem:[%s649] sm:$0xff] %v650
                %v652 = vld [vmem:[%s648 + $0x8] sm:$0xff]
                %653 = vst [vmem:[%s649 + $0x10] sm:$0xff] %v652
                %v654 = vld [vmem:[%s648 + $0x10] sm:$0xff]
                %655 = vst [vmem:[%s649 + $0x20] sm:$0xff] %v654
                %v656 = vld [vmem:[%s648 + $0x18] sm:$0xff]
                %657 = vst [vmem:[%s649 + $0x30] sm:$0xff] %v656
              $region175: #{_lambda_.10} parent=169 // loop_footer
                %s647 = sadd.s32 1, %s643
              $region176: #{_lambda_.10} parent=169 // loop_footer_branch
                %642 = sbr.rel target = $region172
              $region177: #{_lambda_.10} parent=169 // loop_exit
                _
            $region170: #{_lambda_.10} parent=161 // pred_fallthru
              _
          $region162: #{_lambda_.10} parent=157 // pred_fallthru
            _
          %678 = vnop
        $region158: #{_lambda_.10} parent=141 // pred_fallthru
          _
      $region142: #{_lambda_.10} parent=5 // pred_fallthru
        _
      %p679 = scmp.le.s32.totalorder 2, %s11
      // Predicated region
      $region193: #{_lambda_.10} parent=5 // pred_check
        %p680 = pneg %p679
      $region194: #{_lambda_.10} parent=5 // pred_check_branch
        %682 = sbr.rel (%p680) target = $region196
      $region195: #{_lambda_.10} parent=5 // pred_region
        %s683 = ssub.s32 %s11, 2
        // Predicated region
        $region197: #{_lambda_.10} parent=195 // pred_check
          %p684 = pneg %p160
        $region198: #{_lambda_.10} parent=195 // pred_check_branch
          %686 = sbr.rel (%p684) target = $region200
        $region199: #{_lambda_.10} parent=195 // pred_region
          %s687 = sand.u32 %s145, 1
          %s688 = sand.u32 %s145, 1
          %s689 = smul.addr %s688, 32
          %s690 = scalar_lea.vmem [#allocation5], %s689
        $region200: #{_lambda_.10} parent=195 // pred_fallthru
          _
      $region196: #{_lambda_.10} parent=5 // pred_fallthru
        _
    $region6: #{_lambda_.10} parent=1 // loop_footer
      %s15 = sadd.s32 1, %s11
    $region7: #{_lambda_.10} parent=1 // loop_footer_branch
      %10 = sbr.rel target = $region3
    $region8: #{_lambda_.10} parent=1 // loop_exit
      _

// kernel: _lambda_.11
$region0: #{_lambda_.11}
  #allocation0 [shape = 'u32[]', space=smem, size = 0x4, offset = 0x4, fixed_abs, tag = 'smem constant byte address 0x4 - core index']
  #allocation1 [shape = 'u32[144,128]{1,0:T(1,128)}', space=vmem, size = 0x12000, scoped, tag = 'internal scratch']
  %s0 = inlined_call_operand.vmem [shape: bf16[32,144], index: 0, kind: input, shape index: {}]
  %s1 = inlined_call_operand.vmem [shape: f32[32,1], index: 1, kind: input, shape index: {}]
  %s2 = inlined_call_operand.vmem [shape: bf16[144,128], index: 2, kind: input, shape index: {}]
  %s3 = inlined_call_operand.vmem [shape: bf16[32,128], index: 3, kind: input, shape index: {}]
  %s4 = inlined_call_operand.vmem [shape: f32[32,128], index: 4, kind: output, shape index: {}]
  %s5 = sld [smem:[#allocation0]]
  $region26: #{_lambda_.11} parent=0
    _
  %s7 = ssub.s32 1, %s5
  %s8 = scalar_select 0, %s7, %s5
  // Predicated region
  $region2: #{_lambda_.11} parent=0 // pred_check
    _
  $region3: #{_lambda_.11} parent=0 // pred_check_branch
    %10 = sbr.rel (0) target = $region5
  $region4: #{_lambda_.11} parent=0 // pred_region
    _
  $region5: #{_lambda_.11} parent=0 // pred_fallthru
    _
  // Predicated region
  $region6: #{_lambda_.11} parent=0 // pred_check
    _
  $region7: #{_lambda_.11} parent=0 // pred_check_branch
    %12 = sbr.rel (0) target = $region9
  $region8: #{_lambda_.11} parent=0 // pred_region
    _
  $region9: #{_lambda_.11} parent=0 // pred_fallthru
    _
  // Predicated region
  $region10: #{_lambda_.11} parent=0 // pred_check
    _
  $region11: #{_lambda_.11} parent=0 // pred_check_branch
    %14 = sbr.rel (0) target = $region13
  $region12: #{_lambda_.11} parent=0 // pred_region
    _
  $region13: #{_lambda_.11} parent=0 // pred_fallthru
    _
  // Predicated region
  $region14: #{_lambda_.11} parent=0 // pred_check
    _
  $region15: #{_lambda_.11} parent=0 // pred_check_branch
    %16 = sbr.rel (0) target = $region17
  $region16: #{_lambda_.11} parent=0 // pred_region
    _
  $region17: #{_lambda_.11} parent=0 // pred_fallthru
    _
  %v18 = vld [vmem:[%s0] sm:$0xff]
  %v19 = vld [vmem:[%s0 + $0x8] sm:$0xff]
  %v20 = vld [vmem:[%s0 + $0x10] sm:$0xff]
  %v21 = vld [vmem:[%s0 + $0x18] sm:$0xff]
  %v22 = vld [vmem:[%s2] sm:$0xf]
  %v23 = vld [vmem:[%s2 + $0x4] sm:$0xf]
  %v24 = vld [vmem:[%s2 + $0x8] sm:$0xf]
  %v25 = vld [vmem:[%s2 + $0xc] sm:$0xf]
  %v26 = vld [vmem:[%s2 + $0x10] sm:$0xf]
  %v27 = vld [vmem:[%s2 + $0x14] sm:$0xf]
  %v28 = vld [vmem:[%s2 + $0x18] sm:$0xf]
  %v29 = vld [vmem:[%s2 + $0x1c] sm:$0xf]
  %v30 = vld [vmem:[%s2 + $0x20] sm:$0xf]
  %v31 = vld [vmem:[%s2 + $0x24] sm:$0xf]
  %v32 = vld [vmem:[%s2 + $0x28] sm:$0xf]
  %v33 = vld [vmem:[%s2 + $0x2c] sm:$0xf]
  %v34 = vld [vmem:[%s2 + $0x30] sm:$0xf]
  %v35 = vld [vmem:[%s2 + $0x34] sm:$0xf]
  %v36 = vld [vmem:[%s2 + $0x38] sm:$0xf]
  %v37 = vld [vmem:[%s2 + $0x3c] sm:$0xf]
  %v38 = vld [vmem:[%s2 + $0x40] sm:$0xf]
  %v39 = vld [vmem:[%s2 + $0x44] sm:$0xf]
  %v40 = vld [vmem:[%s1] sm:$0xff]
  %v41 = vld [vmem:[%s1 + $0x8] sm:$0xff]
  %v42 = vld [vmem:[%s1 + $0x10] sm:$0xff]
  %v43 = vld [vmem:[%s1 + $0x18] sm:$0xff]
  %45 = vset.pattern.permute.xlu0 0
  %46 = vperm.xlu0 %45, %v40
  %v47 = vpop.permute.xlu0 %46
  %50 = vset.pattern.permute.xlu0 0
  %51 = vperm.xlu0 %50, %v41
  %v52 = vpop.permute.xlu0 %51
  %55 = vset.pattern.permute.xlu0 0
  %56 = vperm.xlu0 %55, %v42
  %v57 = vpop.permute.xlu0 %56
  %60 = vset.pattern.permute.xlu0 0
  %61 = vperm.xlu0 %60, %v43
  %v62 = vpop.permute.xlu0 %61
  %v68 = vunpack.c.l.b16 %v18
  %v69 = vunpack.c.h.b16 %v18
  %v70 = vunpack.c.l.b16 %v19
  %v71 = vunpack.c.h.b16 %v19
  %v72 = vunpack.c.l.b16 %v20
  %v73 = vunpack.c.h.b16 %v20
  %v74 = vunpack.c.l.b16 %v21
  %v75 = vunpack.c.h.b16 %v21
  %v76 = vpack.c.b16 %v70, %v68
  %v77 = vpack.c.b16 %v71, %v69
  %v78 = vpack.c.b16 %v74, %v72
  %v79 = vpack.c.b16 %v75, %v73
  %v100 = vunpack.c.l.b16 %v22
  %v101 = vunpack.c.l.b16 %v23
  %v102 = vunpack.c.l.b16 %v24
  %v103 = vunpack.c.l.b16 %v25
  %v104 = vunpack.c.l.b16 %v26
  %v105 = vunpack.c.l.b16 %v27
  %v106 = vunpack.c.l.b16 %v28
  %v107 = vunpack.c.l.b16 %v29
  %v108 = vunpack.c.l.b16 %v30
  %v109 = vunpack.c.l.b16 %v31
  %v110 = vunpack.c.l.b16 %v32
  %v111 = vunpack.c.l.b16 %v33
  %v112 = vunpack.c.l.b16 %v34
  %v113 = vunpack.c.l.b16 %v35
  %v114 = vunpack.c.l.b16 %v36
  %v115 = vunpack.c.l.b16 %v37
  %v116 = vunpack.c.l.b16 %v38
  %v117 = vunpack.c.l.b16 %v39
  %v118 = vpack.c.b16 %v101, %v100
  %v119 = vpack.c.b16 %v103, %v102
  %v120 = vpack.c.b16 %v105, %v104
  %v121 = vpack.c.b16 %v107, %v106
  %v122 = vpack.c.b16 %v109, %v108
  %v123 = vpack.c.b16 %v111, %v110
  %v124 = vpack.c.b16 %v113, %v112
  %v125 = vpack.c.b16 %v115, %v114
  %v126 = vpack.c.b16 %v117, %v116
  %vm136 = vcmask 130048
  %v138 = vsel %vm136, %v77, 0
  %v141 = vsel %vm136, %v79, 0
  %143 = vmatprep.subr.bf16.mxu0 0
  %144 = vmatpush1.bf16.msra.mxu0 %v118
  %145 = vmatprep.subr.bf16.mxu0 0
  %146 = vmatpush1.bf16.msra.mxu0 %v119
  %147 = vmatprep.subr.bf16.mxu0 0
  %148 = vmatpush1.bf16.msra.mxu0 %v120
  %149 = vmatprep.subr.bf16.mxu0 0
  %150 = vmatpush1.bf16.msra.mxu0 %v121
  %151 = vmatprep.subr.bf16.mxu0 0
  %152 = vmatpush1.bf16.msra.mxu0 %v122
  %153 = vmatprep.subr.bf16.mxu0 0
  %154 = vmatpush1.bf16.msra.mxu0 %v123
  %155 = vmatprep.subr.bf16.mxu0 0
  %156 = vmatpush1.bf16.msra.mxu0 %v124
  %157 = vmatprep.subr.bf16.mxu0 0
  %158 = vmatpush1.bf16.msra.mxu0 %v125
  %159 = vmatprep.subr.bf16.mxu0 0
  %160 = vmatpush1.bf16.msra.mxu0 %v126
  %161 = vmatprep.subr.bf16.mxu0 0
  %162 = vmatpush1.bf16.msra.mxu0 0
  %163 = vmatprep.subr.bf16.mxu0 0
  %164 = vmatpush1.bf16.msra.mxu0 0
  %165 = vmatprep.subr.bf16.mxu0 0
  %166 = vmatpush1.bf16.msra.mxu0 0
  %167 = vmatprep.subr.bf16.mxu0 0
  %168 = vmatpush1.bf16.msra.mxu0 0
  %169 = vmatprep.subr.bf16.mxu0 0
  %170 = vmatpush1.bf16.msra.mxu0 0
  %171 = vmatprep.subr.bf16.mxu0 0
  %172 = vmatpush1.bf16.msra.mxu0 0
  %173 = vmatprep.subr.bf16.mxu0 0
  %174 = vmatpush1.bf16.msra.mxu0 0
  %175 = vmatprep.mubr.bf16.mxu0 %v138
  %176 = vmatmul.mubr.bf16.gmra.mrb[0].mxu0 %v76
  %v177 = vpop.f32.mrb[0].mxu0
  %v178 = vadd.f32 %v47, %v177
  %v179 = vpop.f32.mrb[0].mxu0
  %v180 = vpop.f32.mrb[0].mxu0
  %v181 = vadd.f32 %v52, %v180
  %v182 = vpop.f32.mrb[0].mxu0
  %183 = vmatprep.mubr.bf16.mxu0 %v141
  %184 = vmatmul.mubr.bf16.gmra.mrb[0].mxu0 %v78
  %v185 = vpop.f32.mrb[0].mxu0
  %v186 = vadd.f32 %v57, %v185
  %v187 = vpop.f32.mrb[0].mxu0
  %v188 = vpop.f32.mrb[0].mxu0
  %v189 = vadd.f32 %v62, %v188
  %v190 = vpop.f32.mrb[0].mxu0
  %191 = vdwg.mxu0
  %v192 = vld [vmem:[%s3] sm:$0xf]
  %v193 = vld [vmem:[%s3 + $0x4] sm:$0xf]
  %v194 = vld [vmem:[%s3 + $0x8] sm:$0xf]
  %v195 = vld [vmem:[%s3 + $0xc] sm:$0xf]
  %v196 = vunpack.c.l.bf16 %v192
  %v197 = vunpack.c.l.bf16 %v193
  %v198 = vunpack.c.l.bf16 %v194
  %v199 = vunpack.c.l.bf16 %v195
  %v200 = vadd.f32 %v178, %v196
  %v201 = vadd.f32 %v181, %v197
  %v202 = vadd.f32 %v186, %v198
  %v203 = vadd.f32 %v189, %v199
  %v204 = vmax.f32 %v200, 0.0
  %v205 = vmax.f32 %v201, 0.0
  %v206 = vmax.f32 %v202, 0.0
  %v207 = vmax.f32 %v203, 0.0
  %208 = vst [vmem:[%s4] sm:$0xff] %v204
  %209 = vst [vmem:[%s4 + $0x8] sm:$0xff] %v205
  %210 = vst [vmem:[%s4 + $0x10] sm:$0xff] %v206
  %211 = vst [vmem:[%s4 + $0x18] sm:$0xff] %v207
  // Predicated region
  $region18: #{_lambda_.11} parent=0 // pred_check
    _
  $region19: #{_lambda_.11} parent=0 // pred_check_branch
    %213 = sbr.rel (0) target = $region21
  $region20: #{_lambda_.11} parent=0 // pred_region
    _
  $region21: #{_lambda_.11} parent=0 // pred_fallthru
    _
  // Predicated region
  $region22: #{_lambda_.11} parent=0 // pred_check
    _
  $region23: #{_lambda_.11} parent=0 // pred_check_branch
    %215 = sbr.rel (0) target = $region25
  $region24: #{_lambda_.11} parent=0 // pred_region
    _
  $region25: #{_lambda_.11} parent=0 // pred_fallthru
    _

// kernel: _lambda_.8
$region0: #{_lambda_.8}
  #allocation0 [shape = 'u32[]', space=smem, size = 0x4, offset = 0x4, fixed_abs, tag = 'smem constant byte address 0x4 - core index']
  #allocation1 [shape = 'u32[144,128]{1,0:T(1,128)}', space=vmem, size = 0x12000, scoped, tag = 'internal scratch']
  %s0 = inlined_call_operand.vmem [shape: bf16[8,16], index: 0, kind: input, shape index: {}]
  %s1 = inlined_call_operand.vmem [shape: f32[8,1], index: 1, kind: input, shape index: {}]
  %s2 = inlined_call_operand.vmem [shape: bf16[32,512], index: 2, kind: input, shape index: {}]
  %s3 = inlined_call_operand.vmem [shape: bf16[8,512], index: 3, kind: output, shape index: {}]
  %s4 = sld [smem:[#allocation0]]
  $region83: #{_lambda_.8} parent=0
    _
  %s6 = ssub.s32 1, %s4
  %s7 = scalar_select 0, %s6, %s4
  $region1: #{_lambda_.8} parent=0
    #allocation2 [shape = 'u8[16384]{0}', space=vmem, size = 0x4000, scoped, tag = 'input window, operand 2']
    loop: start=0, step=1, limit=4
    $region2: #{_lambda_.8} parent=1 // loop_pre_header
      _
    $region3: #{_lambda_.8} parent=1 // loop_header
      %s9 = sphi 0, %s13
      %p10 = scmp.ge.s32.totalorder %s9, 4
      %s17 = sphi 0, %s17
      %s19 = sphi 0, %s17
      %s20 = sphi 0, %s19
      %s34 = sphi 0, %s20
      %s38 = sphi 0, %s38
      %s40 = sphi 0, %s38
      %s41 = sphi 0, %s40
      %s55 = sphi 0, %s41
      %s61 = sphi 0, %s63
      %s64 = sphi 0, %s61
      %s65 = sphi 0, %s64
      %s81 = sphi 0, %s65
      %s87 = sphi 0, %s89
      %s90 = sphi 0, %s87
      %s91 = sphi 0, %s90
      %s107 = sphi 0, %s91
    $region4: #{_lambda_.8} parent=1 // loop_header_branch
      %12 = sbr.rel (%p10) target = $region8
    $region5: #{_lambda_.8} parent=1 // loop_body
      %s14 = ssub.s32 %s9, 1
      %s15 = ssub.s32 %s9, 2
      %s16 = sadd.s32 %s9, 1
      %s18 = sadd.s32 %s17, 1
      %p21 = scmp.eq.s32.totalorder %s9, 1
      %p22 = scmp.ne.s32.totalorder %s17, %s19
      %p23 = scmp.eq.s32.totalorder %s9, 0
      %p24 = por %p22, %p23
      %p25 = scmp.ne.s32.totalorder %s17, %s19
      %p26 = scmp.eq.s32.totalorder %s14, 1
      %p27 = por %p25, %p26
      %p28 = scmp.ne.s32.totalorder %s19, %s20
      %p29 = scmp.eq.s32.totalorder %s14, 0
      %p30 = por %p28, %p29
      %p31 = scmp.ne.s32.totalorder %s19, %s20
      %p32 = scmp.eq.s32.totalorder %s15, 1
      %p33 = por %p31, %p32
      %p35 = scmp.ne.s32.totalorder %s20, %s34
      %p36 = scmp.eq.s32.totalorder %s15, 0
      %p37 = por %p35, %p36
      %s39 = sadd.s32 %s38, 1
      %p42 = scmp.eq.s32.totalorder %s9, 1
      %p43 = scmp.ne.s32.totalorder %s38, %s40
      %p44 = scmp.eq.s32.totalorder %s9, 0
      %p45 = por %p43, %p44
      %p46 = scmp.ne.s32.totalorder %s38, %s40
      %p47 = scmp.eq.s32.totalorder %s14, 1
      %p48 = por %p46, %p47
      %p49 = scmp.ne.s32.totalorder %s40, %s41
      %p50 = scmp.eq.s32.totalorder %s14, 0
      %p51 = por %p49, %p50
      %p52 = scmp.ne.s32.totalorder %s40, %s41
      %p53 = scmp.eq.s32.totalorder %s15, 1
      %p54 = por %p52, %p53
      %p56 = scmp.ne.s32.totalorder %s41, %s55
      %p57 = scmp.eq.s32.totalorder %s15, 0
      %p58 = por %p56, %p57
      %s59 = ssub.s32 %s9, %s16
      %p60 = scmp.eq.s32.totalorder %s59, 0
      %s62 = sadd.s32 %s61, 1
      %s63 = scalar_select %p60, %s61, %s62
      %p66 = pneg %p60
      %p67 = scmp.eq.s32.totalorder %s9, 1
      %p68 = por %p66, %p67
      %p69 = scmp.ne.s32.totalorder %s61, %s64
      %p70 = scmp.eq.s32.totalorder %s9, 0
      %p71 = por %p69, %p70
      %p72 = scmp.ne.s32.totalorder %s61, %s64
      %p73 = scmp.eq.s32.totalorder %s14, 1
      %p74 = por %p72, %p73
      %p75 = scmp.ne.s32.totalorder %s64, %s65
      %p76 = scmp.eq.s32.totalorder %s14, 0
      %p77 = por %p75, %p76
      %p78 = scmp.ne.s32.totalorder %s64, %s65
      %p79 = scmp.eq.s32.totalorder %s15, 1
      %p80 = por %p78, %p79
      %p82 = scmp.ne.s32.totalorder %s65, %s81
      %p83 = scmp.eq.s32.totalorder %s15, 0
      %p84 = por %p82, %p83
      %s85 = ssub.s32 %s9, %s16
      %p86 = scmp.eq.s32.totalorder %s85, 0
      %s88 = sadd.s32 %s87, 1
      %s89 = scalar_select %p86, %s87, %s88
      %p92 = pneg %p86
      %p93 = scmp.eq.s32.totalorder %s9, 1
      %p94 = por %p92, %p93
      %p95 = scmp.ne.s32.totalorder %s87, %s90
      %p96 = scmp.eq.s32.totalorder %s9, 0
      %p97 = por %p95, %p96
      %p98 = scmp.ne.s32.totalorder %s87, %s90
      %p99 = scmp.eq.s32.totalorder %s14, 1
      %p100 = por %p98, %p99
      %p101 = scmp.ne.s32.totalorder %s90, %s91
      %p102 = scmp.eq.s32.totalorder %s14, 0
      %p103 = por %p101, %p102
      %p104 = scmp.ne.s32.totalorder %s90, %s91
      %p105 = scmp.eq.s32.totalorder %s15, 1
      %p106 = por %p104, %p105
      %p108 = scmp.ne.s32.totalorder %s91, %s107
      %p109 = scmp.eq.s32.totalorder %s15, 0
      %p110 = por %p108, %p109
      %p111 = scmp.le.s32.totalorder 1, %s9
      %p112 = scmp.lt.s32.totalorder %s9, 3
      %p113 = pnand %p111, %p112
      %p114 = pneg %p113
      // Predicated region
      $region9: #{_lambda_.8} parent=5 // pred_check
        _
      $region10: #{_lambda_.8} parent=5 // pred_check_branch
        %116 = sbr.rel (%p113) target = $region12
      $region11: #{_lambda_.8} parent=5 // pred_region
        %s117 = ssub.s32 %s9, 1
        // Predicated region
        $region13: #{_lambda_.8} parent=11 // pred_check
          %p118 = pneg %p30
        $region14: #{_lambda_.8} parent=11 // pred_check_branch
          %120 = sbr.rel (%p118) target = $region16
        $region15: #{_lambda_.8} parent=11 // pred_region
          _
        $region16: #{_lambda_.8} parent=11 // pred_fallthru
          _
        // Predicated region
        $region17: #{_lambda_.8} parent=11 // pred_check
          %p121 = pneg %p51
        $region18: #{_lambda_.8} parent=11 // pred_check_branch
          %123 = sbr.rel (%p121) target = $region20
        $region19: #{_lambda_.8} parent=11 // pred_region
          _
        $region20: #{_lambda_.8} parent=11 // pred_fallthru
          _
      $region12: #{_lambda_.8} parent=5 // pred_fallthru
        _
      %p124 = scmp.lt.s32.totalorder %s9, 2
      // Predicated region
      $region21: #{_lambda_.8} parent=5 // pred_check
        %p125 = pneg %p124
      $region22: #{_lambda_.8} parent=5 // pred_check_branch
        %127 = sbr.rel (%p125) target = $region24
      $region23: #{_lambda_.8} parent=5 // pred_region
        // Predicated region
        $region25: #{_lambda_.8} parent=23 // pred_check
          %p128 = pneg %p71
        $region26: #{_lambda_.8} parent=23 // pred_check_branch
          %130 = sbr.rel (%p128) target = $region28
        $region27: #{_lambda_.8} parent=23 // pred_region
          %s131 = sand.u32 %s61, 1
          %s132 = sand.u32 %s61, 1
          %s133 = smul.addr %s132, 16
          %s134 = scalar_lea.vmem [#allocation2], %s133
          %s135 = smul.u32 2, %s9
          %s136 = smul.addr %s135, 4
          %s137 = scalar_lea.vmem %s2, %s136
          // Predicated region
          $region29: #{_lambda_.8} parent=27 // pred_check
            _
          $region30: #{_lambda_.8} parent=27 // pred_check_branch
            %139 = sbr.rel (0) target = $region32
          $region31: #{_lambda_.8} parent=27 // pred_region
            // Predicated region
            $region33: #{_lambda_.8} parent=31 // pred_check
              _
            $region34: #{_lambda_.8} parent=31 // pred_check_branch
              %141 = sbr.rel (0) target = $region36
            $region35: #{_lambda_.8} parent=31 // pred_region
              // Predicated region
              $region48: #{_lambda_.8} parent=35 // pred_check
                _
              $region49: #{_lambda_.8} parent=35 // pred_check_branch
                %158 = sbr.rel (0) target = $region51
              $region50: #{_lambda_.8} parent=35 // pred_region
                loop: start=0, step=1, limit=1
                $region52: #{_lambda_.8} parent=50 // loop_pre_header
                  _
                $region53: #{_lambda_.8} parent=50 // loop_header
                  %s160 = sphi 0, %s164
                  %p161 = scmp.ge.s32.totalorder %s160, 1
                  %s165 = sphi %s137, %s137
                  %s166 = sphi %s134, %s134
                $region54: #{_lambda_.8} parent=50 // loop_header_branch
                  %163 = sbr.rel (%p161) target = $region58
                $region55: #{_lambda_.8} parent=50 // loop_body
                  %v167 = vld [vmem:[%s165] sm:$0xff]
                  %168 = vst [vmem:[%s166] sm:$0xff] %v167
                  %v169 = vld [vmem:[%s165 + $0x10] sm:$0xff]
                  %170 = vst [vmem:[%s166 + $0x8] sm:$0xff] %v169
                $region56: #{_lambda_.8} parent=50 // loop_footer
                  %s164 = sadd.s32 1, %s160
                $region57: #{_lambda_.8} parent=50 // loop_footer_branch
                  %159 = sbr.rel target = $region53
                $region58: #{_lambda_.8} parent=50 // loop_exit
                  _
              $region51: #{_lambda_.8} parent=35 // pred_fallthru
                _
              // Predicated region
              $region59: #{_lambda_.8} parent=35 // pred_check
                _
              $region60: #{_lambda_.8} parent=35 // pred_check_branch
                %172 = sbr.rel target = $region62
              $region61: #{_lambda_.8} parent=35 // pred_region
                _
              $region62: #{_lambda_.8} parent=35 // pred_fallthru
                _
            $region36: #{_lambda_.8} parent=31 // pred_fallthru
              _
            // Predicated region
            $region37: #{_lambda_.8} parent=31 // pred_check
              _
            $region38: #{_lambda_.8} parent=31 // pred_check_branch
              %143 = sbr.rel target = $region40
            $region39: #{_lambda_.8} parent=31 // pred_region
              loop: start=0, step=1, limit=1
              $region41: #{_lambda_.8} parent=39 // loop_pre_header
                _
              $region42: #{_lambda_.8} parent=39 // loop_header
                %s146 = sphi 0, %s150
                %p147 = scmp.ge.s32.totalorder %s146, 1
                %s151 = sphi %s137, %s137
                %s152 = sphi %s134, %s134
              $region43: #{_lambda_.8} parent=39 // loop_header_branch
                %149 = sbr.rel (%p147) target = $region47
              $region44: #{_lambda_.8} parent=39 // loop_body
                %v153 = vld [vmem:[%s151] sm:$0xff]
                %154 = vst [vmem:[%s152] sm:$0xff] %v153
                %v155 = vld [vmem:[%s151 + $0x10] sm:$0xff]
                %156 = vst [vmem:[%s152 + $0x8] sm:$0xff] %v155
              $region45: #{_lambda_.8} parent=39 // loop_footer
                %s150 = sadd.s32 1, %s146
              $region46: #{_lambda_.8} parent=39 // loop_footer_branch
                %145 = sbr.rel target = $region42
              $region47: #{_lambda_.8} parent=39 // loop_exit
                _
            $region40: #{_lambda_.8} parent=31 // pred_fallthru
              _
          $region32: #{_lambda_.8} parent=27 // pred_fallthru
            _
          %173 = vnop
        $region28: #{_lambda_.8} parent=23 // pred_fallthru
          _
      $region24: #{_lambda_.8} parent=5 // pred_fallthru
        _
      %p174 = scmp.le.s32.totalorder 1, %s9
      %p175 = scmp.lt.s32.totalorder %s9, 3
      %p176 = pnand %p174, %p175
      %p177 = pneg %p176
      // Predicated region
      $region63: #{_lambda_.8} parent=5 // pred_check
        _
      $region64: #{_lambda_.8} parent=5 // pred_check_branch
        %179 = sbr.rel (%p176) target = $region66
      $region65: #{_lambda_.8} parent=5 // pred_region
        %s180 = ssub.s32 %s9, 1
        %s181 = sand.u32 %s64, 1
        %s182 = sand.u32 %s64, 1
        %s183 = smul.addr %s182, 16
        %s184 = scalar_lea.vmem [#allocation2], %s183
        // Predicated region
        $region67: #{_lambda_.8} parent=65 // pred_check
          %p185 = pneg %p77
        $region68: #{_lambda_.8} parent=65 // pred_check_branch
          %187 = sbr.rel (%p185) target = $region70
        $region69: #{_lambda_.8} parent=65 // pred_region
          _
        $region70: #{_lambda_.8} parent=65 // pred_fallthru
          _
        %p188 = pneg %p30
        %p189 = pneg %p27
        %p190 = pneg %p51
        %p191 = pneg %p48
        %s192 = sand.u32 %s64, 1
        %s193 = sand.u32 %s64, 1
        %s194 = smul.addr %s193, 16
        %s195 = scalar_lea.vmem [#allocation2], %s194
        %p196 = pneg %p77
        %p197 = pneg %p74
        %p198 = pneg %p103
        %p199 = pneg %p100
        %s200 = smul.u32 2, %s14
        %p201 = scmp.lt.s32.totalorder %s200, 3
        %s202 = scalar_select %p201, %s200, 3
        %s203 = smul.addr %s202, 4
        %s204 = scalar_lea.vmem %s3, %s203
        %s205 = smul.u32 2, %s14
        %s206 = smul.u32 2, %s14
        %p207 = scmp.lt.s32.totalorder %s206, 3
        %s208 = scalar_select %p207, %s206, 3
        %s209 = smul.addr %s208, 4
        %s210 = scalar_lea.vmem %s3, %s209
        %s211 = smul.u32 2, %s14
        %v213 = vld [vmem:[%s0] sm:$0xf]
        %v214 = vld [vmem:[%s184] sm:$0xff]
        %v215 = vld [vmem:[%s184 + $0x8] sm:$0xff]
        %v216 = vld [vmem:[%s1] sm:$0xff]
        %218 = vset.pattern.permute.xlu0 0
        %219 = vperm.xlu0 %218, %v216
        %v220 = vpop.permute.xlu0 %219
        %v224 = vunpack.c.l.b16 %v214
        %v225 = vunpack.c.h.b16 %v214
        %v226 = vunpack.c.l.b16 %v215
        %v227 = vunpack.c.h.b16 %v215
        %v228 = vpack.c.b16 %v226, %v224
        %v229 = vpack.c.b16 %v227, %v225
        %vm232 = vcmask 130048
        %v234 = vsel %vm232, %v213, 0
        %236 = vmatprep.subr.bf16.mxu0 %v229
        %237 = vmatpush1.bf16.msra.mxu0 %v228
        %238 = vmatprep.subr.bf16.mxu0 0
        %239 = vmatpush1.bf16.msra.mxu0 0
        %240 = vmatprep.subr.bf16.mxu0 0
        %241 = vmatpush1.bf16.msra.mxu0 0
        %242 = vmatprep.subr.bf16.mxu0 0
        %243 = vmatpush1.bf16.msra.mxu0 0
        %244 = vmatprep.subr.bf16.mxu0 0
        %245 = vmatpush1.bf16.msra.mxu0 0
        %246 = vmatprep.subr.bf16.mxu0 0
        %247 = vmatpush1.bf16.msra.mxu0 0
        %248 = vmatprep.subr.bf16.mxu0 0
        %249 = vmatpush1.bf16.msra.mxu0 0
        %250 = vmatprep.subr.bf16.mxu0 0
        %251 = vmatpush1.bf16.msra.mxu0 0
        %252 = vmatprep.subr.bf16.mxu0 0
        %253 = vmatpush1.bf16.msra.mxu0 0
        %254 = vmatprep.subr.bf16.mxu0 0
        %255 = vmatpush1.bf16.msra.mxu0 0
        %256 = vmatprep.subr.bf16.mxu0 0
        %257 = vmatpush1.bf16.msra.mxu0 0
        %258 = vmatprep.subr.bf16.mxu0 0
        %259 = vmatpush1.bf16.msra.mxu0 0
        %260 = vmatprep.subr.bf16.mxu0 0
        %261 = vmatpush1.bf16.msra.mxu0 0
        %262 = vmatprep.subr.bf16.mxu0 0
        %263 = vmatpush1.bf16.msra.mxu0 0
        %264 = vmatprep.subr.bf16.mxu0 0
        %265 = vmatpush1.bf16.msra.mxu0 0
        %266 = vmatprep.subr.bf16.mxu0 0
        %267 = vmatpush1.bf16.msra.mxu0 0
        %268 = vmatprep.mubr.bf16.mxu0 0
        %269 = vmatmul.mubr.bf16.gmra.mrb[0].mxu0 %v234
        %v270 = vpop.f32.mrb[0].mxu0
        %v271 = vadd.f32 %v220, %v270
        %v272 = vpop.f32.mrb[0].mxu0
        %v273 = vadd.f32 %v220, %v272
        %v274 = vpop.f32.mrb[0].mxu0
        %v275 = vpop.f32.mrb[0].mxu0
        %276 = vdwg.mxu0
        %v277 = vpack.c.bf16 %v271, %v271
        %v278 = vpack.c.bf16 %v273, %v273
        %v281 = vunpack.c.l.b16 %v277
        %v282 = vunpack.c.l.b16 %v278
        %v283 = vpack.c.b16 %v282, %v281
        %285 = vst [vmem:[%s210] sm:$0xff] %v283
        %s286 = smul.u32 2, %s14
        %p287 = scmp.lt.s32.totalorder %s286, 3
        %s288 = scalar_select %p287, %s286, 3
        %s289 = smul.addr %s288, 4
        %s290 = scalar_lea.vmem %s3, %s289
        // Predicated region
        $region71: #{_lambda_.8} parent=65 // pred_check
          %p291 = pneg %p100
        $region72: #{_lambda_.8} parent=65 // pred_check_branch
          %293 = sbr.rel (%p291) target = $region74
        $region73: #{_lambda_.8} parent=65 // pred_region
          %s294 = smul.u32 2, %s14
        $region74: #{_lambda_.8} parent=65 // pred_fallthru
          _
      $region66: #{_lambda_.8} parent=5 // pred_fallthru
        _
      %p295 = scmp.le.s32.totalorder 2, %s9
      // Predicated region
      $region75: #{_lambda_.8} parent=5 // pred_check
        %p296 = pneg %p295
      $region76: #{_lambda_.8} parent=5 // pred_check_branch
        %298 = sbr.rel (%p296) target = $region78
      $region77: #{_lambda_.8} parent=5 // pred_region
        %s299 = ssub.s32 %s9, 2
        // Predicated region
        $region79: #{_lambda_.8} parent=77 // pred_check
          %p300 = pneg %p106
        $region80: #{_lambda_.8} parent=77 // pred_check_branch
          %302 = sbr.rel (%p300) target = $region82
        $region81: #{_lambda_.8} parent=77 // pred_region
          %s303 = smul.u32 2, %s15
          %p304 = scmp.lt.s32.totalorder %s303, 3
          %s305 = scalar_select %p304, %s303, 3
          %s306 = smul.addr %s305, 4
          %s307 = scalar_lea.vmem %s3, %s306
        $region82: #{_lambda_.8} parent=77 // pred_fallthru
          _
      $region78: #{_lambda_.8} parent=5 // pred_fallthru
        _
    $region6: #{_lambda_.8} parent=1 // loop_footer
      %s13 = sadd.s32 1, %s9
    $region7: #{_lambda_.8} parent=1 // loop_footer_branch
      %8 = sbr.rel target = $region3
    $region8: #{_lambda_.8} parent=1 // loop_exit
      _

// kernel: _lambda_.9
$region0: #{_lambda_.9}
  #allocation0 [shape = 'u32[]', space=smem, size = 0x4, offset = 0x4, fixed_abs, tag = 'smem constant byte address 0x4 - core index']
  #allocation1 [shape = 'u32[144,128]{1,0:T(1,128)}', space=vmem, size = 0x12000, scoped, tag = 'internal scratch']
  %s0 = inlined_call_operand.vmem [shape: bf16[32,16], index: 0, kind: input, shape index: {}]
  %s1 = inlined_call_operand.vmem [shape: bf16[16,32], index: 1, kind: input, shape index: {}]
  %s2 = inlined_call_operand.vmem [shape: bf16[8,2,16,16], index: 2, kind: input, shape index: {}]
  %s3 = inlined_call_operand.vmem [shape: f32[2,8,32,32], index: 3, kind: input, shape index: {}]
  %s4 = inlined_call_operand.hbm [shape: f32[2,8,32,32], index: 4, kind: output, shape index: {}]
  %s5 = sld [smem:[#allocation0]]
  $region90: #{_lambda_.9} parent=0
    _
  %s7 = ssub.s32 1, %s5
  %s8 = scalar_select 0, %s7, %s5
  $region1: #{_lambda_.9} parent=0
    #allocation2 [shape = 'u8[65536]{0}', space=vmem, size = 0x10000, scoped, tag = 'input window, operand 2']
    #allocation3 [shape = 'u8[262144]{0}', space=vmem, size = 0x40000, scoped, tag = 'output window, operand 0']
    #allocation4 [shape = 's32[2]{0}', space=sflag, size = 0x8, scoped, tag = 'scoped memory for _lambda_.9']
    %9 = vsyncpa [#allocation4], 0
    %s10 = scalar_lea.sflag [#allocation4], 1
    %11 = vsyncpa %s10, 0
    loop: start=0, step=1, limit=4
    $region2: #{_lambda_.9} parent=1 // loop_pre_header
      _
    $region3: #{_lambda_.9} parent=1 // loop_header
      %s13 = sphi 0, %s17
      %p14 = scmp.ge.s32.totalorder %s13, 4
      %s21 = sphi 0, %s21
      %s23 = sphi 0, %s21
      %s24 = sphi 0, %s23
      %s38 = sphi 0, %s24
      %s42 = sphi 0, %s42
      %s44 = sphi 0, %s42
      %s45 = sphi 0, %s44
      %s59 = sphi 0, %s45
      %s65 = sphi 0, %s67
      %s68 = sphi 0, %s65
      %s69 = sphi 0, %s68
      %s85 = sphi 0, %s69
      %s91 = sphi 0, %s93
      %s94 = sphi 0, %s91
      %s95 = sphi 0, %s94
      %s111 = sphi 0, %s95
      %s117 = sphi 0, %s119
      %s120 = sphi 0, %s117
      %s121 = sphi 0, %s120
      %s137 = sphi 0, %s121
    $region4: #{_lambda_.9} parent=1 // loop_header_branch
      %16 = sbr.rel (%p14) target = $region8
    $region5: #{_lambda_.9} parent=1 // loop_body
      %s18 = ssub.s32 %s13, 1
      %s19 = ssub.s32 %s13, 2
      %s20 = sadd.s32 %s13, 1
      %s22 = sadd.s32 %s21, 1
      %p25 = scmp.eq.s32.totalorder %s13, 1
      %p26 = scmp.ne.s32.totalorder %s21, %s23
      %p27 = scmp.eq.s32.totalorder %s13, 0
      %p28 = por %p26, %p27
      %p29 = scmp.ne.s32.totalorder %s21, %s23
      %p30 = scmp.eq.s32.totalorder %s18, 1
      %p31 = por %p29, %p30
      %p32 = scmp.ne.s32.totalorder %s23, %s24
      %p33 = scmp.eq.s32.totalorder %s18, 0
      %p34 = por %p32, %p33
      %p35 = scmp.ne.s32.totalorder %s23, %s24
      %p36 = scmp.eq.s32.totalorder %s19, 1
      %p37 = por %p35, %p36
      %p39 = scmp.ne.s32.totalorder %s24, %s38
      %p40 = scmp.eq.s32.totalorder %s19, 0
      %p41 = por %p39, %p40
      %s43 = sadd.s32 %s42, 1
      %p46 = scmp.eq.s32.totalorder %s13, 1
      %p47 = scmp.ne.s32.totalorder %s42, %s44
      %p48 = scmp.eq.s32.totalorder %s13, 0
      %p49 = por %p47, %p48
      %p50 = scmp.ne.s32.totalorder %s42, %s44
      %p51 = scmp.eq.s32.totalorder %s18, 1
      %p52 = por %p50, %p51
      %p53 = scmp.ne.s32.totalorder %s44, %s45
      %p54 = scmp.eq.s32.totalorder %s18, 0
      %p55 = por %p53, %p54
      %p56 = scmp.ne.s32.totalorder %s44, %s45
      %p57 = scmp.eq.s32.totalorder %s19, 1
      %p58 = por %p56, %p57
      %p60 = scmp.ne.s32.totalorder %s45, %s59
      %p61 = scmp.eq.s32.totalorder %s19, 0
      %p62 = por %p60, %p61
      %s63 = ssub.s32 %s13, %s20
      %p64 = scmp.eq.s32.totalorder %s63, 0
      %s66 = sadd.s32 %s65, 1
      %s67 = scalar_select %p64, %s65, %s66
      %p70 = pneg %p64
      %p71 = scmp.eq.s32.totalorder %s13, 1
      %p72 = por %p70, %p71
      %p73 = scmp.ne.s32.totalorder %s65, %s68
      %p74 = scmp.eq.s32.totalorder %s13, 0
      %p75 = por %p73, %p74
      %p76 = scmp.ne.s32.totalorder %s65, %s68
      %p77 = scmp.eq.s32.totalorder %s18, 1
      %p78 = por %p76, %p77
      %p79 = scmp.ne.s32.totalorder %s68, %s69
      %p80 = scmp.eq.s32.totalorder %s18, 0
      %p81 = por %p79, %p80
      %p82 = scmp.ne.s32.totalorder %s68, %s69
      %p83 = scmp.eq.s32.totalorder %s19, 1
      %p84 = por %p82, %p83
      %p86 = scmp.ne.s32.totalorder %s69, %s85
      %p87 = scmp.eq.s32.totalorder %s19, 0
      %p88 = por %p86, %p87
      %s89 = ssub.s32 %s13, %s20
      %p90 = scmp.eq.s32.totalorder %s89, 0
      %s92 = sadd.s32 %s91, 1
      %s93 = scalar_select %p90, %s91, %s92
      %p96 = pneg %p90
      %p97 = scmp.eq.s32.totalorder %s13, 1
      %p98 = por %p96, %p97
      %p99 = scmp.ne.s32.totalorder %s91, %s94
      %p100 = scmp.eq.s32.totalorder %s13, 0
      %p101 = por %p99, %p100
      %p102 = scmp.ne.s32.totalorder %s91, %s94
      %p103 = scmp.eq.s32.totalorder %s18, 1
      %p104 = por %p102, %p103
      %p105 = scmp.ne.s32.totalorder %s94, %s95
      %p106 = scmp.eq.s32.totalorder %s18, 0
      %p107 = por %p105, %p106
      %p108 = scmp.ne.s32.totalorder %s94, %s95
      %p109 = scmp.eq.s32.totalorder %s19, 1
      %p110 = por %p108, %p109
      %p112 = scmp.ne.s32.totalorder %s95, %s111
      %p113 = scmp.eq.s32.totalorder %s19, 0
      %p114 = por %p112, %p113
      %s115 = ssub.s32 %s13, %s20
      %p116 = scmp.eq.s32.totalorder %s115, 0
      %s118 = sadd.s32 %s117, 1
      %s119 = scalar_select %p116, %s117, %s118
      %p122 = pneg %p116
      %p123 = scmp.eq.s32.totalorder %s13, 1
      %p124 = por %p122, %p123
      %p125 = scmp.ne.s32.totalorder %s117, %s120
      %p126 = scmp.eq.s32.totalorder %s13, 0
      %p127 = por %p125, %p126
      %p128 = scmp.ne.s32.totalorder %s117, %s120
      %p129 = scmp.eq.s32.totalorder %s18, 1
      %p130 = por %p128, %p129
      %p131 = scmp.ne.s32.totalorder %s120, %s121
      %p132 = scmp.eq.s32.totalorder %s18, 0
      %p133 = por %p131, %p132
      %p134 = scmp.ne.s32.totalorder %s120, %s121
      %p135 = scmp.eq.s32.totalorder %s19, 1
      %p136 = por %p134, %p135
      %p138 = scmp.ne.s32.totalorder %s121, %s137
      %p139 = scmp.eq.s32.totalorder %s19, 0
      %p140 = por %p138, %p139
      %p141 = scmp.le.s32.totalorder 1, %s13
      %p142 = scmp.lt.s32.totalorder %s13, 3
      %p143 = pnand %p141, %p142
      %p144 = pneg %p143
      // Predicated region
      $region9: #{_lambda_.9} parent=5 // pred_check
        _
      $region10: #{_lambda_.9} parent=5 // pred_check_branch
        %146 = sbr.rel (%p143) target = $region12
      $region11: #{_lambda_.9} parent=5 // pred_region
        %s147 = ssub.s32 %s13, 1
        // Predicated region
        $region13: #{_lambda_.9} parent=11 // pred_check
          %p148 = pneg %p34
        $region14: #{_lambda_.9} parent=11 // pred_check_branch
          %150 = sbr.rel (%p148) target = $region16
        $region15: #{_lambda_.9} parent=11 // pred_region
          _
        $region16: #{_lambda_.9} parent=11 // pred_fallthru
          _
        // Predicated region
        $region17: #{_lambda_.9} parent=11 // pred_check
          %p151 = pneg %p55
        $region18: #{_lambda_.9} parent=11 // pred_check_branch
          %153 = sbr.rel (%p151) target = $region20
        $region19: #{_lambda_.9} parent=11 // pred_region
          _
        $region20: #{_lambda_.9} parent=11 // pred_fallthru
          _
      $region12: #{_lambda_.9} parent=5 // pred_fallthru
        _
      %p154 = scmp.lt.s32.totalorder %s13, 2
      // Predicated region
      $region21: #{_lambda_.9} parent=5 // pred_check
        %p155 = pneg %p154
      $region22: #{_lambda_.9} parent=5 // pred_check_branch
        %157 = sbr.rel (%p155) target = $region24
      $region23: #{_lambda_.9} parent=5 // pred_region
        // Predicated region
        $region25: #{_lambda_.9} parent=23 // pred_check
          %p158 = pneg %p75
        $region26: #{_lambda_.9} parent=23 // pred_check_branch
          %160 = sbr.rel (%p158) target = $region28
        $region27: #{_lambda_.9} parent=23 // pred_region
          %s161 = sand.u32 %s65, 1
          %s162 = sand.u32 %s65, 1
          %s163 = smul.addr %s162, 64
          %s164 = scalar_lea.vmem [#allocation2], %s163
          %s165 = smul.addr %s13, 2
          %s166 = smul.addr %s165, 4
          %s167 = scalar_lea.vmem %s2, %s166
          // Predicated region
          $region29: #{_lambda_.9} parent=27 // pred_check
            _
          $region30: #{_lambda_.9} parent=27 // pred_check_branch
            %169 = sbr.rel (0) target = $region32
          $region31: #{_lambda_.9} parent=27 // pred_region
            // Predicated region
            $region33: #{_lambda_.9} parent=31 // pred_check
              _
            $region34: #{_lambda_.9} parent=31 // pred_check_branch
              %171 = sbr.rel target = $region36
            $region35: #{_lambda_.9} parent=31 // pred_region
              // Predicated region
              $region48: #{_lambda_.9} parent=35 // pred_check
                _
              $region49: #{_lambda_.9} parent=35 // pred_check_branch
                %216 = sbr.rel (0) target = $region51
              $region50: #{_lambda_.9} parent=35 // pred_region
                loop: start=0, step=1, limit=1
                $region52: #{_lambda_.9} parent=50 // loop_pre_header
                  _
                $region53: #{_lambda_.9} parent=50 // loop_header
                  %s218 = sphi 0, %s222
                  %p219 = scmp.ge.s32.totalorder %s218, 1
                  %s223 = sphi %s167, %s167
                  %s224 = sphi %s164, %s164
                $region54: #{_lambda_.9} parent=50 // loop_header_branch
                  %221 = sbr.rel (%p219) target = $region58
                $region55: #{_lambda_.9} parent=50 // loop_body
                  _
                $region56: #{_lambda_.9} parent=50 // loop_footer
                  %s222 = sadd.s32 1, %s218
                $region57: #{_lambda_.9} parent=50 // loop_footer_branch
                  %217 = sbr.rel target = $region53
                $region58: #{_lambda_.9} parent=50 // loop_exit
                  _
                loop: start=0, step=1, limit=1
                $region59: #{_lambda_.9} parent=50 // loop_pre_header
                  _
                $region60: #{_lambda_.9} parent=50 // loop_header
                  %s227 = sphi 0, %s231
                  %p228 = scmp.ge.s32.totalorder %s227, 1
                  %s232 = sphi %s167, %s167
                  %s233 = sphi %s164, %s164
                $region61: #{_lambda_.9} parent=50 // loop_header_branch
                  %230 = sbr.rel (%p228) target = $region65
                $region62: #{_lambda_.9} parent=50 // loop_body
                  %v234 = vld [vmem:[%s232] sm:$0xf]
                  %235 = vst [vmem:[%s233] sm:$0xf] %v234
                  %v236 = vld [vmem:[%s232 + $0x4] sm:$0xf]
                  %237 = vst [vmem:[%s233 + $0x4] sm:$0xf] %v236
                  %v238 = vld [vmem:[%s232 + $0x10] sm:$0xf]
                  %239 = vst [vmem:[%s233 + $0x8] sm:$0xf] %v238
                  %v240 = vld [vmem:[%s232 + $0x14] sm:$0xf]
                  %241 = vst [vmem:[%s233 + $0xc] sm:$0xf] %v240
                  %v242 = vld [vmem:[%s232 + $0x20] sm:$0xf]
                  %243 = vst [vmem:[%s233 + $0x10] sm:$0xf] %v242
                  %v244 = vld [vmem:[%s232 + $0x24] sm:$0xf]
                  %245 = vst [vmem:[%s233 + $0x14] sm:$0xf] %v244
                  %v246 = vld [vmem:[%s232 + $0x30] sm:$0xf]
                  %247 = vst [vmem:[%s233 + $0x18] sm:$0xf] %v246
                  %v248 = vld [vmem:[%s232 + $0x34] sm:$0xf]
                  %249 = vst [vmem:[%s233 + $0x1c] sm:$0xf] %v248
                  %v250 = vld [vmem:[%s232 + $0x40] sm:$0xf]
                  %251 = vst [vmem:[%s233 + $0x20] sm:$0xf] %v250
                  %v252 = vld [vmem:[%s232 + $0x44] sm:$0xf]
                  %253 = vst [vmem:[%s233 + $0x24] sm:$0xf] %v252
                  %v254 = vld [vmem:[%s232 + $0x50] sm:$0xf]
                  %255 = vst [vmem:[%s233 + $0x28] sm:$0xf] %v254
                  %v256 = vld [vmem:[%s232 + $0x54] sm:$0xf]
                  %257 = vst [vmem:[%s233 + $0x2c] sm:$0xf] %v256
                  %v258 = vld [vmem:[%s232 + $0x60] sm:$0xf]
                  %259 = vst [vmem:[%s233 + $0x30] sm:$0xf] %v258
                  %v260 = vld [vmem:[%s232 + $0x64] sm:$0xf]
                  %261 = vst [vmem:[%s233 + $0x34] sm:$0xf] %v260
                  %v262 = vld [vmem:[%s232 + $0x70] sm:$0xf]
                  %263 = vst [vmem:[%s233 + $0x38] sm:$0xf] %v262
                  %v264 = vld [vmem:[%s232 + $0x74] sm:$0xf]
                  %265 = vst [vmem:[%s233 + $0x3c] sm:$0xf] %v264
                $region63: #{_lambda_.9} parent=50 // loop_footer
                  %s231 = sadd.s32 1, %s227
                $region64: #{_lambda_.9} parent=50 // loop_footer_branch
                  %226 = sbr.rel target = $region60
                $region65: #{_lambda_.9} parent=50 // loop_exit
                  _
              $region51: #{_lambda_.9} parent=35 // pred_fallthru
                _
            $region36: #{_lambda_.9} parent=31 // pred_fallthru
              _
            // Predicated region
            $region37: #{_lambda_.9} parent=31 // pred_check
              _
            $region38: #{_lambda_.9} parent=31 // pred_check_branch
              %173 = sbr.rel (0) target = $region40
            $region39: #{_lambda_.9} parent=31 // pred_region
              loop: start=0, step=1, limit=1
              $region41: #{_lambda_.9} parent=39 // loop_pre_header
                _
              $region42: #{_lambda_.9} parent=39 // loop_header
                %s176 = sphi 0, %s180
                %p177 = scmp.ge.s32.totalorder %s176, 1
                %s181 = sphi %s167, %s167
                %s182 = sphi %s164, %s164
              $region43: #{_lambda_.9} parent=39 // loop_header_branch
                %179 = sbr.rel (%p177) target = $region47
              $region44: #{_lambda_.9} parent=39 // loop_body
                %v183 = vld [vmem:[%s181] sm:$0xf]
                %184 = vst [vmem:[%s182] sm:$0xf] %v183
                %v185 = vld [vmem:[%s181 + $0x4] sm:$0xf]
                %186 = vst [vmem:[%s182 + $0x4] sm:$0xf] %v185
                %v187 = vld [vmem:[%s181 + $0x10] sm:$0xf]
                %188 = vst [vmem:[%s182 + $0x8] sm:$0xf] %v187
                %v189 = vld [vmem:[%s181 + $0x14] sm:$0xf]
                %190 = vst [vmem:[%s182 + $0xc] sm:$0xf] %v189
                %v191 = vld [vmem:[%s181 + $0x20] sm:$0xf]
                %192 = vst [vmem:[%s182 + $0x10] sm:$0xf] %v191
                %v193 = vld [vmem:[%s181 + $0x24] sm:$0xf]
                %194 = vst [vmem:[%s182 + $0x14] sm:$0xf] %v193
                %v195 = vld [vmem:[%s181 + $0x30] sm:$0xf]
                %196 = vst [vmem:[%s182 + $0x18] sm:$0xf] %v195
                %v197 = vld [vmem:[%s181 + $0x34] sm:$0xf]
                %198 = vst [vmem:[%s182 + $0x1c] sm:$0xf] %v197
                %v199 = vld [vmem:[%s181 + $0x40] sm:$0xf]
                %200 = vst [vmem:[%s182 + $0x20] sm:$0xf] %v199
                %v201 = vld [vmem:[%s181 + $0x44] sm:$0xf]
                %202 = vst [vmem:[%s182 + $0x24] sm:$0xf] %v201
                %v203 = vld [vmem:[%s181 + $0x50] sm:$0xf]
                %204 = vst [vmem:[%s182 + $0x28] sm:$0xf] %v203
                %v205 = vld [vmem:[%s181 + $0x54] sm:$0xf]
                %206 = vst [vmem:[%s182 + $0x2c] sm:$0xf] %v205
                %v207 = vld [vmem:[%s181 + $0x60] sm:$0xf]
                %208 = vst [vmem:[%s182 + $0x30] sm:$0xf] %v207
                %v209 = vld [vmem:[%s181 + $0x64] sm:$0xf]
                %210 = vst [vmem:[%s182 + $0x34] sm:$0xf] %v209
                %v211 = vld [vmem:[%s181 + $0x70] sm:$0xf]
                %212 = vst [vmem:[%s182 + $0x38] sm:$0xf] %v211
                %v213 = vld [vmem:[%s181 + $0x74] sm:$0xf]
                %214 = vst [vmem:[%s182 + $0x3c] sm:$0xf] %v213
              $region45: #{_lambda_.9} parent=39 // loop_footer
                %s180 = sadd.s32 1, %s176
              $region46: #{_lambda_.9} parent=39 // loop_footer_branch
                %175 = sbr.rel target = $region42
              $region47: #{_lambda_.9} parent=39 // loop_exit
                _
            $region40: #{_lambda_.9} parent=31 // pred_fallthru
              _
          $region32: #{_lambda_.9} parent=27 // pred_fallthru
            _
          %266 = vnop
        $region28: #{_lambda_.9} parent=23 // pred_fallthru
          _
        // Predicated region
        $region66: #{_lambda_.9} parent=23 // pred_check
          %p267 = pneg %p101
        $region67: #{_lambda_.9} parent=23 // pred_check_branch
          %269 = sbr.rel (%p267) target = $region69
        $region68: #{_lambda_.9} parent=23 // pred_region
          %p270 = scmp.lt.s32.totalorder %s13, 1
          %s271 = scalar_select %p270, %s13, 1
          %s272 = smul.addr %s271, 32
          %s273 = smul.addr %s272, 8
          %s274 = scalar_lea.vmem %s3, %s273
        $region69: #{_lambda_.9} parent=23 // pred_fallthru
          _
      $region24: #{_lambda_.9} parent=5 // pred_fallthru
        _
      %p275 = scmp.le.s32.totalorder 1, %s13
      %p276 = scmp.lt.s32.totalorder %s13, 3
      %p277 = pnand %p275, %p276
      %p278 = pneg %p277
      // Predicated region
      $region70: #{_lambda_.9} parent=5 // pred_check
        _
      $region71: #{_lambda_.9} parent=5 // pred_check_branch
        %280 = sbr.rel (%p277) target = $region73
      $region72: #{_lambda_.9} parent=5 // pred_region
        %s281 = ssub.s32 %s13, 1
        %s282 = sand.u32 %s68, 1
        %s283 = sand.u32 %s68, 1
        %s284 = smul.addr %s283, 64
        %s285 = scalar_lea.vmem [#allocation2], %s284
        // Predicated region
        $region74: #{_lambda_.9} parent=72 // pred_check
          %p286 = pneg %p81
        $region75: #{_lambda_.9} parent=72 // pred_check_branch
          %288 = sbr.rel (%p286) target = $region77
        $region76: #{_lambda_.9} parent=72 // pred_region
          _
        $region77: #{_lambda_.9} parent=72 // pred_fallthru
          _
        %p289 = pneg %p34
        %p290 = pneg %p31
        %p291 = pneg %p55
        %p292 = pneg %p52
        %s293 = sand.u32 %s68, 1
        %s294 = sand.u32 %s68, 1
        %s295 = smul.addr %s294, 64
        %s296 = scalar_lea.vmem [#allocation2], %s295
        %p297 = pneg %p81
        %p298 = pneg %p78
        %p299 = scmp.lt.s32.totalorder %s18, 1
        %s300 = scalar_select %p299, %s18, 1
        %s301 = smul.addr %s300, 32
        %s302 = smul.addr %s301, 8
        %s303 = scalar_lea.vmem %s3, %s302
        %p304 = pneg %p107
        %p305 = pneg %p104
        %p306 = pneg %p133
        %p307 = pneg %p130
        %s308 = sand.u32 %s120, 1
        %s309 = scalar_lea.sflag [#allocation4], %s308
        %s310 = sand.u32 %s120, 1
        %s311 = smul.addr %s310, 256
        %s312 = scalar_lea.vmem [#allocation3], %s311
        %p313 = scmp.lt.s32.totalorder %s18, 1
        %s314 = scalar_select %p313, %s18, 1
        %s315 = smul.addr %s314, 32
        %s316 = smul.addr %s315, 8
        %s317 = scalar_lea.vmem %s3, %s316
        %v319 = vld [vmem:[%s285] sm:$0xf]
        %v320 = vld [vmem:[%s285 + $0x4] sm:$0xf]
        %v321 = vld [vmem:[%s285 + $0x8] sm:$0xf]
        %v322 = vld [vmem:[%s285 + $0xc] sm:$0xf]
        %v323 = vld [vmem:[%s285 + $0x10] sm:$0xf]
        %v324 = vld [vmem:[%s285 + $0x14] sm:$0xf]
        %v325 = vld [vmem:[%s285 + $0x18] sm:$0xf]
        %v326 = vld [vmem:[%s285 + $0x1c] sm:$0xf]
        %v327 = vld [vmem:[%s285 + $0x20] sm:$0xf]
        %v328 = vld [vmem:[%s285 + $0x24] sm:$0xf]
        %v329 = vld [vmem:[%s285 + $0x28] sm:$0xf]
        %v330 = vld [vmem:[%s285 + $0x2c] sm:$0xf]
        %v331 = vld [vmem:[%s285 + $0x30] sm:$0xf]
        %v332 = vld [vmem:[%s285 + $0x34] sm:$0xf]
        %v333 = vld [vmem:[%s285 + $0x38] sm:$0xf]
        %v334 = vld [vmem:[%s285 + $0x3c] sm:$0xf]
        %v335 = vld [vmem:[%s1] sm:$0xf]
        %v336 = vld [vmem:[%s1 + $0x4] sm:$0xf]
        %v353 = vunpack.c.l.b16 %v319
        %v354 = vunpack.c.l.b16 %v320
        %v355 = vunpack.c.l.b16 %v321
        %v356 = vunpack.c.l.b16 %v322
        %v357 = vunpack.c.l.b16 %v323
        %v358 = vunpack.c.l.b16 %v324
        %v359 = vunpack.c.l.b16 %v325
        %v360 = vunpack.c.l.b16 %v326
        %v361 = vunpack.c.l.b16 %v327
        %v362 = vunpack.c.l.b16 %v328
        %v363 = vunpack.c.l.b16 %v329
        %v364 = vunpack.c.l.b16 %v330
        %v365 = vunpack.c.l.b16 %v331
        %v366 = vunpack.c.l.b16 %v332
        %v367 = vunpack.c.l.b16 %v333
        %v368 = vunpack.c.l.b16 %v334
        %v369 = vpack.c.b16 %v354, %v353
        %v370 = vpack.c.b16 %v356, %v355
        %v371 = vpack.c.b16 %v358, %v357
        %v372 = vpack.c.b16 %v360, %v359
        %v373 = vpack.c.b16 %v362, %v361
        %v374 = vpack.c.b16 %v364, %v363
        %v375 = vpack.c.b16 %v366, %v365
        %v376 = vpack.c.b16 %v368, %v367
        %v379 = vunpack.c.l.b16 %v335
        %v380 = vunpack.c.l.b16 %v336
        %v381 = vpack.c.b16 %v380, %v379
        %vm383 = vcmask 130048
        %v385 = vsel %vm383, %v369, 0
        %v388 = vsel %vm383, %v370, 0
        %v391 = vsel %vm383, %v371, 0
        %v394 = vsel %vm383, %v372, 0
        %v397 = vsel %vm383, %v373, 0
        %v400 = vsel %vm383, %v374, 0
        %v403 = vsel %vm383, %v375, 0
        %v406 = vsel %vm383, %v376, 0
        %408 = vmatprep.subr.bf16.mxu0 0
        %409 = vmatpush1.bf16.msra.mxu0 %v381
        %410 = vmatprep.subr.bf16.mxu0 0
        %411 = vmatpush1.bf16.msra.mxu0 0
        %412 = vmatprep.subr.bf16.mxu0 0
        %413 = vmatpush1.bf16.msra.mxu0 0
        %414 = vmatprep.subr.bf16.mxu0 0
        %415 = vmatpush1.bf16.msra.mxu0 0
        %416 = vmatprep.subr.bf16.mxu0 0
        %417 = vmatpush1.bf16.msra.mxu0 0
        %418 = vmatprep.subr.bf16.mxu0 0
        %419 = vmatpush1.bf16.msra.mxu0 0
        %420 = vmatprep.subr.bf16.mxu0 0
        %421 = vmatpush1.bf16.msra.mxu0 0
        %422 = vmatprep.subr.bf16.mxu0 0
        %423 = vmatpush1.bf16.msra.mxu0 0
        %424 = vmatprep.subr.bf16.mxu0 0
        %425 = vmatpush1.bf16.msra.mxu0 0
        %426 = vmatprep.subr.bf16.mxu0 0
        %427 = vmatpush1.bf16.msra.mxu0 0
        %428 = vmatprep.subr.bf16.mxu0 0
        %429 = vmatpush1.bf16.msra.mxu0 0
        %430 = vmatprep.subr.bf16.mxu0 0
        %431 = vmatpush1.bf16.msra.mxu0 0
        %432 = vmatprep.subr.bf16.mxu0 0
        %433 = vmatpush1.bf16.msra.mxu0 0
        %434 = vmatprep.subr.bf16.mxu0 0
        %435 = vmatpush1.bf16.msra.mxu0 0
        %436 = vmatprep.subr.bf16.mxu0 0
        %437 = vmatpush1.bf16.msra.mxu0 0
        %438 = vmatprep.subr.bf16.mxu0 0
        %439 = vmatpush1.bf16.msra.mxu0 0
        %440 = vmatprep.mubr.bf16.mxu0 0
        %441 = vmatmul.mubr.bf16.gmra.mrb[0].mxu0 %v385
        %v442 = vpop.f32.mrb[0].mxu0
        %v443 = vadd.f32 0.0, %v442
        %v444 = vpop.f32.mrb[0].mxu0
        %v445 = vpop.f32.mrb[0].mxu0
        %v446 = vadd.f32 0.0, %v445
        %v447 = vpop.f32.mrb[0].mxu0
        %448 = vmatprep.mubr.bf16.mxu0 0
        %449 = vmatmul.mubr.bf16.gmra.mrb[0].mxu0 %v388
        %v450 = vpop.f32.mrb[0].mxu0
        %v451 = vadd.f32 0.0, %v450
        %v452 = vpop.f32.mrb[0].mxu0
        %v453 = vpop.f32.mrb[0].mxu0
        %v454 = vadd.f32 0.0, %v453
        %v455 = vpop.f32.mrb[0].mxu0
        %456 = vmatprep.mubr.bf16.mxu0 0
        %457 = vmatmul.mubr.bf16.gmra.mrb[0].mxu0 %v391
        %v458 = vpop.f32.mrb[0].mxu0
        %v459 = vadd.f32 0.0, %v458
        %v460 = vpop.f32.mrb[0].mxu0
        %v461 = vpop.f32.mrb[0].mxu0
        %v462 = vadd.f32 0.0, %v461
        %v463 = vpop.f32.mrb[0].mxu0
        %464 = vmatprep.mubr.bf16.mxu0 0
        %465 = vmatmul.mubr.bf16.gmra.mrb[0].mxu0 %v394
        %v466 = vpop.f32.mrb[0].mxu0
        %v467 = vadd.f32 0.0, %v466
        %v468 = vpop.f32.mrb[0].mxu0
        %v469 = vpop.f32.mrb[0].mxu0
        %v470 = vadd.f32 0.0, %v469
        %v471 = vpop.f32.mrb[0].mxu0
        %472 = vmatprep.mubr.bf16.mxu0 0
        %473 = vmatmul.mubr.bf16.gmra.mrb[0].mxu0 %v397
        %v474 = vpop.f32.mrb[0].mxu0
        %v475 = vadd.f32 0.0, %v474
        %v476 = vpop.f32.mrb[0].mxu0
        %v477 = vpop.f32.mrb[0].mxu0
        %v478 = vadd.f32 0.0, %v477
        %v479 = vpop.f32.mrb[0].mxu0
        %480 = vmatprep.mubr.bf16.mxu0 0
        %481 = vmatmul.mubr.bf16.gmra.mrb[0].mxu0 %v400
        %v482 = vpop.f32.mrb[0].mxu0
        %v483 = vadd.f32 0.0, %v482
        %v484 = vpop.f32.mrb[0].mxu0
        %v485 = vpop.f32.mrb[0].mxu0
        %v486 = vadd.f32 0.0, %v485
        %v487 = vpop.f32.mrb[0].mxu0
        %488 = vmatprep.mubr.bf16.mxu0 0
        %489 = vmatmul.mubr.bf16.gmra.mrb[0].mxu0 %v403
        %v490 = vpop.f32.mrb[0].mxu0
        %v491 = vadd.f32 0.0, %v490
        %v492 = vpop.f32.mrb[0].mxu0
        %v493 = vpop.f32.mrb[0].mxu0
        %v494 = vadd.f32 0.0, %v493
        %v495 = vpop.f32.mrb[0].mxu0
        %496 = vmatprep.mubr.bf16.mxu0 0
        %497 = vmatmul.mubr.bf16.gmra.mrb[0].mxu0 %v406
        %v498 = vpop.f32.mrb[0].mxu0
        %v499 = vadd.f32 0.0, %v498
        %v500 = vpop.f32.mrb[0].mxu0
        %v501 = vpop.f32.mrb[0].mxu0
        %v502 = vadd.f32 0.0, %v501
        %v503 = vpop.f32.mrb[0].mxu0
        %504 = vdwg.mxu0
        %v505 = vpack.c.bf16 %v446, %v443
        %v506 = vpack.c.bf16 %v454, %v451
        %v507 = vpack.c.bf16 %v462, %v459
        %v508 = vpack.c.bf16 %v470, %v467
        %v509 = vpack.c.bf16 %v478, %v475
        %v510 = vpack.c.bf16 %v486, %v483
        %v511 = vpack.c.bf16 %v494, %v491
        %v512 = vpack.c.bf16 %v502, %v499
        %v513 = vld [vmem:[%s0] sm:$0xf]
        %v514 = vld [vmem:[%s0 + $0x4] sm:$0xf]
        %v515 = vld [vmem:[%s0 + $0x8] sm:$0xf]
        %v516 = vld [vmem:[%s0 + $0xc] sm:$0xf]
        %v517 = vld [vmem:[%s317] sm:$0xff]
        %v518 = vld [vmem:[%s317 + $0x8] sm:$0xff]
        %v519 = vld [vmem:[%s317 + $0x10] sm:$0xff]
        %v520 = vld [vmem:[%s317 + $0x18] sm:$0xff]
        %v521 = vld [vmem:[%s317 + $0x20] sm:$0xff]
        %v522 = vld [vmem:[%s317 + $0x28] sm:$0xff]
        %v523 = vld [vmem:[%s317 + $0x30] sm:$0xff]
        %v524 = vld [vmem:[%s317 + $0x38] sm:$0xff]
        %v525 = vld [vmem:[%s317 + $0x40] sm:$0xff]
        %v526 = vld [vmem:[%s317 + $0x48] sm:$0xff]
        %v527 = vld [vmem:[%s317 + $0x50] sm:$0xff]
        %v528 = vld [vmem:[%s317 + $0x58] sm:$0xff]
        %v529 = vld [vmem:[%s317 + $0x60] sm:$0xff]
        %v530 = vld [vmem:[%s317 + $0x68] sm:$0xff]
        %v531 = vld [vmem:[%s317 + $0x70] sm:$0xff]
        %v532 = vld [vmem:[%s317 + $0x78] sm:$0xff]
        %v533 = vld [vmem:[%s317 + $0x80] sm:$0xff]
        %v534 = vld [vmem:[%s317 + $0x88] sm:$0xff]
        %v535 = vld [vmem:[%s317 + $0x90] sm:$0xff]
        %v536 = vld [vmem:[%s317 + $0x98] sm:$0xff]
        %v537 = vld [vmem:[%s317 + $0xa0] sm:$0xff]
        %v538 = vld [vmem:[%s317 + $0xa8] sm:$0xff]
        %v539 = vld [vmem:[%s317 + $0xb0] sm:$0xff]
        %v540 = vld [vmem:[%s317 + $0xb8] sm:$0xff]
        %v541 = vld [vmem:[%s317 + $0xc0] sm:$0xff]
        %v542 = vld [vmem:[%s317 + $0xc8] sm:$0xff]
        %v543 = vld [vmem:[%s317 + $0xd0] sm:$0xff]
        %v544 = vld [vmem:[%s317 + $0xd8] sm:$0xff]
        %v545 = vld [vmem:[%s317 + $0xe0] sm:$0xff]
        %v546 = vld [vmem:[%s317 + $0xe8] sm:$0xff]
        %v547 = vld [vmem:[%s317 + $0xf0] sm:$0xff]
        %v548 = vld [vmem:[%s317 + $0xf8] sm:$0xff]
        %v553 = vunpack.c.l.b16 %v513
        %v554 = vunpack.c.l.b16 %v514
        %v555 = vunpack.c.l.b16 %v515
        %v556 = vunpack.c.l.b16 %v516
        %v557 = vpack.c.b16 %v554, %v553
        %v558 = vpack.c.b16 %v556, %v555
        %v560 = vsel %vm383, %v557, 0
        %v563 = vsel %vm383, %v558, 0
        %565 = vmatprep.subr.bf16.mxu0 0
        %566 = vmatpush1.bf16.msra.mxu0 %v505
        %567 = vmatprep.subr.bf16.mxu0 0
        %568 = vmatpush1.bf16.msra.mxu0 0
        %569 = vmatprep.subr.bf16.mxu0 0
        %570 = vmatpush1.bf16.msra.mxu0 0
        %571 = vmatprep.subr.bf16.mxu0 0
        %572 = vmatpush1.bf16.msra.mxu0 0
        %573 = vmatprep.subr.bf16.mxu0 0
        %574 = vmatpush1.bf16.msra.mxu0 0
        %575 = vmatprep.subr.bf16.mxu0 0
        %576 = vmatpush1.bf16.msra.mxu0 0
        %577 = vmatprep.subr.bf16.mxu0 0
        %578 = vmatpush1.bf16.msra.mxu0 0
        %579 = vmatprep.subr.bf16.mxu0 0
        %580 = vmatpush1.bf16.msra.mxu0 0
        %581 = vmatprep.subr.bf16.mxu0 0
        %582 = vmatpush1.bf16.msra.mxu0 0
        %583 = vmatprep.subr.bf16.mxu0 0
        %584 = vmatpush1.bf16.msra.mxu0 0
        %585 = vmatprep.subr.bf16.mxu0 0
        %586 = vmatpush1.bf16.msra.mxu0 0
        %587 = vmatprep.subr.bf16.mxu0 0
        %588 = vmatpush1.bf16.msra.mxu0 0
        %589 = vmatprep.subr.bf16.mxu0 0
        %590 = vmatpush1.bf16.msra.mxu0 0
        %591 = vmatprep.subr.bf16.mxu0 0
        %592 = vmatpush1.bf16.msra.mxu0 0
        %593 = vmatprep.subr.bf16.mxu0 0
        %594 = vmatpush1.bf16.msra.mxu0 0
        %595 = vmatprep.subr.bf16.mxu0 0
        %596 = vmatpush1.bf16.msra.mxu0 0
        %597 = vmatprep.mubr.bf16.mxu0 0
        %598 = vmatmul.mubr.bf16.gmra.mrb[0].mxu0 %v560
        %v599 = vpop.f32.mrb[0].mxu0
        %v600 = vadd.f32 %v517, %v599
        %v601 = vpop.f32.mrb[0].mxu0
        %v602 = vpop.f32.mrb[0].mxu0
        %v603 = vadd.f32 %v518, %v602
        %v604 = vpop.f32.mrb[0].mxu0
        %605 = vmatprep.mubr.bf16.mxu0 0
        %606 = vmatmul.mubr.bf16.gmra.mrb[0].mxu0 %v563
        %v607 = vpop.f32.mrb[0].mxu0
        %v608 = vadd.f32 %v519, %v607
        %v609 = vpop.f32.mrb[0].mxu0
        %v610 = vpop.f32.mrb[0].mxu0
        %v611 = vadd.f32 %v520, %v610
        %v612 = vpop.f32.mrb[0].mxu0
        %613 = vdwg.mxu0
        %614 = vmatprep.subr.bf16.mxu0 0
        %615 = vmatpush1.bf16.msra.mxu0 %v506
        %616 = vmatprep.subr.bf16.mxu0 0
        %617 = vmatpush1.bf16.msra.mxu0 0
        %618 = vmatprep.subr.bf16.mxu0 0
        %619 = vmatpush1.bf16.msra.mxu0 0
        %620 = vmatprep.subr.bf16.mxu0 0
        %621 = vmatpush1.bf16.msra.mxu0 0
        %622 = vmatprep.subr.bf16.mxu0 0
        %623 = vmatpush1.bf16.msra.mxu0 0
        %624 = vmatprep.subr.bf16.mxu0 0
        %625 = vmatpush1.bf16.msra.mxu0 0
        %626 = vmatprep.subr.bf16.mxu0 0
        %627 = vmatpush1.bf16.msra.mxu0 0
        %628 = vmatprep.subr.bf16.mxu0 0
        %629 = vmatpush1.bf16.msra.mxu0 0
        %630 = vmatprep.subr.bf16.mxu0 0
        %631 = vmatpush1.bf16.msra.mxu0 0
        %632 = vmatprep.subr.bf16.mxu0 0
        %633 = vmatpush1.bf16.msra.mxu0 0
        %634 = vmatprep.subr.bf16.mxu0 0
        %635 = vmatpush1.bf16.msra.mxu0 0
        %636 = vmatprep.subr.bf16.mxu0 0
        %637 = vmatpush1.bf16.msra.mxu0 0
        %638 = vmatprep.subr.bf16.mxu0 0
        %639 = vmatpush1.bf16.msra.mxu0 0
        %640 = vmatprep.subr.bf16.mxu0 0
        %641 = vmatpush1.bf16.msra.mxu0 0
        %642 = vmatprep.subr.bf16.mxu0 0
        %643 = vmatpush1.bf16.msra.mxu0 0
        %644 = vmatprep.subr.bf16.mxu0 0
        %645 = vmatpush1.bf16.msra.mxu0 0
        %646 = vmatprep.mubr.bf16.mxu0 0
        %647 = vmatmul.mubr.bf16.gmra.mrb[0].mxu0 %v560
        %v648 = vpop.f32.mrb[0].mxu0
        %v649 = vadd.f32 %v521, %v648
        %v650 = vpop.f32.mrb[0].mxu0
        %v651 = vpop.f32.mrb[0].mxu0
        %v652 = vadd.f32 %v522, %v651
        %v653 = vpop.f32.mrb[0].mxu0
        %654 = vmatprep.mubr.bf16.mxu0 0
        %655 = vmatmul.mubr.bf16.gmra.mrb[0].mxu0 %v563
        %v656 = vpop.f32.mrb[0].mxu0
        %v657 = vadd.f32 %v523, %v656
        %v658 = vpop.f32.mrb[0].mxu0
        %v659 = vpop.f32.mrb[0].mxu0
        %v660 = vadd.f32 %v524, %v659
        %v661 = vpop.f32.mrb[0].mxu0
        %662 = vdwg.mxu0
        %663 = vmatprep.subr.bf16.mxu0 0
        %664 = vmatpush1.bf16.msra.mxu0 %v507
        %665 = vmatprep.subr.bf16.mxu0 0
        %666 = vmatpush1.bf16.msra.mxu0 0
        %667 = vmatprep.subr.bf16.mxu0 0
        %668 = vmatpush1.bf16.msra.mxu0 0
        %669 = vmatprep.subr.bf16.mxu0 0
        %670 = vmatpush1.bf16.msra.mxu0 0
        %671 = vmatprep.subr.bf16.mxu0 0
        %672 = vmatpush1.bf16.msra.mxu0 0
        %673 = vmatprep.subr.bf16.mxu0 0
        %674 = vmatpush1.bf16.msra.mxu0 0
        %675 = vmatprep.subr.bf16.mxu0 0
        %676 = vmatpush1.bf16.msra.mxu0 0
        %677 = vmatprep.subr.bf16.mxu0 0
        %678 = vmatpush1.bf16.msra.mxu0 0
        %679 = vmatprep.subr.bf16.mxu0 0
        %680 = vmatpush1.bf16.msra.mxu0 0
        %681 = vmatprep.subr.bf16.mxu0 0
        %682 = vmatpush1.bf16.msra.mxu0 0
        %683 = vmatprep.subr.bf16.mxu0 0
        %684 = vmatpush1.bf16.msra.mxu0 0
        %685 = vmatprep.subr.bf16.mxu0 0
        %686 = vmatpush1.bf16.msra.mxu0 0
        %687 = vmatprep.subr.bf16.mxu0 0
        %688 = vmatpush1.bf16.msra.mxu0 0
        %689 = vmatprep.subr.bf16.mxu0 0
        %690 = vmatpush1.bf16.msra.mxu0 0
        %691 = vmatprep.subr.bf16.mxu0 0
        %692 = vmatpush1.bf16.msra.mxu0 0
        %693 = vmatprep.subr.bf16.mxu0 0
        %694 = vmatpush1.bf16.msra.mxu0 0
        %695 = vmatprep.mubr.bf16.mxu0 0
        %696 = vmatmul.mubr.bf16.gmra.mrb[0].mxu0 %v560
        %v697 = vpop.f32.mrb[0].mxu0
        %v698 = vadd.f32 %v525, %v697
        %v699 = vpop.f32.mrb[0].mxu0
        %v700 = vpop.f32.mrb[0].mxu0
        %v701 = vadd.f32 %v526, %v700
        %v702 = vpop.f32.mrb[0].mxu0
        %703 = vmatprep.mubr.bf16.mxu0 0
        %704 = vmatmul.mubr.bf16.gmra.mrb[0].mxu0 %v563
        %v705 = vpop.f32.mrb[0].mxu0
        %v706 = vadd.f32 %v527, %v705
        %v707 = vpop.f32.mrb[0].mxu0
        %v708 = vpop.f32.mrb[0].mxu0
        %v709 = vadd.f32 %v528, %v708
        %v710 = vpop.f32.mrb[0].mxu0
        %711 = vdwg.mxu0
        %712 = vmatprep.subr.bf16.mxu0 0
        %713 = vmatpush1.bf16.msra.mxu0 %v508
        %714 = vmatprep.subr.bf16.mxu0 0
        %715 = vmatpush1.bf16.msra.mxu0 0
        %716 = vmatprep.subr.bf16.mxu0 0
        %717 = vmatpush1.bf16.msra.mxu0 0
        %718 = vmatprep.subr.bf16.mxu0 0
        %719 = vmatpush1.bf16.msra.mxu0 0
        %720 = vmatprep.subr.bf16.mxu0 0
        %721 = vmatpush1.bf16.msra.mxu0 0
        %722 = vmatprep.subr.bf16.mxu0 0
        %723 = vmatpush1.bf16.msra.mxu0 0
        %724 = vmatprep.subr.bf16.mxu0 0
        %725 = vmatpush1.bf16.msra.mxu0 0
        %726 = vmatprep.subr.bf16.mxu0 0
        %727 = vmatpush1.bf16.msra.mxu0 0
        %728 = vmatprep.subr.bf16.mxu0 0
        %729 = vmatpush1.bf16.msra.mxu0 0
        %730 = vmatprep.subr.bf16.mxu0 0
        %731 = vmatpush1.bf16.msra.mxu0 0
        %732 = vmatprep.subr.bf16.mxu0 0
        %733 = vmatpush1.bf16.msra.mxu0 0
        %734 = vmatprep.subr.bf16.mxu0 0
        %735 = vmatpush1.bf16.msra.mxu0 0
        %736 = vmatprep.subr.bf16.mxu0 0
        %737 = vmatpush1.bf16.msra.mxu0 0
        %738 = vmatprep.subr.bf16.mxu0 0
        %739 = vmatpush1.bf16.msra.mxu0 0
        %740 = vmatprep.subr.bf16.mxu0 0
        %741 = vmatpush1.bf16.msra.mxu0 0
        %742 = vmatprep.subr.bf16.mxu0 0
        %743 = vmatpush1.bf16.msra.mxu0 0
        %744 = vmatprep.mubr.bf16.mxu0 0
        %745 = vmatmul.mubr.bf16.gmra.mrb[0].mxu0 %v560
        %v746 = vpop.f32.mrb[0].mxu0
        %v747 = vadd.f32 %v529, %v746
        %v748 = vpop.f32.mrb[0].mxu0
        %v749 = vpop.f32.mrb[0].mxu0
        %v750 = vadd.f32 %v530, %v749
        %v751 = vpop.f32.mrb[0].mxu0
        %752 = vmatprep.mubr.bf16.mxu0 0
        %753 = vmatmul.mubr.bf16.gmra.mrb[0].mxu0 %v563
        %v754 = vpop.f32.mrb[0].mxu0
        %v755 = vadd.f32 %v531, %v754
        %v756 = vpop.f32.mrb[0].mxu0
        %v757 = vpop.f32.mrb[0].mxu0
        %v758 = vadd.f32 %v532, %v757
        %v759 = vpop.f32.mrb[0].mxu0
        %760 = vdwg.mxu0
        %761 = vmatprep.subr.bf16.mxu0 0
        %762 = vmatpush1.bf16.msra.mxu0 %v509
        %763 = vmatprep.subr.bf16.mxu0 0
        %764 = vmatpush1.bf16.msra.mxu0 0
        %765 = vmatprep.subr.bf16.mxu0 0
        %766 = vmatpush1.bf16.msra.mxu0 0
        %767 = vmatprep.subr.bf16.mxu0 0
        %768 = vmatpush1.bf16.msra.mxu0 0
        %769 = vmatprep.subr.bf16.mxu0 0
        %770 = vmatpush1.bf16.msra.mxu0 0
        %771 = vmatprep.subr.bf16.mxu0 0
        %772 = vmatpush1.bf16.msra.mxu0 0
        %773 = vmatprep.subr.bf16.mxu0 0
        %774 = vmatpush1.bf16.msra.mxu0 0
        %775 = vmatprep.subr.bf16.mxu0 0
        %776 = vmatpush1.bf16.msra.mxu0 0
        %777 = vmatprep.subr.bf16.mxu0 0
        %778 = vmatpush1.bf16.msra.mxu0 0
        %779 = vmatprep.subr.bf16.mxu0 0
        %780 = vmatpush1.bf16.msra.mxu0 0
        %781 = vmatprep.subr.bf16.mxu0 0
        %782 = vmatpush1.bf16.msra.mxu0 0
        %783 = vmatprep.subr.bf16.mxu0 0
        %784 = vmatpush1.bf16.msra.mxu0 0
        %785 = vmatprep.subr.bf16.mxu0 0
        %786 = vmatpush1.bf16.msra.mxu0 0
        %787 = vmatprep.subr.bf16.mxu0 0
        %788 = vmatpush1.bf16.msra.mxu0 0
        %789 = vmatprep.subr.bf16.mxu0 0
        %790 = vmatpush1.bf16.msra.mxu0 0
        %791 = vmatprep.subr.bf16.mxu0 0
        %792 = vmatpush1.bf16.msra.mxu0 0
        %793 = vmatprep.mubr.bf16.mxu0 0
        %794 = vmatmul.mubr.bf16.gmra.mrb[0].mxu0 %v560
        %v795 = vpop.f32.mrb[0].mxu0
        %v796 = vadd.f32 %v533, %v795
        %v797 = vpop.f32.mrb[0].mxu0
        %v798 = vpop.f32.mrb[0].mxu0
        %v799 = vadd.f32 %v534, %v798
        %v800 = vpop.f32.mrb[0].mxu0
        %801 = vmatprep.mubr.bf16.mxu0 0
        %802 = vmatmul.mubr.bf16.gmra.mrb[0].mxu0 %v563
        %v803 = vpop.f32.mrb[0].mxu0
        %v804 = vadd.f32 %v535, %v803
        %v805 = vpop.f32.mrb[0].mxu0
        %v806 = vpop.f32.mrb[0].mxu0
        %v807 = vadd.f32 %v536, %v806
        %v808 = vpop.f32.mrb[0].mxu0
        %809 = vdwg.mxu0
        %810 = vmatprep.subr.bf16.mxu0 0
        %811 = vmatpush1.bf16.msra.mxu0 %v510
        %812 = vmatprep.subr.bf16.mxu0 0
        %813 = vmatpush1.bf16.msra.mxu0 0
        %814 = vmatprep.subr.bf16.mxu0 0
        %815 = vmatpush1.bf16.msra.mxu0 0
        %816 = vmatprep.subr.bf16.mxu0 0
        %817 = vmatpush1.bf16.msra.mxu0 0
        %818 = vmatprep.subr.bf16.mxu0 0
        %819 = vmatpush1.bf16.msra.mxu0 0
        %820 = vmatprep.subr.bf16.mxu0 0
        %821 = vmatpush1.bf16.msra.mxu0 0
        %822 = vmatprep.subr.bf16.mxu0 0
        %823 = vmatpush1.bf16.msra.mxu0 0
        %824 = vmatprep.subr.bf16.mxu0 0
        %825 = vmatpush1.bf16.msra.mxu0 0
        %826 = vmatprep.subr.bf16.mxu0 0
        %827 = vmatpush1.bf16.msra.mxu0 0
        %828 = vmatprep.subr.bf16.mxu0 0
        %829 = vmatpush1.bf16.msra.mxu0 0
        %830 = vmatprep.subr.bf16.mxu0 0
        %831 = vmatpush1.bf16.msra.mxu0 0
        %832 = vmatprep.subr.bf16.mxu0 0
        %833 = vmatpush1.bf16.msra.mxu0 0
        %834 = vmatprep.subr.bf16.mxu0 0
        %835 = vmatpush1.bf16.msra.mxu0 0
        %836 = vmatprep.subr.bf16.mxu0 0
        %837 = vmatpush1.bf16.msra.mxu0 0
        %838 = vmatprep.subr.bf16.mxu0 0
        %839 = vmatpush1.bf16.msra.mxu0 0
        %840 = vmatprep.subr.bf16.mxu0 0
        %841 = vmatpush1.bf16.msra.mxu0 0
        %842 = vmatprep.mubr.bf16.mxu0 0
        %843 = vmatmul.mubr.bf16.gmra.mrb[0].mxu0 %v560
        %v844 = vpop.f32.mrb[0].mxu0
        %v845 = vadd.f32 %v537, %v844
        %v846 = vpop.f32.mrb[0].mxu0
        %v847 = vpop.f32.mrb[0].mxu0
        %v848 = vadd.f32 %v538, %v847
        %v849 = vpop.f32.mrb[0].mxu0
        %850 = vmatprep.mubr.bf16.mxu0 0
        %851 = vmatmul.mubr.bf16.gmra.mrb[0].mxu0 %v563
        %v852 = vpop.f32.mrb[0].mxu0
        %v853 = vadd.f32 %v539, %v852
        %v854 = vpop.f32.mrb[0].mxu0
        %v855 = vpop.f32.mrb[0].mxu0
        %v856 = vadd.f32 %v540, %v855
        %v857 = vpop.f32.mrb[0].mxu0
        %858 = vdwg.mxu0
        %859 = vmatprep.subr.bf16.mxu0 0
        %860 = vmatpush1.bf16.msra.mxu0 %v511
        %861 = vmatprep.subr.bf16.mxu0 0
        %862 = vmatpush1.bf16.msra.mxu0 0
        %863 = vmatprep.subr.bf16.mxu0 0
        %864 = vmatpush1.bf16.msra.mxu0 0
        %865 = vmatprep.subr.bf16.mxu0 0
        %866 = vmatpush1.bf16.msra.mxu0 0
        %867 = vmatprep.subr.bf16.mxu0 0
        %868 = vmatpush1.bf16.msra.mxu0 0
        %869 = vmatprep.subr.bf16.mxu0 0
        %870 = vmatpush1.bf16.msra.mxu0 0
        %871 = vmatprep.subr.bf16.mxu0 0
        %872 = vmatpush1.bf16.msra.mxu0 0
        %873 = vmatprep.subr.bf16.mxu0 0
        %874 = vmatpush1.bf16.msra.mxu0 0
        %875 = vmatprep.subr.bf16.mxu0 0
        %876 = vmatpush1.bf16.msra.mxu0 0
        %877 = vmatprep.subr.bf16.mxu0 0
        %878 = vmatpush1.bf16.msra.mxu0 0
        %879 = vmatprep.subr.bf16.mxu0 0
        %880 = vmatpush1.bf16.msra.mxu0 0
        %881 = vmatprep.subr.bf16.mxu0 0
        %882 = vmatpush1.bf16.msra.mxu0 0
        %883 = vmatprep.subr.bf16.mxu0 0
        %884 = vmatpush1.bf16.msra.mxu0 0
        %885 = vmatprep.subr.bf16.mxu0 0
        %886 = vmatpush1.bf16.msra.mxu0 0
        %887 = vmatprep.subr.bf16.mxu0 0
        %888 = vmatpush1.bf16.msra.mxu0 0
        %889 = vmatprep.subr.bf16.mxu0 0
        %890 = vmatpush1.bf16.msra.mxu0 0
        %891 = vmatprep.mubr.bf16.mxu0 0
        %892 = vmatmul.mubr.bf16.gmra.mrb[0].mxu0 %v560
        %v893 = vpop.f32.mrb[0].mxu0
        %v894 = vadd.f32 %v541, %v893
        %v895 = vpop.f32.mrb[0].mxu0
        %v896 = vpop.f32.mrb[0].mxu0
        %v897 = vadd.f32 %v542, %v896
        %v898 = vpop.f32.mrb[0].mxu0
        %899 = vmatprep.mubr.bf16.mxu0 0
        %900 = vmatmul.mubr.bf16.gmra.mrb[0].mxu0 %v563
        %v901 = vpop.f32.mrb[0].mxu0
        %v902 = vadd.f32 %v543, %v901
        %v903 = vpop.f32.mrb[0].mxu0
        %v904 = vpop.f32.mrb[0].mxu0
        %v905 = vadd.f32 %v544, %v904
        %v906 = vpop.f32.mrb[0].mxu0
        %907 = vdwg.mxu0
        %908 = vmatprep.subr.bf16.mxu0 0
        %909 = vmatpush1.bf16.msra.mxu0 %v512
        %910 = vmatprep.subr.bf16.mxu0 0
        %911 = vmatpush1.bf16.msra.mxu0 0
        %912 = vmatprep.subr.bf16.mxu0 0
        %913 = vmatpush1.bf16.msra.mxu0 0
        %914 = vmatprep.subr.bf16.mxu0 0
        %915 = vmatpush1.bf16.msra.mxu0 0
        %916 = vmatprep.subr.bf16.mxu0 0
        %917 = vmatpush1.bf16.msra.mxu0 0
        %918 = vmatprep.subr.bf16.mxu0 0
        %919 = vmatpush1.bf16.msra.mxu0 0
        %920 = vmatprep.subr.bf16.mxu0 0
        %921 = vmatpush1.bf16.msra.mxu0 0
        %922 = vmatprep.subr.bf16.mxu0 0
        %923 = vmatpush1.bf16.msra.mxu0 0
        %924 = vmatprep.subr.bf16.mxu0 0
        %925 = vmatpush1.bf16.msra.mxu0 0
        %926 = vmatprep.subr.bf16.mxu0 0
        %927 = vmatpush1.bf16.msra.mxu0 0
        %928 = vmatprep.subr.bf16.mxu0 0
        %929 = vmatpush1.bf16.msra.mxu0 0
        %930 = vmatprep.subr.bf16.mxu0 0
        %931 = vmatpush1.bf16.msra.mxu0 0
        %932 = vmatprep.subr.bf16.mxu0 0
        %933 = vmatpush1.bf16.msra.mxu0 0
        %934 = vmatprep.subr.bf16.mxu0 0
        %935 = vmatpush1.bf16.msra.mxu0 0
        %936 = vmatprep.subr.bf16.mxu0 0
        %937 = vmatpush1.bf16.msra.mxu0 0
        %938 = vmatprep.subr.bf16.mxu0 0
        %939 = vmatpush1.bf16.msra.mxu0 0
        %940 = vmatprep.mubr.bf16.mxu0 0
        %941 = vmatmul.mubr.bf16.gmra.mrb[0].mxu0 %v560
        %v942 = vpop.f32.mrb[0].mxu0
        %v943 = vadd.f32 %v545, %v942
        %v944 = vpop.f32.mrb[0].mxu0
        %v945 = vpop.f32.mrb[0].mxu0
        %v946 = vadd.f32 %v546, %v945
        %v947 = vpop.f32.mrb[0].mxu0
        %948 = vmatprep.mubr.bf16.mxu0 0
        %949 = vmatmul.mubr.bf16.gmra.mrb[0].mxu0 %v563
        %v950 = vpop.f32.mrb[0].mxu0
        %v951 = vadd.f32 %v547, %v950
        %v952 = vpop.f32.mrb[0].mxu0
        %v953 = vpop.f32.mrb[0].mxu0
        %v954 = vadd.f32 %v548, %v953
        %v955 = vpop.f32.mrb[0].mxu0
        %956 = vdwg.mxu0
        %v957 = vmax.f32 %v600, 0.0
        %v958 = vmax.f32 %v603, 0.0
        %v959 = vmax.f32 %v608, 0.0
        %v960 = vmax.f32 %v611, 0.0
        %v961 = vmax.f32 %v649, 0.0
        %v962 = vmax.f32 %v652, 0.0
        %v963 = vmax.f32 %v657, 0.0
        %v964 = vmax.f32 %v660, 0.0
        %v965 = vmax.f32 %v698, 0.0
        %v966 = vmax.f32 %v701, 0.0
        %v967 = vmax.f32 %v706, 0.0
        %v968 = vmax.f32 %v709, 0.0
        %v969 = vmax.f32 %v747, 0.0
        %v970 = vmax.f32 %v750, 0.0
        %v971 = vmax.f32 %v755, 0.0
        %v972 = vmax.f32 %v758, 0.0
        %v973 = vmax.f32 %v796, 0.0
        %v974 = vmax.f32 %v799, 0.0
        %v975 = vmax.f32 %v804, 0.0
        %v976 = vmax.f32 %v807, 0.0
        %v977 = vmax.f32 %v845, 0.0
        %v978 = vmax.f32 %v848, 0.0
        %v979 = vmax.f32 %v853, 0.0
        %v980 = vmax.f32 %v856, 0.0
        %v981 = vmax.f32 %v894, 0.0
        %v982 = vmax.f32 %v897, 0.0
        %v983 = vmax.f32 %v902, 0.0
        %v984 = vmax.f32 %v905, 0.0
        %v985 = vmax.f32 %v943, 0.0
        %v986 = vmax.f32 %v946, 0.0
        %v987 = vmax.f32 %v951, 0.0
        %v988 = vmax.f32 %v954, 0.0
        %vm989 = vcmask 261120
        %990 = vst.msk [vmem:[%s312] sm:$0xff] %vm989, %v957
        %991 = vst.msk [vmem:[%s312 + $0x8] sm:$0xff] %vm989, %v958
        %992 = vst.msk [vmem:[%s312 + $0x10] sm:$0xff] %vm989, %v959
        %993 = vst.msk [vmem:[%s312 + $0x18] sm:$0xff] %vm989, %v960
        %994 = vst.msk [vmem:[%s312 + $0x20] sm:$0xff] %vm989, %v961
        %995 = vst.msk [vmem:[%s312 + $0x28] sm:$0xff] %vm989, %v962
        %996 = vst.msk [vmem:[%s312 + $0x30] sm:$0xff] %vm989, %v963
        %997 = vst.msk [vmem:[%s312 + $0x38] sm:$0xff] %vm989, %v964
        %998 = vst.msk [vmem:[%s312 + $0x40] sm:$0xff] %vm989, %v965
        %999 = vst.msk [vmem:[%s312 + $0x48] sm:$0xff] %vm989, %v966
        %1000 = vst.msk [vmem:[%s312 + $0x50] sm:$0xff] %vm989, %v967
        %1001 = vst.msk [vmem:[%s312 + $0x58] sm:$0xff] %vm989, %v968
        %1002 = vst.msk [vmem:[%s312 + $0x60] sm:$0xff] %vm989, %v969
        %1003 = vst.msk [vmem:[%s312 + $0x68] sm:$0xff] %vm989, %v970
        %1004 = vst.msk [vmem:[%s312 + $0x70] sm:$0xff] %vm989, %v971
        %1005 = vst.msk [vmem:[%s312 + $0x78] sm:$0xff] %vm989, %v972
        %1006 = vst.msk [vmem:[%s312 + $0x80] sm:$0xff] %vm989, %v973
        %1007 = vst.msk [vmem:[%s312 + $0x88] sm:$0xff] %vm989, %v974
        %1008 = vst.msk [vmem:[%s312 + $0x90] sm:$0xff] %vm989, %v975
        %1009 = vst.msk [vmem:[%s312 + $0x98] sm:$0xff] %vm989, %v976
        %1010 = vst.msk [vmem:[%s312 + $0xa0] sm:$0xff] %vm989, %v977
        %1011 = vst.msk [vmem:[%s312 + $0xa8] sm:$0xff] %vm989, %v978
        %1012 = vst.msk [vmem:[%s312 + $0xb0] sm:$0xff] %vm989, %v979
        %1013 = vst.msk [vmem:[%s312 + $0xb8] sm:$0xff] %vm989, %v980
        %1014 = vst.msk [vmem:[%s312 + $0xc0] sm:$0xff] %vm989, %v981
        %1015 = vst.msk [vmem:[%s312 + $0xc8] sm:$0xff] %vm989, %v982
        %1016 = vst.msk [vmem:[%s312 + $0xd0] sm:$0xff] %vm989, %v983
        %1017 = vst.msk [vmem:[%s312 + $0xd8] sm:$0xff] %vm989, %v984
        %1018 = vst.msk [vmem:[%s312 + $0xe0] sm:$0xff] %vm989, %v985
        %1019 = vst.msk [vmem:[%s312 + $0xe8] sm:$0xff] %vm989, %v986
        %1020 = vst.msk [vmem:[%s312 + $0xf0] sm:$0xff] %vm989, %v987
        %1021 = vst.msk [vmem:[%s312 + $0xf8] sm:$0xff] %vm989, %v988
        %s1022 = sand.u32 %s120, 1
        %s1023 = scalar_lea.sflag [#allocation4], %s1022
        %s1024 = sand.u32 %s120, 1
        %s1025 = smul.addr %s1024, 256
        %s1026 = scalar_lea.vmem [#allocation3], %s1025
        // Predicated region
        $region78: #{_lambda_.9} parent=72 // pred_check
          %p1027 = pneg %p130
        $region79: #{_lambda_.9} parent=72 // pred_check_branch
          %1029 = sbr.rel (%p1027) target = $region81
        $region80: #{_lambda_.9} parent=72 // pred_region
          %s1031 = ssub.s32 4096, 4096
          %1032 = vsyncadd %s1023, %s1031
          %s1033 = smul.addr %s18, 32
          %s1034 = smul.addr %s1033, 128
          %s1035 = scalar_lea.hbm %s4, %s1034
          %s1036 = sshll.u32 %s1026, 4
          %s1037 = int_to_ptr.vmem [resolvable:$true] %s1036
          %1042 = dma.vmem_to_hbm [thread:$0]  %s1037, 4096, %s1035, %s1023, 128, 128, 8
        $region81: #{_lambda_.9} parent=72 // pred_fallthru
          _
      $region73: #{_lambda_.9} parent=5 // pred_fallthru
        _
      %p1043 = scmp.le.s32.totalorder 2, %s13
      // Predicated region
      $region82: #{_lambda_.9} parent=5 // pred_check
        %p1044 = pneg %p1043
      $region83: #{_lambda_.9} parent=5 // pred_check_branch
        %1046 = sbr.rel (%p1044) target = $region85
      $region84: #{_lambda_.9} parent=5 // pred_region
        %s1047 = ssub.s32 %s13, 2
        // Predicated region
        $region86: #{_lambda_.9} parent=84 // pred_check
          %p1048 = pneg %p136
        $region87: #{_lambda_.9} parent=84 // pred_check_branch
          %1050 = sbr.rel (%p1048) target = $region89
        $region88: #{_lambda_.9} parent=84 // pred_region
          %s1051 = sand.u32 %s121, 1
          %s1052 = scalar_lea.sflag [#allocation4], %s1051
          %s1053 = sand.u32 %s121, 1
          %s1054 = smul.addr %s1053, 256
          %s1055 = scalar_lea.vmem [#allocation3], %s1054
          %1056 = dma.done %s1052, 4096
        $region89: #{_lambda_.9} parent=84 // pred_fallthru
          _
      $region85: #{_lambda_.9} parent=5 // pred_fallthru
        _
    $region6: #{_lambda_.9} parent=1 // loop_footer
      %s17 = sadd.s32 1, %s13
    $region7: #{_lambda_.9} parent=1 // loop_footer_branch
      %12 = sbr.rel target = $region3
    $region8: #{_lambda_.9} parent=1 // loop_exit
      _
    %1057 = vsyncpa [#allocation4], 1
    %s1058 = scalar_lea.sflag [#allocation4], 1
    %1059 = vsyncpa %s1058, 1

</llo_original>
